<compile_context>
chip_gen: v7x
topology: tpu7x:2x2x1
jax: 0.10.0
libtpu: 0.0.40
codegen_flags: <defaults>
</compile_context>

<pallas_src>
import jax
import jax.numpy as jnp
from jax import lax
from jax.experimental import pallas as pl
from jax.experimental.pallas import tpu as pltpu


# ----------------------------------------------------------------------------
# Parameters (deterministic, synthetic, PyTorch-equivalent layout)
# ----------------------------------------------------------------------------
def init_params(key, in_channels, num_classes=6):
    ks = jax.random.split(key, 12)
    s = 0.05

    def bn_params(k, c):
        kg, kb, km, kv = jax.random.split(k, 4)
        return {
            "gamma": 1.0 + 0.1 * jax.random.normal(kg, (c,), jnp.float32),
            "beta": 0.1 * jax.random.normal(kb, (c,), jnp.float32),
            "mean": 0.1 * jax.random.normal(km, (c,), jnp.float32),
            "var": jax.random.uniform(kv, (c,), jnp.float32, minval=0.5,
                                      maxval=1.5),
        }

    return {
        # conv weights in HWIO layout == torch (Cout,Cin,kh,kw).permute(2,3,1,0)
        "w1": jax.random.normal(ks[0], (3, 3, in_channels, 128), jnp.float32) * s,
        "b1": jax.random.normal(ks[1], (128,), jnp.float32) * s,
        "bn1": bn_params(ks[2], 128),
        "w2": jax.random.normal(ks[3], (3, 3, 128, 64), jnp.float32) * s,
        "b2": jax.random.normal(ks[4], (64,), jnp.float32) * s,
        "bn2": bn_params(ks[5], 64),
        "w3": jax.random.normal(ks[6], (3, 3, 64, 32), jnp.float32) * s,
        "b3": jax.random.normal(ks[7], (32,), jnp.float32) * s,
        "bn3": bn_params(ks[8], 32),
        "w4": jax.random.normal(ks[9], (1, 1, 32, num_classes), jnp.float32) * s,
        "b4": jax.random.normal(ks[10], (num_classes,), jnp.float32) * s,
    }


def _pick_batch_block(B, max_bblk=8):
    """Largest divisor of B (<= max_bblk) that keeps the grid >= 2 steps."""
    best = 1
    for c in range(1, min(max_bblk, B) + 1):
        if B % c == 0 and (B // c) >= 2:
            best = c
    return best


# ----------------------------------------------------------------------------
# Fused forward pass (one pallas_call, grid over batch blocks)
# ----------------------------------------------------------------------------
@jax.jit
def classifier_net3_forward(x_nchw, params):
    f32 = jnp.float32
    B, Cin, H, W = x_nchw.shape
    assert H % 4 == 0 and W % 4 == 0 and H >= 12 and W >= 12, (H, W)

    Hh, Wh = H // 2, W // 2            # conv2 (stride-2) output grid
    Hp, Wp = Hh // 2, Wh // 2          # after MaxPool2d(2, 2)
    Ho3, Wo3 = Hp - 2, Wp - 2          # conv3 (k3, valid) output grid
    QHW = Hh * Wh                      # rows per parity quadrant == conv2 M
    C1 = params["w1"].shape[3]         # 128
    C2 = params["w2"].shape[3]         # 64
    C3 = params["w3"].shape[3]         # 32
    NC = params["w4"].shape[3]         # 6
    K1 = 9 * Cin
    K3 = 9 * C2

    Bblk = _pick_batch_block(B)
    nb = B // Bblk

    # ---- fold eval-mode BatchNorm into conv weights / biases (exact) -------
    def fold(w_hwio, b, bn, eps=1e-5):
        scale = bn["gamma"] / jnp.sqrt(bn["var"] + eps)
        w = (w_hwio * scale).astype(f32)
        b = ((b - bn["mean"]) * scale + bn["beta"]).astype(f32)
        kh, kw, ci, co = w_hwio.shape
        return w.reshape(kh * kw * ci, co), b.reshape(1, co)

    w1f, b1f = fold(params["w1"], params["b1"], params["bn1"])      # (K1, C1)
    w2f, b2f = fold(params["w2"], params["b2"], params["bn2"])
    w2f = w2f.reshape(9, C1, C2)                                    # per-tap
    w3f, b3f = fold(params["w3"], params["b3"], params["bn3"])      # (K3, C3)
    w4f = params["w4"].reshape(C3, NC).astype(f32)
    b4f = params["b4"].reshape(1, NC).astype(f32)
    tmp = jnp.array([[35.0, 75.0, 150.0, 250.0, 350.0, 500.0]], f32) / 500.0

    # ---- wrapper-side conv1 im2col, packed by (h-parity, w-parity) ---------
    # (Layout plumbing only: all arithmetic of the network stays in-kernel.)
    x = jnp.transpose(x_nchw, (0, 2, 3, 1))                         # NHWC
    xp = jnp.pad(x, ((0, 0), (1, 1), (1, 1), (0, 0)))
    taps = [xp[:, kh:kh + H, kw:kw + W, :]
            for kh in range(3) for kw in range(3)]
    xcol = jnp.concatenate(taps, axis=-1)                           # (B,H,W,K1)
    xcol = xcol.reshape(B, Hh, 2, Wh, 2, K1)
    xcol = jnp.transpose(xcol, (0, 2, 4, 1, 3, 5))                  # (B,sh,sw,Hh,Wh,K1)
    xcol = xcol.reshape(B, 4, QHW, K1)                              # quadrant p = 2*sh+sw

    # ---- constant 0/1 selection matrix for the 2x2 max-pool compaction -----
    ar = jnp.arange(Hp * Wp)
    anchors = 2 * (ar // Wp) * Wh + 2 * (ar % Wp)
    sel = (anchors[:, None] == jnp.arange(QHW)[None, :]).astype(f32)  # (Hp*Wp, QHW)

    interior = 2 * Wh

    def kernel(xcol_ref, sel_ref, w1_ref, b1_ref, w2_ref, b2_ref,
               w3_ref, b3_ref, w4_ref, b4_ref, tmp_ref, o_ref,
               see, seo, soe, soo, pbuf, pooled_ref):
        scr = (see, seo, soe, soo)

        def elu(v):
            return jnp.where(v > 0, v, jnp.exp(jnp.minimum(v, 0.0)) - 1.0)

        # Edge masks on the stride-2 output grid (rows of a quadrant slab).
        q = lax.broadcasted_iota(jnp.int32, (QHW, 1), 0)
        if (Wh & (Wh - 1)) == 0:
            colq = jnp.bitwise_and(q, Wh - 1)
        else:
            colq = q % Wh
        not_left = colq != 0           # tap dw == -1 must not read column -1
        not_top = q >= Wh              # tap dh == -1 must not read row -1

        w1 = w1_ref[...]
        b1 = b1_ref[...]
        b2 = b2_ref[...]
        selm = sel_ref[...]

        # Zero the small read-only tail of the pooling reuse buffer (it is
        # read via shifted slices but never written; keeps garbage/NaNs out
        # of the selection matmul).  Cheap, and safe under megacore split.
        pbuf[QHW:, :] = jnp.zeros((Wh, C2), jnp.float32)

        for b in range(Bblk):
            # ---- conv1 (k3 s1 p1, Cin->C1) + folded BN1 + ELU --------------
            # One im2col matmul per parity quadrant; bias + ELU fused into
            # the single store to the quadrant's padded scratch.
            for p in range(4):
                y1 = jnp.dot(xcol_ref[b, p], w1,
                             preferred_element_type=jnp.float32)
                scr[p][b, interior:interior + QHW, :] = elu(y1 + b1)

            # ---- conv2 (k3 s2 p1, C1->C2) + folded BN2 + ELU ---------------
            # Evaluated only at the stride-2 output positions; every tap is a
            # contiguous shifted slab of one parity scratch, accumulated in
            # registers (no ref += dot, no zero fills).
            acc = None
            for dh in (-1, 0, 1):
                for dw in (-1, 0, 1):
                    ph = 1 if dh != 0 else 0
                    pw = 1 if dw != 0 else 0
                    rh = -1 if dh == -1 else 0
                    rw = -1 if dw == -1 else 0
                    s0 = (rh + 2) * Wh + rw
                    slab = scr[2 * ph + pw][b, s0:s0 + QHW, :]
                    if dh == -1 and dw == -1:
                        slab = jnp.where(jnp.logical_and(not_top, not_left),
                                         slab, 0.0)
                    elif dh == -1:
                        slab = jnp.where(not_top, slab, 0.0)
                    elif dw == -1:
                        slab = jnp.where(not_left, slab, 0.0)
                    t = jnp.dot(slab, w2_ref[(dh + 1) * 3 + (dw + 1)],
                                preferred_element_type=jnp.float32)
                    acc = t if acc is None else acc + t
            y2 = elu(acc + b2)                                  # (QHW, C2)

            # ---- MaxPool2d(2,2): shifted-slab maxima + selection matmul ----
            pbuf[0:QHW, :] = y2
            m1 = jnp.maximum(y2, pbuf[1:1 + QHW, :])            # pair over ox
            pbuf[0:QHW, :] = m1
            m2 = jnp.maximum(m1, pbuf[Wh:Wh + QHW, :])          # pair over oy
            pooled_ref[b] = jnp.dot(selm, m2,
                                    preferred_element_type=jnp.float32)

        # ---- conv3 (k3 valid, C2->C3) + folded BN3 + ELU --------------------
        # One im2col matmul over the whole batch block (M = Bblk*Ho3*Wo3,
        # K = 9*C2), built from contiguous slices of the pooled scratch.
        xcs = []
        for oy3 in range(Ho3):
            row_cols = [pooled_ref[:, (oy3 + kh) * Wp + kw:
                                   (oy3 + kh) * Wp + kw + Wo3, :]
                        for kh in range(3) for kw in range(3)]
            xcs.append(jnp.concatenate(row_cols, axis=-1))      # (Bblk,Wo3,K3)
        xc3 = jnp.concatenate(xcs, axis=1).reshape(Bblk * Ho3 * Wo3, K3)
        y3 = elu(jnp.dot(xc3, w3_ref[...],
                         preferred_element_type=jnp.float32) + b3_ref[...])

        # ---- conv4 (1x1, C3->NC) + ELU + AdaptiveAvgPool2d((1,1)) ----------
        y4 = elu(jnp.dot(y3, w4_ref[...],
                         preferred_element_type=jnp.float32) + b4_ref[...])
        y4 = y4.reshape(Bblk, Ho3 * Wo3, NC)
        g = y4[:, 0, :]
        for k in range(1, Ho3 * Wo3):
            g = g + y4[:, k, :]
        g = g * (1.0 / (Ho3 * Wo3))                              # (Bblk, NC)

        # ---- softmax(dim=1) + fixed projection with tmp_x ------------------
        mx = jnp.max(g, axis=-1, keepdims=True)
        e = jnp.exp(g - mx)
        prob = e / jnp.sum(e, axis=-1, keepdims=True)            # exact divide
        o_ref[0] = jnp.sum(prob * tmp_ref[...], axis=-1, keepdims=True)

    flops_per_img = 2 * (H * W * K1 * C1 + QHW * 9 * C1 * C2
                         + Hp * Wp * QHW * C2
                         + Ho3 * Wo3 * (K3 * C3 + C3 * NC))
    trans_per_img = H * W * C1 + QHW * C2 + Ho3 * Wo3 * (C3 + NC) + NC
    bytes_accessed = 4 * (xcol.size + sel.size + w1f.size + w2f.size
                          + w3f.size + w4f.size + b1f.size + b2f.size
                          + b3f.size + b4f.size + tmp.size + B)
    cost = pl.CostEstimate(flops=int(B * flops_per_img),
                           transcendentals=int(B * trans_per_img),
                           bytes_accessed=int(bytes_accessed))

    out = pl.pallas_call(
        kernel,
        out_shape=jax.ShapeDtypeStruct((nb, Bblk, 1), f32),
        grid=(nb,),
        in_specs=[
            pl.BlockSpec((Bblk, 4, QHW, K1), lambda i: (i, 0, 0, 0)),  # im2col x
            pl.BlockSpec((Hp * Wp, QHW), lambda i: (0, 0)),            # pool selector
            pl.BlockSpec((K1, C1), lambda i: (0, 0)),                  # w1 (im2col)
            pl.BlockSpec((1, C1), lambda i: (0, 0)),                   # b1 (BN folded)
            pl.BlockSpec((9, C1, C2), lambda i: (0, 0, 0)),            # w2 (per-tap)
            pl.BlockSpec((1, C2), lambda i: (0, 0)),                   # b2
            pl.BlockSpec((K3, C3), lambda i: (0, 0)),                  # w3 (im2col)
            pl.BlockSpec((1, C3), lambda i: (0, 0)),                   # b3
            pl.BlockSpec((C3, NC), lambda i: (0, 0)),                  # w4 (1x1)
            pl.BlockSpec((1, NC), lambda i: (0, 0)),                   # b4
            pl.BlockSpec((1, NC), lambda i: (0, 0)),                   # tmp_x weights
        ],
        out_specs=pl.BlockSpec((1, Bblk, 1), lambda i: (i, 0, 0)),
        scratch_shapes=[
            pltpu.VMEM((Bblk, (Hh + 2) * Wh, C1), f32),   # conv1 out (even h, even w)
            pltpu.VMEM((Bblk, (Hh + 2) * Wh, C1), f32),   # conv1 out (even h, odd w)
            pltpu.VMEM((Bblk, (Hh + 2) * Wh, C1), f32),   # conv1 out (odd h, even w)
            pltpu.VMEM((Bblk, (Hh + 2) * Wh, C1), f32),   # conv1 out (odd h, odd w)
            pltpu.VMEM((QHW + Wh, C2), f32),              # pooling reuse buffer
            pltpu.VMEM((Bblk, Hp * Wp, C2), f32),         # pooled feature map
        ],
        compiler_params=pltpu.CompilerParams(
            dimension_semantics=("parallel",),
            vmem_limit_bytes=32 * 1024 * 1024),
        cost_estimate=cost,
    )(xcol, sel, w1f, b1f, w2f, b2f, w3f, b3f, w4f, b4f, tmp)

    # torch.squeeze on the (B, 1) matmul result -> (B,)
    return out.reshape(B)


# ----------------------------------------------------------------------------
# Pure-JAX reference (for correctness check)
# ----------------------------------------------------------------------------
def reference_forward(x_nchw, params):
    eps = 1e-5
    dn = ("NHWC", "HWIO", "NHWC")

    def bn(y, p):
        return (y - p["mean"]) / jnp.sqrt(p["var"] + eps) * p["gamma"] + p["beta"]

    x = jnp.transpose(x_nchw, (0, 2, 3, 1))
    y = lax.conv_general_dilated(x, params["w1"], (1, 1), ((1, 1), (1, 1)),
                                 dimension_numbers=dn) + params["b1"]
    y = jax.nn.elu(bn(y, params["bn1"]))
    y = lax.conv_general_dilated(y, params["w2"], (2, 2), ((1, 1), (1, 1)),
                                 dimension_numbers=dn) + params["b2"]
    y = jax.nn.elu(bn(y, params["bn2"]))
    y = lax.reduce_window(y, -jnp.inf, lax.max, (1, 2, 2, 1), (1, 2, 2, 1),
                          "VALID")
    y = lax.conv_general_dilated(y, params["w3"], (1, 1), ((0, 0), (0, 0)),
                                 dimension_numbers=dn) + params["b3"]
    y = jax.nn.elu(bn(y, params["bn3"]))
    y = lax.conv_general_dilated(y, params["w4"], (1, 1), ((0, 0), (0, 0)),
                                 dimension_numbers=dn) + params["b4"]
    y = jax.nn.elu(y)
    g = jnp.mean(y, axis=(1, 2))                          # AdaptiveAvgPool2d(1)
    p = jax.nn.softmax(g, axis=1)                         # nn.Softmax(dim=1)
    tmp = jnp.array([35.0, 75.0, 150.0, 250.0, 350.0, 500.0], jnp.float32) / 500.0
    return p @ tmp                                        # torch.mm + squeeze


if __name__ == "__main__":
    key = jax.random.PRNGKey(0)
    kx, kp = jax.random.split(key)

    B, Cin, H, W = 2, 4, 16, 16   # 16 -> conv2(s2): 8 -> pool: 4 -> conv3: 2
    x = jax.random.normal(kx, (B, Cin, H, W), jnp.float32)
    params = init_params(kp, Cin)

    out = jax.block_until_ready(classifier_net3_forward(x, params))
    assert out.shape == (B,), out.shape
    assert bool(jnp.all(jnp.isfinite(out)))

    ref = reference_forward(x, params)
    err = float(jnp.max(jnp.abs(out - ref)))
    assert err < 5e-3, f"max abs err vs reference = {err}"

    print("KERNEL_OK")
</pallas_src>

<mosaic_0001>
module attributes {stable_mosaic.version = 11 : i64} {
  func.func @kernel(%arg0: i32, %arg1: memref<1x4x64x36xf32, #tpu.memory_space<vmem>>, %arg2: memref<16x64xf32, #tpu.memory_space<vmem>>, %arg3: memref<36x128xf32, #tpu.memory_space<vmem>>, %arg4: memref<1x128xf32, #tpu.memory_space<vmem>>, %arg5: memref<9x128x64xf32, #tpu.memory_space<vmem>>, %arg6: memref<1x64xf32, #tpu.memory_space<vmem>>, %arg7: memref<576x32xf32, #tpu.memory_space<vmem>>, %arg8: memref<1x32xf32, #tpu.memory_space<vmem>>, %arg9: memref<32x6xf32, #tpu.memory_space<vmem>>, %arg10: memref<1x6xf32, #tpu.memory_space<vmem>>, %arg11: memref<1x6xf32, #tpu.memory_space<vmem>>, %arg12: memref<1x1x1xf32, #tpu.memory_space<vmem>>, %arg13: memref<1x80x128xf32, #tpu.memory_space<vmem>>, %arg14: memref<1x80x128xf32, #tpu.memory_space<vmem>>, %arg15: memref<1x80x128xf32, #tpu.memory_space<vmem>>, %arg16: memref<1x80x128xf32, #tpu.memory_space<vmem>>, %arg17: memref<72x64xf32, #tpu.memory_space<vmem>>, %arg18: memref<1x16x64xf32, #tpu.memory_space<vmem>>) attributes {dimension_semantics = [#tpu.dimension_semantics<parallel>], iteration_bounds = array<i64: 2>, scalar_prefetch = 0 : i64, scratch_operands = 6 : i64, tpu.core_type = #tpu.core_type<tc>, window_params = [{transform_indices = @transform_0, window_bounds = array<i64: 1, 4, 64, 36>}, {pipeline_mode = #tpu.pipeline_mode<synchronous>, transform_indices = @transform_1, window_bounds = array<i64: 16, 64>}, {pipeline_mode = #tpu.pipeline_mode<synchronous>, transform_indices = @transform_2, window_bounds = array<i64: 36, 128>}, {pipeline_mode = #tpu.pipeline_mode<synchronous>, transform_indices = @transform_3, window_bounds = array<i64: 1, 128>}, {pipeline_mode = #tpu.pipeline_mode<synchronous>, transform_indices = @transform_4, window_bounds = array<i64: 9, 128, 64>}, {pipeline_mode = #tpu.pipeline_mode<synchronous>, transform_indices = @transform_5, window_bounds = array<i64: 1, 64>}, {pipeline_mode = #tpu.pipeline_mode<synchronous>, transform_indices = @transform_6, window_bounds = array<i64: 576, 32>}, {pipeline_mode = #tpu.pipeline_mode<synchronous>, transform_indices = @transform_7, window_bounds = array<i64: 1, 32>}, {pipeline_mode = #tpu.pipeline_mode<synchronous>, transform_indices = @transform_8, window_bounds = array<i64: 32, 6>}, {pipeline_mode = #tpu.pipeline_mode<synchronous>, transform_indices = @transform_9, window_bounds = array<i64: 1, 6>}, {pipeline_mode = #tpu.pipeline_mode<synchronous>, transform_indices = @transform_10, window_bounds = array<i64: 1, 6>}, {transform_indices = @transform_11, window_bounds = array<i64: 1, 1, 1>}]} {
    %0 = tpu.iota {dimensions = array<i32: 0>} : vector<64x1xi32>
    %c7_i32 = arith.constant 7 : i32
    %1 = vector.broadcast %c7_i32 : i32 to vector<64x1xi32>
    %2 = arith.andi %0, %1 : vector<64x1xi32>
    %c0_i32 = arith.constant 0 : i32
    %3 = vector.broadcast %c0_i32 : i32 to vector<64x1xi32>
    %4 = arith.cmpi ne, %2, %3 : vector<64x1xi32>
    %c8_i32 = arith.constant 8 : i32
    %5 = vector.broadcast %c8_i32 : i32 to vector<64x1xi32>
    %6 = arith.cmpi sge, %0, %5 : vector<64x1xi32>
    %c0 = arith.constant 0 : index
    %c0_0 = arith.constant 0 : index
    %7 = vector.load %arg3[%c0, %c0_0] : memref<36x128xf32, #tpu.memory_space<vmem>>, vector<36x128xf32>
    %c0_1 = arith.constant 0 : index
    %c0_2 = arith.constant 0 : index
    %8 = vector.load %arg4[%c0_1, %c0_2] : memref<1x128xf32, #tpu.memory_space<vmem>>, vector<1x128xf32>
    %c0_3 = arith.constant 0 : index
    %c0_4 = arith.constant 0 : index
    %9 = vector.load %arg6[%c0_3, %c0_4] : memref<1x64xf32, #tpu.memory_space<vmem>>, vector<1x64xf32>
    %c0_5 = arith.constant 0 : index
    %c0_6 = arith.constant 0 : index
    %10 = vector.load %arg2[%c0_5, %c0_6] : memref<16x64xf32, #tpu.memory_space<vmem>>, vector<16x64xf32>
    %cst = arith.constant 0.000000e+00 : f32
    %11 = vector.broadcast %cst : f32 to vector<8x64xf32>
    %c64 = arith.constant 64 : index
    %c0_7 = arith.constant 0 : index
    %12 = vector.load %arg17[%c64, %c0_7] : memref<72x64xf32, #tpu.memory_space<vmem>>, vector<8x64xf32>
    tpu.vector_store %arg17[%c64, %c0_7], %11 {strides = array<i32>} : memref<72x64xf32, #tpu.memory_space<vmem>>, vector<8x64xf32>,
    %c0_8 = arith.constant 0 : index
    %c0_9 = arith.constant 0 : index
    %c0_10 = arith.constant 0 : index
    %c0_11 = arith.constant 0 : index
    %13 = vector.load %arg1[%c0_8, %c0_9, %c0_10, %c0_11] : memref<1x4x64x36xf32, #tpu.memory_space<vmem>>, vector<1x1x64x36xf32>
    %14 = vector.shape_cast %13 : vector<1x1x64x36xf32> to vector<64x36xf32>
    %cst_12 = arith.constant dense<0.000000e+00> : vector<64x128xf32>
    %15 = tpu.matmul %14, %7, %cst_12 {dimension_numbers = #tpu.dot_dimension_numbers<[1], [0], [0], [1], [0, 0, 1, 1], [], []>} : vector<64x36xf32>, vector<36x128xf32>, vector<64x128xf32> -> vector<64x128xf32>
    %16 = vector.broadcast %8 : vector<1x128xf32> to vector<64x128xf32>
    %17 = arith.addf %15, %16 : vector<64x128xf32>
    %cst_13 = arith.constant 0.000000e+00 : f32
    %18 = vector.broadcast %cst_13 : f32 to vector<64x128xf32>
    %19 = arith.cmpf ogt, %17, %18 : vector<64x128xf32>
    %cst_14 = arith.constant 0.000000e+00 : f32
    %20 = vector.broadcast %cst_14 : f32 to vector<64x128xf32>
    %21 = arith.minimumf %17, %20 : vector<64x128xf32>
    %22 = math.exp %21 : vector<64x128xf32>
    %cst_15 = arith.constant 1.000000e+00 : f32
    %23 = vector.broadcast %cst_15 : f32 to vector<64x128xf32>
    %24 = arith.subf %22, %23 : vector<64x128xf32>
    %25 = arith.select %19, %17, %24 : vector<64x128xi1>, vector<64x128xf32>
    %c0_16 = arith.constant 0 : index
    %c16 = arith.constant 16 : index
    %c0_17 = arith.constant 0 : index
    %26 = vector.load %arg13[%c0_16, %c16, %c0_17] : memref<1x80x128xf32, #tpu.memory_space<vmem>>, vector<1x64x128xf32>
    %27 = vector.shape_cast %26 : vector<1x64x128xf32> to vector<64x128xf32>
    %28 = vector.shape_cast %25 : vector<64x128xf32> to vector<1x64x128xf32>
    tpu.vector_store %arg13[%c0_16, %c16, %c0_17], %28 {strides = array<i32>} : memref<1x80x128xf32, #tpu.memory_space<vmem>>, vector<1x64x128xf32>,
    %c0_18 = arith.constant 0 : index
    %c1 = arith.constant 1 : index
    %c0_19 = arith.constant 0 : index
    %c0_20 = arith.constant 0 : index
    %29 = vector.load %arg1[%c0_18, %c1, %c0_19, %c0_20] : memref<1x4x64x36xf32, #tpu.memory_space<vmem>>, vector<1x1x64x36xf32>
    %30 = vector.shape_cast %29 : vector<1x1x64x36xf32> to vector<64x36xf32>
    %cst_21 = arith.constant dense<0.000000e+00> : vector<64x128xf32>
    %31 = tpu.matmul %30, %7, %cst_21 {dimension_numbers = #tpu.dot_dimension_numbers<[1], [0], [0], [1], [0, 0, 1, 1], [], []>} : vector<64x36xf32>, vector<36x128xf32>, vector<64x128xf32> -> vector<64x128xf32>
    %32 = vector.broadcast %8 : vector<1x128xf32> to vector<64x128xf32>
    %33 = arith.addf %31, %32 : vector<64x128xf32>
    %cst_22 = arith.constant 0.000000e+00 : f32
    %34 = vector.broadcast %cst_22 : f32 to vector<64x128xf32>
    %35 = arith.cmpf ogt, %33, %34 : vector<64x128xf32>
    %cst_23 = arith.constant 0.000000e+00 : f32
    %36 = vector.broadcast %cst_23 : f32 to vector<64x128xf32>
    %37 = arith.minimumf %33, %36 : vector<64x128xf32>
    %38 = math.exp %37 : vector<64x128xf32>
    %cst_24 = arith.constant 1.000000e+00 : f32
    %39 = vector.broadcast %cst_24 : f32 to vector<64x128xf32>
    %40 = arith.subf %38, %39 : vector<64x128xf32>
    %41 = arith.select %35, %33, %40 : vector<64x128xi1>, vector<64x128xf32>
    %c0_25 = arith.constant 0 : index
    %c16_26 = arith.constant 16 : index
    %c0_27 = arith.constant 0 : index
    %42 = vector.load %arg14[%c0_25, %c16_26, %c0_27] : memref<1x80x128xf32, #tpu.memory_space<vmem>>, vector<1x64x128xf32>
    %43 = vector.shape_cast %42 : vector<1x64x128xf32> to vector<64x128xf32>
    %44 = vector.shape_cast %41 : vector<64x128xf32> to vector<1x64x128xf32>
    tpu.vector_store %arg14[%c0_25, %c16_26, %c0_27], %44 {strides = array<i32>} : memref<1x80x128xf32, #tpu.memory_space<vmem>>, vector<1x64x128xf32>,
    %c0_28 = arith.constant 0 : index
    %c2 = arith.constant 2 : index
    %c0_29 = arith.constant 0 : index
    %c0_30 = arith.constant 0 : index
    %45 = vector.load %arg1[%c0_28, %c2, %c0_29, %c0_30] : memref<1x4x64x36xf32, #tpu.memory_space<vmem>>, vector<1x1x64x36xf32>
    %46 = vector.shape_cast %45 : vector<1x1x64x36xf32> to vector<64x36xf32>
    %cst_31 = arith.constant dense<0.000000e+00> : vector<64x128xf32>
    %47 = tpu.matmul %46, %7, %cst_31 {dimension_numbers = #tpu.dot_dimension_numbers<[1], [0], [0], [1], [0, 0, 1, 1], [], []>} : vector<64x36xf32>, vector<36x128xf32>, vector<64x128xf32> -> vector<64x128xf32>
    %48 = vector.broadcast %8 : vector<1x128xf32> to vector<64x128xf32>
    %49 = arith.addf %47, %48 : vector<64x128xf32>
    %cst_32 = arith.constant 0.000000e+00 : f32
    %50 = vector.broadcast %cst_32 : f32 to vector<64x128xf32>
    %51 = arith.cmpf ogt, %49, %50 : vector<64x128xf32>
    %cst_33 = arith.constant 0.000000e+00 : f32
    %52 = vector.broadcast %cst_33 : f32 to vector<64x128xf32>
    %53 = arith.minimumf %49, %52 : vector<64x128xf32>
    %54 = math.exp %53 : vector<64x128xf32>
    %cst_34 = arith.constant 1.000000e+00 : f32
    %55 = vector.broadcast %cst_34 : f32 to vector<64x128xf32>
    %56 = arith.subf %54, %55 : vector<64x128xf32>
    %57 = arith.select %51, %49, %56 : vector<64x128xi1>, vector<64x128xf32>
    %c0_35 = arith.constant 0 : index
    %c16_36 = arith.constant 16 : index
    %c0_37 = arith.constant 0 : index
    %58 = vector.load %arg15[%c0_35, %c16_36, %c0_37] : memref<1x80x128xf32, #tpu.memory_space<vmem>>, vector<1x64x128xf32>
    %59 = vector.shape_cast %58 : vector<1x64x128xf32> to vector<64x128xf32>
    %60 = vector.shape_cast %57 : vector<64x128xf32> to vector<1x64x128xf32>
    tpu.vector_store %arg15[%c0_35, %c16_36, %c0_37], %60 {strides = array<i32>} : memref<1x80x128xf32, #tpu.memory_space<vmem>>, vector<1x64x128xf32>,
    %c0_38 = arith.constant 0 : index
    %c3 = arith.constant 3 : index
    %c0_39 = arith.constant 0 : index
    %c0_40 = arith.constant 0 : index
    %61 = vector.load %arg1[%c0_38, %c3, %c0_39, %c0_40] : memref<1x4x64x36xf32, #tpu.memory_space<vmem>>, vector<1x1x64x36xf32>
    %62 = vector.shape_cast %61 : vector<1x1x64x36xf32> to vector<64x36xf32>
    %cst_41 = arith.constant dense<0.000000e+00> : vector<64x128xf32>
    %63 = tpu.matmul %62, %7, %cst_41 {dimension_numbers = #tpu.dot_dimension_numbers<[1], [0], [0], [1], [0, 0, 1, 1], [], []>} : vector<64x36xf32>, vector<36x128xf32>, vector<64x128xf32> -> vector<64x128xf32>
    %64 = vector.broadcast %8 : vector<1x128xf32> to vector<64x128xf32>
    %65 = arith.addf %63, %64 : vector<64x128xf32>
    %cst_42 = arith.constant 0.000000e+00 : f32
    %66 = vector.broadcast %cst_42 : f32 to vector<64x128xf32>
    %67 = arith.cmpf ogt, %65, %66 : vector<64x128xf32>
    %cst_43 = arith.constant 0.000000e+00 : f32
    %68 = vector.broadcast %cst_43 : f32 to vector<64x128xf32>
    %69 = arith.minimumf %65, %68 : vector<64x128xf32>
    %70 = math.exp %69 : vector<64x128xf32>
    %cst_44 = arith.constant 1.000000e+00 : f32
    %71 = vector.broadcast %cst_44 : f32 to vector<64x128xf32>
    %72 = arith.subf %70, %71 : vector<64x128xf32>
    %73 = arith.select %67, %65, %72 : vector<64x128xi1>, vector<64x128xf32>
    %c0_45 = arith.constant 0 : index
    %c16_46 = arith.constant 16 : index
    %c0_47 = arith.constant 0 : index
    %74 = vector.load %arg16[%c0_45, %c16_46, %c0_47] : memref<1x80x128xf32, #tpu.memory_space<vmem>>, vector<1x64x128xf32>
    %75 = vector.shape_cast %74 : vector<1x64x128xf32> to vector<64x128xf32>
    %76 = vector.shape_cast %73 : vector<64x128xf32> to vector<1x64x128xf32>
    tpu.vector_store %arg16[%c0_45, %c16_46, %c0_47], %76 {strides = array<i32>} : memref<1x80x128xf32, #tpu.memory_space<vmem>>, vector<1x64x128xf32>,
    %c0_48 = arith.constant 0 : index
    %c7 = arith.constant 7 : index
    %c0_49 = arith.constant 0 : index
    %77 = vector.load %arg16[%c0_48, %c7, %c0_49] : memref<1x80x128xf32, #tpu.memory_space<vmem>>, vector<1x64x128xf32>
    %78 = vector.shape_cast %77 : vector<1x64x128xf32> to vector<64x128xf32>
    %79 = arith.andi %6, %4 : vector<64x1xi1>
    %cst_50 = arith.constant 0.000000e+00 : f32
    %80 = vector.shape_cast %79 : vector<64x1xi1> to vector<64x1xi1>
    %81 = vector.broadcast %80 : vector<64x1xi1> to vector<64x128xi1>
    %82 = vector.broadcast %cst_50 : f32 to vector<64x128xf32>
    %83 = arith.select %81, %78, %82 : vector<64x128xi1>, vector<64x128xf32>
    %c0_51 = arith.constant 0 : index
    %c0_52 = arith.constant 0 : index
    %c0_53 = arith.constant 0 : index
    %84 = vector.load %arg5[%c0_51, %c0_52, %c0_53] : memref<9x128x64xf32, #tpu.memory_space<vmem>>, vector<1x128x64xf32>
    %85 = vector.shape_cast %84 : vector<1x128x64xf32> to vector<128x64xf32>
    %cst_54 = arith.constant dense<0.000000e+00> : vector<64x64xf32>
    %86 = tpu.matmul %83, %85, %cst_54 {dimension_numbers = #tpu.dot_dimension_numbers<[1], [0], [0], [1], [0, 0, 1, 1], [], []>} : vector<64x128xf32>, vector<128x64xf32>, vector<64x64xf32> -> vector<64x64xf32>
    %c0_55 = arith.constant 0 : index
    %c8 = arith.constant 8 : index
    %c0_56 = arith.constant 0 : index
    %87 = vector.load %arg15[%c0_55, %c8, %c0_56] : memref<1x80x128xf32, #tpu.memory_space<vmem>>, vector<1x64x128xf32>
    %88 = vector.shape_cast %87 : vector<1x64x128xf32> to vector<64x128xf32>
    %cst_57 = arith.constant 0.000000e+00 : f32
    %89 = vector.shape_cast %6 : vector<64x1xi1> to vector<64x1xi1>
    %90 = vector.broadcast %89 : vector<64x1xi1> to vector<64x128xi1>
    %91 = vector.broadcast %cst_57 : f32 to vector<64x128xf32>
    %92 = arith.select %90, %88, %91 : vector<64x128xi1>, vector<64x128xf32>
    %c1_58 = arith.constant 1 : index
    %c0_59 = arith.constant 0 : index
    %c0_60 = arith.constant 0 : index
    %93 = vector.load %arg5[%c1_58, %c0_59, %c0_60] : memref<9x128x64xf32, #tpu.memory_space<vmem>>, vector<1x128x64xf32>
    %94 = vector.shape_cast %93 : vector<1x128x64xf32> to vector<128x64xf32>
    %cst_61 = arith.constant dense<0.000000e+00> : vector<64x64xf32>
    %95 = tpu.matmul %92, %94, %cst_61 {dimension_numbers = #tpu.dot_dimension_numbers<[1], [0], [0], [1], [0, 0, 1, 1], [], []>} : vector<64x128xf32>, vector<128x64xf32>, vector<64x64xf32> -> vector<64x64xf32>
    %96 = arith.addf %86, %95 : vector<64x64xf32>
    %c0_62 = arith.constant 0 : index
    %c8_63 = arith.constant 8 : index
    %c0_64 = arith.constant 0 : index
    %97 = vector.load %arg16[%c0_62, %c8_63, %c0_64] : memref<1x80x128xf32, #tpu.memory_space<vmem>>, vector<1x64x128xf32>
    %98 = vector.shape_cast %97 : vector<1x64x128xf32> to vector<64x128xf32>
    %cst_65 = arith.constant 0.000000e+00 : f32
    %99 = vector.shape_cast %6 : vector<64x1xi1> to vector<64x1xi1>
    %100 = vector.broadcast %99 : vector<64x1xi1> to vector<64x128xi1>
    %101 = vector.broadcast %cst_65 : f32 to vector<64x128xf32>
    %102 = arith.select %100, %98, %101 : vector<64x128xi1>, vector<64x128xf32>
    %c2_66 = arith.constant 2 : index
    %c0_67 = arith.constant 0 : index
    %c0_68 = arith.constant 0 : index
    %103 = vector.load %arg5[%c2_66, %c0_67, %c0_68] : memref<9x128x64xf32, #tpu.memory_space<vmem>>, vector<1x128x64xf32>
    %104 = vector.shape_cast %103 : vector<1x128x64xf32> to vector<128x64xf32>
    %cst_69 = arith.constant dense<0.000000e+00> : vector<64x64xf32>
    %105 = tpu.matmul %102, %104, %cst_69 {dimension_numbers = #tpu.dot_dimension_numbers<[1], [0], [0], [1], [0, 0, 1, 1], [], []>} : vector<64x128xf32>, vector<128x64xf32>, vector<64x64xf32> -> vector<64x64xf32>
    %106 = arith.addf %96, %105 : vector<64x64xf32>
    %c0_70 = arith.constant 0 : index
    %c15 = arith.constant 15 : index
    %c0_71 = arith.constant 0 : index
    %107 = vector.load %arg14[%c0_70, %c15, %c0_71] : memref<1x80x128xf32, #tpu.memory_space<vmem>>, vector<1x64x128xf32>
    %108 = vector.shape_cast %107 : vector<1x64x128xf32> to vector<64x128xf32>
    %cst_72 = arith.constant 0.000000e+00 : f32
    %109 = vector.shape_cast %4 : vector<64x1xi1> to vector<64x1xi1>
    %110 = vector.broadcast %109 : vector<64x1xi1> to vector<64x128xi1>
    %111 = vector.broadcast %cst_72 : f32 to vector<64x128xf32>
    %112 = arith.select %110, %108, %111 : vector<64x128xi1>, vector<64x128xf32>
    %c3_73 = arith.constant 3 : index
    %c0_74 = arith.constant 0 : index
    %c0_75 = arith.constant 0 : index
    %113 = vector.load %arg5[%c3_73, %c0_74, %c0_75] : memref<9x128x64xf32, #tpu.memory_space<vmem>>, vector<1x128x64xf32>
    %114 = vector.shape_cast %113 : vector<1x128x64xf32> to vector<128x64xf32>
    %cst_76 = arith.constant dense<0.000000e+00> : vector<64x64xf32>
    %115 = tpu.matmul %112, %114, %cst_76 {dimension_numbers = #tpu.dot_dimension_numbers<[1], [0], [0], [1], [0, 0, 1, 1], [], []>} : vector<64x128xf32>, vector<128x64xf32>, vector<64x64xf32> -> vector<64x64xf32>
    %116 = arith.addf %106, %115 : vector<64x64xf32>
    %c0_77 = arith.constant 0 : index
    %c16_78 = arith.constant 16 : index
    %c0_79 = arith.constant 0 : index
    %117 = vector.load %arg13[%c0_77, %c16_78, %c0_79] : memref<1x80x128xf32, #tpu.memory_space<vmem>>, vector<1x64x128xf32>
    %118 = vector.shape_cast %117 : vector<1x64x128xf32> to vector<64x128xf32>
    %c4 = arith.constant 4 : index
    %c0_80 = arith.constant 0 : index
    %c0_81 = arith.constant 0 : index
    %119 = vector.load %arg5[%c4, %c0_80, %c0_81] : memref<9x128x64xf32, #tpu.memory_space<vmem>>, vector<1x128x64xf32>
    %120 = vector.shape_cast %119 : vector<1x128x64xf32> to vector<128x64xf32>
    %cst_82 = arith.constant dense<0.000000e+00> : vector<64x64xf32>
    %121 = tpu.matmul %118, %120, %cst_82 {dimension_numbers = #tpu.dot_dimension_numbers<[1], [0], [0], [1], [0, 0, 1, 1], [], []>} : vector<64x128xf32>, vector<128x64xf32>, vector<64x64xf32> -> vector<64x64xf32>
    %122 = arith.addf %116, %121 : vector<64x64xf32>
    %c0_83 = arith.constant 0 : index
    %c16_84 = arith.constant 16 : index
    %c0_85 = arith.constant 0 : index
    %123 = vector.load %arg14[%c0_83, %c16_84, %c0_85] : memref<1x80x128xf32, #tpu.memory_space<vmem>>, vector<1x64x128xf32>
    %124 = vector.shape_cast %123 : vector<1x64x128xf32> to vector<64x128xf32>
    %c5 = arith.constant 5 : index
    %c0_86 = arith.constant 0 : index
    %c0_87 = arith.constant 0 : index
    %125 = vector.load %arg5[%c5, %c0_86, %c0_87] : memref<9x128x64xf32, #tpu.memory_space<vmem>>, vector<1x128x64xf32>
    %126 = vector.shape_cast %125 : vector<1x128x64xf32> to vector<128x64xf32>
    %cst_88 = arith.constant dense<0.000000e+00> : vector<64x64xf32>
    %127 = tpu.matmul %124, %126, %cst_88 {dimension_numbers = #tpu.dot_dimension_numbers<[1], [0], [0], [1], [0, 0, 1, 1], [], []>} : vector<64x128xf32>, vector<128x64xf32>, vector<64x64xf32> -> vector<64x64xf32>
    %128 = arith.addf %122, %127 : vector<64x64xf32>
    %c0_89 = arith.constant 0 : index
    %c15_90 = arith.constant 15 : index
    %c0_91 = arith.constant 0 : index
    %129 = vector.load %arg16[%c0_89, %c15_90, %c0_91] : memref<1x80x128xf32, #tpu.memory_space<vmem>>, vector<1x64x128xf32>
    %130 = vector.shape_cast %129 : vector<1x64x128xf32> to vector<64x128xf32>
    %cst_92 = arith.constant 0.000000e+00 : f32
    %131 = vector.shape_cast %4 : vector<64x1xi1> to vector<64x1xi1>
    %132 = vector.broadcast %131 : vector<64x1xi1> to vector<64x128xi1>
    %133 = vector.broadcast %cst_92 : f32 to vector<64x128xf32>
    %134 = arith.select %132, %130, %133 : vector<64x128xi1>, vector<64x128xf32>
    %c6 = arith.constant 6 : index
    %c0_93 = arith.constant 0 : index
    %c0_94 = arith.constant 0 : index
    %135 = vector.load %arg5[%c6, %c0_93, %c0_94] : memref<9x128x64xf32, #tpu.memory_space<vmem>>, vector<1x128x64xf32>
    %136 = vector.shape_cast %135 : vector<1x128x64xf32> to vector<128x64xf32>
    %cst_95 = arith.constant dense<0.000000e+00> : vector<64x64xf32>
    %137 = tpu.matmul %134, %136, %cst_95 {dimension_numbers = #tpu.dot_dimension_numbers<[1], [0], [0], [1], [0, 0, 1, 1], [], []>} : vector<64x128xf32>, vector<128x64xf32>, vector<64x64xf32> -> vector<64x64xf32>
    %138 = arith.addf %128, %137 : vector<64x64xf32>
    %c0_96 = arith.constant 0 : index
    %c16_97 = arith.constant 16 : index
    %c0_98 = arith.constant 0 : index
    %139 = vector.load %arg15[%c0_96, %c16_97, %c0_98] : memref<1x80x128xf32, #tpu.memory_space<vmem>>, vector<1x64x128xf32>
    %140 = vector.shape_cast %139 : vector<1x64x128xf32> to vector<64x128xf32>
    %c7_99 = arith.constant 7 : index
    %c0_100 = arith.constant 0 : index
    %c0_101 = arith.constant 0 : index
    %141 = vector.load %arg5[%c7_99, %c0_100, %c0_101] : memref<9x128x64xf32, #tpu.memory_space<vmem>>, vector<1x128x64xf32>
    %142 = vector.shape_cast %141 : vector<1x128x64xf32> to vector<128x64xf32>
    %cst_102 = arith.constant dense<0.000000e+00> : vector<64x64xf32>
    %143 = tpu.matmul %140, %142, %cst_102 {dimension_numbers = #tpu.dot_dimension_numbers<[1], [0], [0], [1], [0, 0, 1, 1], [], []>} : vector<64x128xf32>, vector<128x64xf32>, vector<64x64xf32> -> vector<64x64xf32>
    %144 = arith.addf %138, %143 : vector<64x64xf32>
    %c0_103 = arith.constant 0 : index
    %c16_104 = arith.constant 16 : index
    %c0_105 = arith.constant 0 : index
    %145 = vector.load %arg16[%c0_103, %c16_104, %c0_105] : memref<1x80x128xf32, #tpu.memory_space<vmem>>, vector<1x64x128xf32>
    %146 = vector.shape_cast %145 : vector<1x64x128xf32> to vector<64x128xf32>
    %c8_106 = arith.constant 8 : index
    %c0_107 = arith.constant 0 : index
    %c0_108 = arith.constant 0 : index
    %147 = vector.load %arg5[%c8_106, %c0_107, %c0_108] : memref<9x128x64xf32, #tpu.memory_space<vmem>>, vector<1x128x64xf32>
    %148 = vector.shape_cast %147 : vector<1x128x64xf32> to vector<128x64xf32>
    %cst_109 = arith.constant dense<0.000000e+00> : vector<64x64xf32>
    %149 = tpu.matmul %146, %148, %cst_109 {dimension_numbers = #tpu.dot_dimension_numbers<[1], [0], [0], [1], [0, 0, 1, 1], [], []>} : vector<64x128xf32>, vector<128x64xf32>, vector<64x64xf32> -> vector<64x64xf32>
    %150 = arith.addf %144, %149 : vector<64x64xf32>
    %151 = vector.broadcast %9 : vector<1x64xf32> to vector<64x64xf32>
    %152 = arith.addf %150, %151 : vector<64x64xf32>
    %cst_110 = arith.constant 0.000000e+00 : f32
    %153 = vector.broadcast %cst_110 : f32 to vector<64x64xf32>
    %154 = arith.cmpf ogt, %152, %153 : vector<64x64xf32>
    %cst_111 = arith.constant 0.000000e+00 : f32
    %155 = vector.broadcast %cst_111 : f32 to vector<64x64xf32>
    %156 = arith.minimumf %152, %155 : vector<64x64xf32>
    %157 = math.exp %156 : vector<64x64xf32>
    %cst_112 = arith.constant 1.000000e+00 : f32
    %158 = vector.broadcast %cst_112 : f32 to vector<64x64xf32>
    %159 = arith.subf %157, %158 : vector<64x64xf32>
    %160 = arith.select %154, %152, %159 : vector<64x64xi1>, vector<64x64xf32>
    %c0_113 = arith.constant 0 : index
    %c0_114 = arith.constant 0 : index
    %161 = vector.load %arg17[%c0_113, %c0_114] : memref<72x64xf32, #tpu.memory_space<vmem>>, vector<64x64xf32>
    tpu.vector_store %arg17[%c0_113, %c0_114], %160 {strides = array<i32>} : memref<72x64xf32, #tpu.memory_space<vmem>>, vector<64x64xf32>,
    %c1_115 = arith.constant 1 : index
    %c0_116 = arith.constant 0 : index
    %162 = vector.load %arg17[%c1_115, %c0_116] : memref<72x64xf32, #tpu.memory_space<vmem>>, vector<64x64xf32>
    %163 = arith.maximumf %160, %162 : vector<64x64xf32>
    %c0_117 = arith.constant 0 : index
    %c0_118 = arith.constant 0 : index
    %164 = vector.load %arg17[%c0_117, %c0_118] : memref<72x64xf32, #tpu.memory_space<vmem>>, vector<64x64xf32>
    tpu.vector_store %arg17[%c0_117, %c0_118], %163 {strides = array<i32>} : memref<72x64xf32, #tpu.memory_space<vmem>>, vector<64x64xf32>,
    %c8_119 = arith.constant 8 : index
    %c0_120 = arith.constant 0 : index
    %165 = vector.load %arg17[%c8_119, %c0_120] : memref<72x64xf32, #tpu.memory_space<vmem>>, vector<64x64xf32>
    %166 = arith.maximumf %163, %165 : vector<64x64xf32>
    %cst_121 = arith.constant dense<0.000000e+00> : vector<16x64xf32>
    %167 = tpu.matmul %10, %166, %cst_121 {dimension_numbers = #tpu.dot_dimension_numbers<[1], [0], [0], [1], [0, 0, 1, 1], [], []>} : vector<16x64xf32>, vector<64x64xf32>, vector<16x64xf32> -> vector<16x64xf32>
    %c0_122 = arith.constant 0 : index
    %c0_123 = arith.constant 0 : index
    %c0_124 = arith.constant 0 : index
    %168 = vector.load %arg18[%c0_122, %c0_123, %c0_124] : memref<1x16x64xf32, #tpu.memory_space<vmem>>, vector<1x16x64xf32>
    %169 = vector.shape_cast %168 : vector<1x16x64xf32> to vector<16x64xf32>
    %170 = vector.shape_cast %167 : vector<16x64xf32> to vector<1x16x64xf32>
    tpu.vector_store %arg18[%c0_122, %c0_123, %c0_124], %170 {strides = array<i32>} : memref<1x16x64xf32, #tpu.memory_space<vmem>>, vector<1x16x64xf32>,
    %c0_125 = arith.constant 0 : index
    %c0_126 = arith.constant 0 : index
    %c0_127 = arith.constant 0 : index
    %171 = vector.load %arg18[%c0_125, %c0_126, %c0_127] : memref<1x16x64xf32, #tpu.memory_space<vmem>>, vector<1x2x64xf32>
    %c0_128 = arith.constant 0 : index
    %c1_129 = arith.constant 1 : index
    %c0_130 = arith.constant 0 : index
    %172 = vector.load %arg18[%c0_128, %c1_129, %c0_130] : memref<1x16x64xf32, #tpu.memory_space<vmem>>, vector<1x2x64xf32>
    %c0_131 = arith.constant 0 : index
    %c2_132 = arith.constant 2 : index
    %c0_133 = arith.constant 0 : index
    %173 = vector.load %arg18[%c0_131, %c2_132, %c0_133] : memref<1x16x64xf32, #tpu.memory_space<vmem>>, vector<1x2x64xf32>
    %c0_134 = arith.constant 0 : index
    %c4_135 = arith.constant 4 : index
    %c0_136 = arith.constant 0 : index
    %174 = vector.load %arg18[%c0_134, %c4_135, %c0_136] : memref<1x16x64xf32, #tpu.memory_space<vmem>>, vector<1x2x64xf32>
    %c0_137 = arith.constant 0 : index
    %c5_138 = arith.constant 5 : index
    %c0_139 = arith.constant 0 : index
    %175 = vector.load %arg18[%c0_137, %c5_138, %c0_139] : memref<1x16x64xf32, #tpu.memory_space<vmem>>, vector<1x2x64xf32>
    %c0_140 = arith.constant 0 : index
    %c6_141 = arith.constant 6 : index
    %c0_142 = arith.constant 0 : index
    %176 = vector.load %arg18[%c0_140, %c6_141, %c0_142] : memref<1x16x64xf32, #tpu.memory_space<vmem>>, vector<1x2x64xf32>
    %c0_143 = arith.constant 0 : index
    %c8_144 = arith.constant 8 : index
    %c0_145 = arith.constant 0 : index
    %177 = vector.load %arg18[%c0_143, %c8_144, %c0_145] : memref<1x16x64xf32, #tpu.memory_space<vmem>>, vector<1x2x64xf32>
    %c0_146 = arith.constant 0 : index
    %c9 = arith.constant 9 : index
    %c0_147 = arith.constant 0 : index
    %178 = vector.load %arg18[%c0_146, %c9, %c0_147] : memref<1x16x64xf32, #tpu.memory_space<vmem>>, vector<1x2x64xf32>
    %c0_148 = arith.constant 0 : index
    %c10 = arith.constant 10 : index
    %c0_149 = arith.constant 0 : index
    %179 = vector.load %arg18[%c0_148, %c10, %c0_149] : memref<1x16x64xf32, #tpu.memory_space<vmem>>, vector<1x2x64xf32>
    %180 = tpu.concatenate %171, %172, %173, %174, %175, %176, %177, %178, %179 in 2 : vector<1x2x64xf32>, vector<1x2x64xf32>, vector<1x2x64xf32>, vector<1x2x64xf32>, vector<1x2x64xf32>, vector<1x2x64xf32>, vector<1x2x64xf32>, vector<1x2x64xf32>, vector<1x2x64xf32> -> vector<1x2x576xf32>
    %c0_150 = arith.constant 0 : index
    %c4_151 = arith.constant 4 : index
    %c0_152 = arith.constant 0 : index
    %181 = vector.load %arg18[%c0_150, %c4_151, %c0_152] : memref<1x16x64xf32, #tpu.memory_space<vmem>>, vector<1x2x64xf32>
    %c0_153 = arith.constant 0 : index
    %c5_154 = arith.constant 5 : index
    %c0_155 = arith.constant 0 : index
    %182 = vector.load %arg18[%c0_153, %c5_154, %c0_155] : memref<1x16x64xf32, #tpu.memory_space<vmem>>, vector<1x2x64xf32>
    %c0_156 = arith.constant 0 : index
    %c6_157 = arith.constant 6 : index
    %c0_158 = arith.constant 0 : index
    %183 = vector.load %arg18[%c0_156, %c6_157, %c0_158] : memref<1x16x64xf32, #tpu.memory_space<vmem>>, vector<1x2x64xf32>
    %c0_159 = arith.constant 0 : index
    %c8_160 = arith.constant 8 : index
    %c0_161 = arith.constant 0 : index
    %184 = vector.load %arg18[%c0_159, %c8_160, %c0_161] : memref<1x16x64xf32, #tpu.memory_space<vmem>>, vector<1x2x64xf32>
    %c0_162 = arith.constant 0 : index
    %c9_163 = arith.constant 9 : index
    %c0_164 = arith.constant 0 : index
    %185 = vector.load %arg18[%c0_162, %c9_163, %c0_164] : memref<1x16x64xf32, #tpu.memory_space<vmem>>, vector<1x2x64xf32>
    %c0_165 = arith.constant 0 : index
    %c10_166 = arith.constant 10 : index
    %c0_167 = arith.constant 0 : index
    %186 = vector.load %arg18[%c0_165, %c10_166, %c0_167] : memref<1x16x64xf32, #tpu.memory_space<vmem>>, vector<1x2x64xf32>
    %c0_168 = arith.constant 0 : index
    %c12 = arith.constant 12 : index
    %c0_169 = arith.constant 0 : index
    %187 = vector.load %arg18[%c0_168, %c12, %c0_169] : memref<1x16x64xf32, #tpu.memory_space<vmem>>, vector<1x2x64xf32>
    %c0_170 = arith.constant 0 : index
    %c13 = arith.constant 13 : index
    %c0_171 = arith.constant 0 : index
    %188 = vector.load %arg18[%c0_170, %c13, %c0_171] : memref<1x16x64xf32, #tpu.memory_space<vmem>>, vector<1x2x64xf32>
    %c0_172 = arith.constant 0 : index
    %c14 = arith.constant 14 : index
    %c0_173 = arith.constant 0 : index
    %189 = vector.load %arg18[%c0_172, %c14, %c0_173] : memref<1x16x64xf32, #tpu.memory_space<vmem>>, vector<1x2x64xf32>
    %190 = tpu.concatenate %181, %182, %183, %184, %185, %186, %187, %188, %189 in 2 : vector<1x2x64xf32>, vector<1x2x64xf32>, vector<1x2x64xf32>, vector<1x2x64xf32>, vector<1x2x64xf32>, vector<1x2x64xf32>, vector<1x2x64xf32>, vector<1x2x64xf32>, vector<1x2x64xf32> -> vector<1x2x576xf32>
    %191 = tpu.concatenate %180, %190 in 1 : vector<1x2x576xf32>, vector<1x2x576xf32> -> vector<1x4x576xf32>
    %192 = vector.shape_cast %191 : vector<1x4x576xf32> to vector<4x576xf32>
    %c0_174 = arith.constant 0 : index
    %c0_175 = arith.constant 0 : index
    %193 = vector.load %arg7[%c0_174, %c0_175] : memref<576x32xf32, #tpu.memory_space<vmem>>, vector<576x32xf32>
    %cst_176 = arith.constant dense<0.000000e+00> : vector<4x32xf32>
    %194 = tpu.matmul %192, %193, %cst_176 {dimension_numbers = #tpu.dot_dimension_numbers<[1], [0], [0], [1], [0, 0, 1, 1], [], []>} : vector<4x576xf32>, vector<576x32xf32>, vector<4x32xf32> -> vector<4x32xf32>
    %c0_177 = arith.constant 0 : index
    %c0_178 = arith.constant 0 : index
    %195 = vector.load %arg8[%c0_177, %c0_178] : memref<1x32xf32, #tpu.memory_space<vmem>>, vector<1x32xf32>
    %196 = vector.broadcast %195 : vector<1x32xf32> to vector<4x32xf32>
    %197 = arith.addf %194, %196 : vector<4x32xf32>
    %cst_179 = arith.constant 0.000000e+00 : f32
    %198 = vector.broadcast %cst_179 : f32 to vector<4x32xf32>
    %199 = arith.cmpf ogt, %197, %198 : vector<4x32xf32>
    %cst_180 = arith.constant 0.000000e+00 : f32
    %200 = vector.broadcast %cst_180 : f32 to vector<4x32xf32>
    %201 = arith.minimumf %197, %200 : vector<4x32xf32>
    %202 = math.exp %201 : vector<4x32xf32>
    %cst_181 = arith.constant 1.000000e+00 : f32
    %203 = vector.broadcast %cst_181 : f32 to vector<4x32xf32>
    %204 = arith.subf %202, %203 : vector<4x32xf32>
    %205 = arith.select %199, %197, %204 : vector<4x32xi1>, vector<4x32xf32>
    %c0_182 = arith.constant 0 : index
    %c0_183 = arith.constant 0 : index
    %206 = vector.load %arg9[%c0_182, %c0_183] : memref<32x6xf32, #tpu.memory_space<vmem>>, vector<32x6xf32>
    %cst_184 = arith.constant dense<0.000000e+00> : vector<4x6xf32>
    %207 = tpu.matmul %205, %206, %cst_184 {dimension_numbers = #tpu.dot_dimension_numbers<[1], [0], [0], [1], [0, 0, 1, 1], [], []>} : vector<4x32xf32>, vector<32x6xf32>, vector<4x6xf32> -> vector<4x6xf32>
    %c0_185 = arith.constant 0 : index
    %c0_186 = arith.constant 0 : index
    %208 = vector.load %arg10[%c0_185, %c0_186] : memref<1x6xf32, #tpu.memory_space<vmem>>, vector<1x6xf32>
    %209 = vector.broadcast %208 : vector<1x6xf32> to vector<4x6xf32>
    %210 = arith.addf %207, %209 : vector<4x6xf32>
    %cst_187 = arith.constant 0.000000e+00 : f32
    %211 = vector.broadcast %cst_187 : f32 to vector<4x6xf32>
    %212 = arith.cmpf ogt, %210, %211 : vector<4x6xf32>
    %cst_188 = arith.constant 0.000000e+00 : f32
    %213 = vector.broadcast %cst_188 : f32 to vector<4x6xf32>
    %214 = arith.minimumf %210, %213 : vector<4x6xf32>
    %215 = math.exp %214 : vector<4x6xf32>
    %cst_189 = arith.constant 1.000000e+00 : f32
    %216 = vector.broadcast %cst_189 : f32 to vector<4x6xf32>
    %217 = arith.subf %215, %216 : vector<4x6xf32>
    %218 = arith.select %212, %210, %217 : vector<4x6xi1>, vector<4x6xf32>
    %219 = vector.shape_cast %218 : vector<4x6xf32> to vector<1x4x6xf32>
    %220 = vector.extract_strided_slice %219 {offsets = [0, 0, 0], sizes = [1, 1, 6], strides = [1, 1, 1]} : vector<1x4x6xf32> to vector<1x1x6xf32>
    %221 = vector.shape_cast %220 : vector<1x1x6xf32> to vector<1x6xf32>
    %222 = vector.extract_strided_slice %219 {offsets = [0, 1, 0], sizes = [1, 1, 6], strides = [1, 1, 1]} : vector<1x4x6xf32> to vector<1x1x6xf32>
    %223 = vector.shape_cast %222 : vector<1x1x6xf32> to vector<1x6xf32>
    %224 = arith.addf %221, %223 : vector<1x6xf32>
    %225 = vector.extract_strided_slice %219 {offsets = [0, 2, 0], sizes = [1, 1, 6], strides = [1, 1, 1]} : vector<1x4x6xf32> to vector<1x1x6xf32>
    %226 = vector.shape_cast %225 : vector<1x1x6xf32> to vector<1x6xf32>
    %227 = arith.addf %224, %226 : vector<1x6xf32>
    %228 = vector.extract_strided_slice %219 {offsets = [0, 3, 0], sizes = [1, 1, 6], strides = [1, 1, 1]} : vector<1x4x6xf32> to vector<1x1x6xf32>
    %229 = vector.shape_cast %228 : vector<1x1x6xf32> to vector<1x6xf32>
    %230 = arith.addf %227, %229 : vector<1x6xf32>
    %cst_190 = arith.constant 2.500000e-01 : f32
    %231 = vector.broadcast %cst_190 : f32 to vector<1x6xf32>
    %232 = arith.mulf %230, %231 : vector<1x6xf32>
    %cst_191 = arith.constant dense<0xFF800000> : vector<1xf32>
    %233 = vector.multi_reduction <maximumf>, %232, %cst_191 [1] : vector<1x6xf32> to vector<1xf32>
    %234 = vector.shape_cast %233 : vector<1xf32> to vector<1x1xf32>
    %235 = vector.broadcast %234 : vector<1x1xf32> to vector<1x6xf32>
    %236 = arith.subf %232, %235 : vector<1x6xf32>
    %237 = math.exp %236 : vector<1x6xf32>
    %cst_192 = arith.constant dense<0.000000e+00> : vector<1xf32>
    %238 = vector.multi_reduction <add>, %237, %cst_192 [1] : vector<1x6xf32> to vector<1xf32>
    %239 = vector.shape_cast %238 : vector<1xf32> to vector<1x1xf32>
    %240 = vector.broadcast %239 : vector<1x1xf32> to vector<1x6xf32>
    %241 = arith.divf %237, %240 : vector<1x6xf32>
    %c0_193 = arith.constant 0 : index
    %c0_194 = arith.constant 0 : index
    %242 = vector.load %arg11[%c0_193, %c0_194] : memref<1x6xf32, #tpu.memory_space<vmem>>, vector<1x6xf32>
    %243 = arith.mulf %241, %242 : vector<1x6xf32>
    %cst_195 = arith.constant dense<0.000000e+00> : vector<1xf32>
    %244 = vector.multi_reduction <add>, %243, %cst_195 [1] : vector<1x6xf32> to vector<1xf32>
    %245 = vector.shape_cast %244 : vector<1xf32> to vector<1x1xf32>
    %c0_196 = arith.constant 0 : index
    %c0_197 = arith.constant 0 : index
    %c0_198 = arith.constant 0 : index
    %246 = vector.load %arg12[%c0_196, %c0_197, %c0_198] : memref<1x1x1xf32, #tpu.memory_space<vmem>>, vector<1x1x1xf32>
    %247 = vector.shape_cast %246 : vector<1x1x1xf32> to vector<1x1xf32>
    %248 = vector.shape_cast %245 : vector<1x1xf32> to vector<1x1x1xf32>
    tpu.vector_store %arg12[%c0_196, %c0_197, %c0_198], %248 {strides = array<i32>} : memref<1x1x1xf32, #tpu.memory_space<vmem>>, vector<1x1x1xf32>,
    return
  }
  func.func @transform_0(%arg0: i32) -> (i32, i32, i32, i32) {
    %c0_i32 = arith.constant 0 : i32
    %c0_i32_0 = arith.constant 0 : i32
    %c0_i32_1 = arith.constant 0 : i32
    %c0_i32_2 = arith.constant 0 : i32
    return %arg0, %c0_i32, %c0_i32_0, %c0_i32_1 : i32, i32, i32, i32
  }
  func.func @transform_1(%arg0: i32) -> (i32, i32) {
    %c0_i32 = arith.constant 0 : i32
    %c0_i32_0 = arith.constant 0 : i32
    %c0_i32_1 = arith.constant 0 : i32
    return %c0_i32, %c0_i32_0 : i32, i32
  }
  func.func @transform_2(%arg0: i32) -> (i32, i32) {
    %c0_i32 = arith.constant 0 : i32
    %c0_i32_0 = arith.constant 0 : i32
    %c0_i32_1 = arith.constant 0 : i32
    return %c0_i32, %c0_i32_0 : i32, i32
  }
  func.func @transform_3(%arg0: i32) -> (i32, i32) {
    %c0_i32 = arith.constant 0 : i32
    %c0_i32_0 = arith.constant 0 : i32
    %c0_i32_1 = arith.constant 0 : i32
    return %c0_i32, %c0_i32_0 : i32, i32
  }
  func.func @transform_4(%arg0: i32) -> (i32, i32, i32) {
    %c0_i32 = arith.constant 0 : i32
    %c0_i32_0 = arith.constant 0 : i32
    %c0_i32_1 = arith.constant 0 : i32
    %c0_i32_2 = arith.constant 0 : i32
    return %c0_i32, %c0_i32_0, %c0_i32_1 : i32, i32, i32
  }
  func.func @transform_5(%arg0: i32) -> (i32, i32) {
    %c0_i32 = arith.constant 0 : i32
    %c0_i32_0 = arith.constant 0 : i32
    %c0_i32_1 = arith.constant 0 : i32
    return %c0_i32, %c0_i32_0 : i32, i32
  }
  func.func @transform_6(%arg0: i32) -> (i32, i32) {
    %c0_i32 = arith.constant 0 : i32
    %c0_i32_0 = arith.constant 0 : i32
    %c0_i32_1 = arith.constant 0 : i32
    return %c0_i32, %c0_i32_0 : i32, i32
  }
  func.func @transform_7(%arg0: i32) -> (i32, i32) {
    %c0_i32 = arith.constant 0 : i32
    %c0_i32_0 = arith.constant 0 : i32
    %c0_i32_1 = arith.constant 0 : i32
    return %c0_i32, %c0_i32_0 : i32, i32
  }
  func.func @transform_8(%arg0: i32) -> (i32, i32) {
    %c0_i32 = arith.constant 0 : i32
    %c0_i32_0 = arith.constant 0 : i32
    %c0_i32_1 = arith.constant 0 : i32
    return %c0_i32, %c0_i32_0 : i32, i32
  }
  func.func @transform_9(%arg0: i32) -> (i32, i32) {
    %c0_i32 = arith.constant 0 : i32
    %c0_i32_0 = arith.constant 0 : i32
    %c0_i32_1 = arith.constant 0 : i32
    return %c0_i32, %c0_i32_0 : i32, i32
  }
  func.func @transform_10(%arg0: i32) -> (i32, i32) {
    %c0_i32 = arith.constant 0 : i32
    %c0_i32_0 = arith.constant 0 : i32
    %c0_i32_1 = arith.constant 0 : i32
    return %c0_i32, %c0_i32_0 : i32, i32
  }
  func.func @transform_11(%arg0: i32) -> (i32, i32, i32) {
    %c0_i32 = arith.constant 0 : i32
    %c0_i32_0 = arith.constant 0 : i32
    %c0_i32_1 = arith.constant 0 : i32
    return %arg0, %c0_i32, %c0_i32_0 : i32, i32, i32
  }
}

</mosaic_0001>

<llo_original>
// kernel: classifier_net3_forward.1
$region0: #{classifier_net3_forward.1}
  #allocation0 [shape = 'u32[]', space=smem, size = 0x4, offset = 0x4, fixed_abs, tag = 'smem constant byte address 0x4 - core index']
  #allocation1 [shape = 'u32[144,128]{1,0:T(1,128)}', space=vmem, size = 0x12000, scoped, tag = 'internal scratch']
  #allocation2 [shape = 'f32[1,80,128]{2,1,0:T(8,128)}', space=vmem, size = 0xa000, scoped, tag = 'scratch operand']
  #allocation3 [shape = 'f32[1,80,128]{2,1,0:T(8,128)}', space=vmem, size = 0xa000, scoped, tag = 'scratch operand']
  #allocation4 [shape = 'f32[1,80,128]{2,1,0:T(8,128)}', space=vmem, size = 0xa000, scoped, tag = 'scratch operand']
  #allocation5 [shape = 'f32[1,80,128]{2,1,0:T(8,128)}', space=vmem, size = 0xa000, scoped, tag = 'scratch operand']
  #allocation6 [shape = 'f32[72,64]{1,0:T(8,128)}', space=vmem, size = 0x9000, scoped, tag = 'scratch operand']
  #allocation7 [shape = 'f32[1,16,64]{2,1,0:T(8,128)}', space=vmem, size = 0x2000, scoped, tag = 'scratch operand']
  %s0 = inlined_call_operand.vmem [shape: f32[2,4,64,36], index: 0, kind: input, shape index: {}]
  %s1 = inlined_call_operand.vmem [shape: f32[16,64], index: 1, kind: input, shape index: {}]
  %s2 = inlined_call_operand.vmem [shape: f32[36,128], index: 2, kind: input, shape index: {}]
  %s3 = inlined_call_operand.vmem [shape: f32[1,128], index: 3, kind: input, shape index: {}]
  %s4 = inlined_call_operand.vmem [shape: f32[9,128,64], index: 4, kind: input, shape index: {}]
  %s5 = inlined_call_operand.vmem [shape: f32[1,64], index: 5, kind: input, shape index: {}]
  %s6 = inlined_call_operand.vmem [shape: f32[576,32], index: 6, kind: input, shape index: {}]
  %s7 = inlined_call_operand.vmem [shape: f32[1,32], index: 7, kind: input, shape index: {}]
  %s8 = inlined_call_operand.vmem [shape: f32[32,6], index: 8, kind: input, shape index: {}]
  %s9 = inlined_call_operand.vmem [shape: f32[1,6], index: 9, kind: input, shape index: {}]
  %s10 = inlined_call_operand.vmem [shape: f32[1,6], index: 10, kind: input, shape index: {}]
  %s11 = inlined_call_operand.vmem [shape: f32[2,1,1], index: 11, kind: output, shape index: {}]
  %s12 = sld [smem:[#allocation0]]
  $region77: #{classifier_net3_forward.1} parent=0
    _
  %s14 = ssub.s32 1, %s12
  %s15 = scalar_select 0, %s14, %s12
  loop: start=0, step=1, limit=4
  $region2: #{classifier_net3_forward.1} parent=0 // loop_pre_header
    _
  $region3: #{classifier_net3_forward.1} parent=0 // loop_header
    %s17 = sphi 0, %s21
    %p18 = scmp.ge.s32.totalorder %s17, 4
    %s27 = sphi 0, %s29
    %s30 = sphi 0, %s27
    %s31 = sphi 0, %s30
    %s47 = sphi 0, %s31
    %s51 = sphi 0, %s51
    %s53 = sphi 0, %s51
    %s54 = sphi 0, %s53
    %s68 = sphi 0, %s54
    %s72 = sphi 0, %s72
    %s74 = sphi 0, %s72
    %s75 = sphi 0, %s74
    %s89 = sphi 0, %s75
    %s93 = sphi 0, %s93
    %s95 = sphi 0, %s93
    %s96 = sphi 0, %s95
    %s110 = sphi 0, %s96
    %s114 = sphi 0, %s114
    %s116 = sphi 0, %s114
    %s117 = sphi 0, %s116
    %s131 = sphi 0, %s117
    %s135 = sphi 0, %s135
    %s137 = sphi 0, %s135
    %s138 = sphi 0, %s137
    %s152 = sphi 0, %s138
    %s156 = sphi 0, %s156
    %s158 = sphi 0, %s156
    %s159 = sphi 0, %s158
    %s173 = sphi 0, %s159
    %s177 = sphi 0, %s177
    %s179 = sphi 0, %s177
    %s180 = sphi 0, %s179
    %s194 = sphi 0, %s180
    %s198 = sphi 0, %s198
    %s200 = sphi 0, %s198
    %s201 = sphi 0, %s200
    %s215 = sphi 0, %s201
    %s219 = sphi 0, %s219
    %s221 = sphi 0, %s219
    %s222 = sphi 0, %s221
    %s236 = sphi 0, %s222
    %s240 = sphi 0, %s240
    %s242 = sphi 0, %s240
    %s243 = sphi 0, %s242
    %s257 = sphi 0, %s243
    %s263 = sphi 0, %s265
    %s266 = sphi 0, %s263
    %s267 = sphi 0, %s266
    %s283 = sphi 0, %s267
  $region4: #{classifier_net3_forward.1} parent=0 // loop_header_branch
    %20 = sbr.rel (%p18) target = $region8
  $region5: #{classifier_net3_forward.1} parent=0 // loop_body
    %s22 = ssub.s32 %s17, 1
    %s23 = ssub.s32 %s17, 2
    %s24 = sadd.s32 %s17, 1
    %s25 = ssub.s32 %s17, %s24
    %p26 = scmp.eq.s32.totalorder %s25, 0
    %s28 = sadd.s32 %s27, 1
    %s29 = scalar_select %p26, %s27, %s28
    %p32 = pneg %p26
    %p33 = scmp.eq.s32.totalorder %s17, 1
    %p34 = por %p32, %p33
    %p35 = scmp.ne.s32.totalorder %s27, %s30
    %p36 = scmp.eq.s32.totalorder %s17, 0
    %p37 = por %p35, %p36
    %p38 = scmp.ne.s32.totalorder %s27, %s30
    %p39 = scmp.eq.s32.totalorder %s22, 1
    %p40 = por %p38, %p39
    %p41 = scmp.ne.s32.totalorder %s30, %s31
    %p42 = scmp.eq.s32.totalorder %s22, 0
    %p43 = por %p41, %p42
    %p44 = scmp.ne.s32.totalorder %s30, %s31
    %p45 = scmp.eq.s32.totalorder %s23, 1
    %p46 = por %p44, %p45
    %p48 = scmp.ne.s32.totalorder %s31, %s47
    %p49 = scmp.eq.s32.totalorder %s23, 0
    %p50 = por %p48, %p49
    %s52 = sadd.s32 %s51, 1
    %p55 = scmp.eq.s32.totalorder %s17, 1
    %p56 = scmp.ne.s32.totalorder %s51, %s53
    %p57 = scmp.eq.s32.totalorder %s17, 0
    %p58 = por %p56, %p57
    %p59 = scmp.ne.s32.totalorder %s51, %s53
    %p60 = scmp.eq.s32.totalorder %s22, 1
    %p61 = por %p59, %p60
    %p62 = scmp.ne.s32.totalorder %s53, %s54
    %p63 = scmp.eq.s32.totalorder %s22, 0
    %p64 = por %p62, %p63
    %p65 = scmp.ne.s32.totalorder %s53, %s54
    %p66 = scmp.eq.s32.totalorder %s23, 1
    %p67 = por %p65, %p66
    %p69 = scmp.ne.s32.totalorder %s54, %s68
    %p70 = scmp.eq.s32.totalorder %s23, 0
    %p71 = por %p69, %p70
    %s73 = sadd.s32 %s72, 1
    %p76 = scmp.eq.s32.totalorder %s17, 1
    %p77 = scmp.ne.s32.totalorder %s72, %s74
    %p78 = scmp.eq.s32.totalorder %s17, 0
    %p79 = por %p77, %p78
    %p80 = scmp.ne.s32.totalorder %s72, %s74
    %p81 = scmp.eq.s32.totalorder %s22, 1
    %p82 = por %p80, %p81
    %p83 = scmp.ne.s32.totalorder %s74, %s75
    %p84 = scmp.eq.s32.totalorder %s22, 0
    %p85 = por %p83, %p84
    %p86 = scmp.ne.s32.totalorder %s74, %s75
    %p87 = scmp.eq.s32.totalorder %s23, 1
    %p88 = por %p86, %p87
    %p90 = scmp.ne.s32.totalorder %s75, %s89
    %p91 = scmp.eq.s32.totalorder %s23, 0
    %p92 = por %p90, %p91
    %s94 = sadd.s32 %s93, 1
    %p97 = scmp.eq.s32.totalorder %s17, 1
    %p98 = scmp.ne.s32.totalorder %s93, %s95
    %p99 = scmp.eq.s32.totalorder %s17, 0
    %p100 = por %p98, %p99
    %p101 = scmp.ne.s32.totalorder %s93, %s95
    %p102 = scmp.eq.s32.totalorder %s22, 1
    %p103 = por %p101, %p102
    %p104 = scmp.ne.s32.totalorder %s95, %s96
    %p105 = scmp.eq.s32.totalorder %s22, 0
    %p106 = por %p104, %p105
    %p107 = scmp.ne.s32.totalorder %s95, %s96
    %p108 = scmp.eq.s32.totalorder %s23, 1
    %p109 = por %p107, %p108
    %p111 = scmp.ne.s32.totalorder %s96, %s110
    %p112 = scmp.eq.s32.totalorder %s23, 0
    %p113 = por %p111, %p112
    %s115 = sadd.s32 %s114, 1
    %p118 = scmp.eq.s32.totalorder %s17, 1
    %p119 = scmp.ne.s32.totalorder %s114, %s116
    %p120 = scmp.eq.s32.totalorder %s17, 0
    %p121 = por %p119, %p120
    %p122 = scmp.ne.s32.totalorder %s114, %s116
    %p123 = scmp.eq.s32.totalorder %s22, 1
    %p124 = por %p122, %p123
    %p125 = scmp.ne.s32.totalorder %s116, %s117
    %p126 = scmp.eq.s32.totalorder %s22, 0
    %p127 = por %p125, %p126
    %p128 = scmp.ne.s32.totalorder %s116, %s117
    %p129 = scmp.eq.s32.totalorder %s23, 1
    %p130 = por %p128, %p129
    %p132 = scmp.ne.s32.totalorder %s117, %s131
    %p133 = scmp.eq.s32.totalorder %s23, 0
    %p134 = por %p132, %p133
    %s136 = sadd.s32 %s135, 1
    %p139 = scmp.eq.s32.totalorder %s17, 1
    %p140 = scmp.ne.s32.totalorder %s135, %s137
    %p141 = scmp.eq.s32.totalorder %s17, 0
    %p142 = por %p140, %p141
    %p143 = scmp.ne.s32.totalorder %s135, %s137
    %p144 = scmp.eq.s32.totalorder %s22, 1
    %p145 = por %p143, %p144
    %p146 = scmp.ne.s32.totalorder %s137, %s138
    %p147 = scmp.eq.s32.totalorder %s22, 0
    %p148 = por %p146, %p147
    %p149 = scmp.ne.s32.totalorder %s137, %s138
    %p150 = scmp.eq.s32.totalorder %s23, 1
    %p151 = por %p149, %p150
    %p153 = scmp.ne.s32.totalorder %s138, %s152
    %p154 = scmp.eq.s32.totalorder %s23, 0
    %p155 = por %p153, %p154
    %s157 = sadd.s32 %s156, 1
    %p160 = scmp.eq.s32.totalorder %s17, 1
    %p161 = scmp.ne.s32.totalorder %s156, %s158
    %p162 = scmp.eq.s32.totalorder %s17, 0
    %p163 = por %p161, %p162
    %p164 = scmp.ne.s32.totalorder %s156, %s158
    %p165 = scmp.eq.s32.totalorder %s22, 1
    %p166 = por %p164, %p165
    %p167 = scmp.ne.s32.totalorder %s158, %s159
    %p168 = scmp.eq.s32.totalorder %s22, 0
    %p169 = por %p167, %p168
    %p170 = scmp.ne.s32.totalorder %s158, %s159
    %p171 = scmp.eq.s32.totalorder %s23, 1
    %p172 = por %p170, %p171
    %p174 = scmp.ne.s32.totalorder %s159, %s173
    %p175 = scmp.eq.s32.totalorder %s23, 0
    %p176 = por %p174, %p175
    %s178 = sadd.s32 %s177, 1
    %p181 = scmp.eq.s32.totalorder %s17, 1
    %p182 = scmp.ne.s32.totalorder %s177, %s179
    %p183 = scmp.eq.s32.totalorder %s17, 0
    %p184 = por %p182, %p183
    %p185 = scmp.ne.s32.totalorder %s177, %s179
    %p186 = scmp.eq.s32.totalorder %s22, 1
    %p187 = por %p185, %p186
    %p188 = scmp.ne.s32.totalorder %s179, %s180
    %p189 = scmp.eq.s32.totalorder %s22, 0
    %p190 = por %p188, %p189
    %p191 = scmp.ne.s32.totalorder %s179, %s180
    %p192 = scmp.eq.s32.totalorder %s23, 1
    %p193 = por %p191, %p192
    %p195 = scmp.ne.s32.totalorder %s180, %s194
    %p196 = scmp.eq.s32.totalorder %s23, 0
    %p197 = por %p195, %p196
    %s199 = sadd.s32 %s198, 1
    %p202 = scmp.eq.s32.totalorder %s17, 1
    %p203 = scmp.ne.s32.totalorder %s198, %s200
    %p204 = scmp.eq.s32.totalorder %s17, 0
    %p205 = por %p203, %p204
    %p206 = scmp.ne.s32.totalorder %s198, %s200
    %p207 = scmp.eq.s32.totalorder %s22, 1
    %p208 = por %p206, %p207
    %p209 = scmp.ne.s32.totalorder %s200, %s201
    %p210 = scmp.eq.s32.totalorder %s22, 0
    %p211 = por %p209, %p210
    %p212 = scmp.ne.s32.totalorder %s200, %s201
    %p213 = scmp.eq.s32.totalorder %s23, 1
    %p214 = por %p212, %p213
    %p216 = scmp.ne.s32.totalorder %s201, %s215
    %p217 = scmp.eq.s32.totalorder %s23, 0
    %p218 = por %p216, %p217
    %s220 = sadd.s32 %s219, 1
    %p223 = scmp.eq.s32.totalorder %s17, 1
    %p224 = scmp.ne.s32.totalorder %s219, %s221
    %p225 = scmp.eq.s32.totalorder %s17, 0
    %p226 = por %p224, %p225
    %p227 = scmp.ne.s32.totalorder %s219, %s221
    %p228 = scmp.eq.s32.totalorder %s22, 1
    %p229 = por %p227, %p228
    %p230 = scmp.ne.s32.totalorder %s221, %s222
    %p231 = scmp.eq.s32.totalorder %s22, 0
    %p232 = por %p230, %p231
    %p233 = scmp.ne.s32.totalorder %s221, %s222
    %p234 = scmp.eq.s32.totalorder %s23, 1
    %p235 = por %p233, %p234
    %p237 = scmp.ne.s32.totalorder %s222, %s236
    %p238 = scmp.eq.s32.totalorder %s23, 0
    %p239 = por %p237, %p238
    %s241 = sadd.s32 %s240, 1
    %p244 = scmp.eq.s32.totalorder %s17, 1
    %p245 = scmp.ne.s32.totalorder %s240, %s242
    %p246 = scmp.eq.s32.totalorder %s17, 0
    %p247 = por %p245, %p246
    %p248 = scmp.ne.s32.totalorder %s240, %s242
    %p249 = scmp.eq.s32.totalorder %s22, 1
    %p250 = por %p248, %p249
    %p251 = scmp.ne.s32.totalorder %s242, %s243
    %p252 = scmp.eq.s32.totalorder %s22, 0
    %p253 = por %p251, %p252
    %p254 = scmp.ne.s32.totalorder %s242, %s243
    %p255 = scmp.eq.s32.totalorder %s23, 1
    %p256 = por %p254, %p255
    %p258 = scmp.ne.s32.totalorder %s243, %s257
    %p259 = scmp.eq.s32.totalorder %s23, 0
    %p260 = por %p258, %p259
    %s261 = ssub.s32 %s17, %s24
    %p262 = scmp.eq.s32.totalorder %s261, 0
    %s264 = sadd.s32 %s263, 1
    %s265 = scalar_select %p262, %s263, %s264
    %p268 = pneg %p262
    %p269 = scmp.eq.s32.totalorder %s17, 1
    %p270 = por %p268, %p269
    %p271 = scmp.ne.s32.totalorder %s263, %s266
    %p272 = scmp.eq.s32.totalorder %s17, 0
    %p273 = por %p271, %p272
    %p274 = scmp.ne.s32.totalorder %s263, %s266
    %p275 = scmp.eq.s32.totalorder %s22, 1
    %p276 = por %p274, %p275
    %p277 = scmp.ne.s32.totalorder %s266, %s267
    %p278 = scmp.eq.s32.totalorder %s22, 0
    %p279 = por %p277, %p278
    %p280 = scmp.ne.s32.totalorder %s266, %s267
    %p281 = scmp.eq.s32.totalorder %s23, 1
    %p282 = por %p280, %p281
    %p284 = scmp.ne.s32.totalorder %s267, %s283
    %p285 = scmp.eq.s32.totalorder %s23, 0
    %p286 = por %p284, %p285
    %p287 = scmp.le.s32.totalorder 1, %s17
    %p288 = scmp.lt.s32.totalorder %s17, 3
    %p289 = pnand %p287, %p288
    %p290 = pneg %p289
    // Predicated region
    $region9: #{classifier_net3_forward.1} parent=5 // pred_check
      _
    $region10: #{classifier_net3_forward.1} parent=5 // pred_check_branch
      %292 = sbr.rel (%p289) target = $region12
    $region11: #{classifier_net3_forward.1} parent=5 // pred_region
      %s293 = ssub.s32 %s17, 1
      // Predicated region
      $region13: #{classifier_net3_forward.1} parent=11 // pred_check
        %p294 = pneg %p64
      $region14: #{classifier_net3_forward.1} parent=11 // pred_check_branch
        %296 = sbr.rel (%p294) target = $region16
      $region15: #{classifier_net3_forward.1} parent=11 // pred_region
        _
      $region16: #{classifier_net3_forward.1} parent=11 // pred_fallthru
        _
      // Predicated region
      $region17: #{classifier_net3_forward.1} parent=11 // pred_check
        %p297 = pneg %p85
      $region18: #{classifier_net3_forward.1} parent=11 // pred_check_branch
        %299 = sbr.rel (%p297) target = $region20
      $region19: #{classifier_net3_forward.1} parent=11 // pred_region
        _
      $region20: #{classifier_net3_forward.1} parent=11 // pred_fallthru
        _
      // Predicated region
      $region21: #{classifier_net3_forward.1} parent=11 // pred_check
        %p300 = pneg %p106
      $region22: #{classifier_net3_forward.1} parent=11 // pred_check_branch
        %302 = sbr.rel (%p300) target = $region24
      $region23: #{classifier_net3_forward.1} parent=11 // pred_region
        _
      $region24: #{classifier_net3_forward.1} parent=11 // pred_fallthru
        _
      // Predicated region
      $region25: #{classifier_net3_forward.1} parent=11 // pred_check
        %p303 = pneg %p127
      $region26: #{classifier_net3_forward.1} parent=11 // pred_check_branch
        %305 = sbr.rel (%p303) target = $region28
      $region27: #{classifier_net3_forward.1} parent=11 // pred_region
        _
      $region28: #{classifier_net3_forward.1} parent=11 // pred_fallthru
        _
      // Predicated region
      $region29: #{classifier_net3_forward.1} parent=11 // pred_check
        %p306 = pneg %p148
      $region30: #{classifier_net3_forward.1} parent=11 // pred_check_branch
        %308 = sbr.rel (%p306) target = $region32
      $region31: #{classifier_net3_forward.1} parent=11 // pred_region
        _
      $region32: #{classifier_net3_forward.1} parent=11 // pred_fallthru
        _
      // Predicated region
      $region33: #{classifier_net3_forward.1} parent=11 // pred_check
        %p309 = pneg %p169
      $region34: #{classifier_net3_forward.1} parent=11 // pred_check_branch
        %311 = sbr.rel (%p309) target = $region36
      $region35: #{classifier_net3_forward.1} parent=11 // pred_region
        _
      $region36: #{classifier_net3_forward.1} parent=11 // pred_fallthru
        _
      // Predicated region
      $region37: #{classifier_net3_forward.1} parent=11 // pred_check
        %p312 = pneg %p190
      $region38: #{classifier_net3_forward.1} parent=11 // pred_check_branch
        %314 = sbr.rel (%p312) target = $region40
      $region39: #{classifier_net3_forward.1} parent=11 // pred_region
        _
      $region40: #{classifier_net3_forward.1} parent=11 // pred_fallthru
        _
      // Predicated region
      $region41: #{classifier_net3_forward.1} parent=11 // pred_check
        %p315 = pneg %p211
      $region42: #{classifier_net3_forward.1} parent=11 // pred_check_branch
        %317 = sbr.rel (%p315) target = $region44
      $region43: #{classifier_net3_forward.1} parent=11 // pred_region
        _
      $region44: #{classifier_net3_forward.1} parent=11 // pred_fallthru
        _
      // Predicated region
      $region45: #{classifier_net3_forward.1} parent=11 // pred_check
        %p318 = pneg %p232
      $region46: #{classifier_net3_forward.1} parent=11 // pred_check_branch
        %320 = sbr.rel (%p318) target = $region48
      $region47: #{classifier_net3_forward.1} parent=11 // pred_region
        _
      $region48: #{classifier_net3_forward.1} parent=11 // pred_fallthru
        _
      // Predicated region
      $region49: #{classifier_net3_forward.1} parent=11 // pred_check
        %p321 = pneg %p253
      $region50: #{classifier_net3_forward.1} parent=11 // pred_check_branch
        %323 = sbr.rel (%p321) target = $region52
      $region51: #{classifier_net3_forward.1} parent=11 // pred_region
        _
      $region52: #{classifier_net3_forward.1} parent=11 // pred_fallthru
        _
    $region12: #{classifier_net3_forward.1} parent=5 // pred_fallthru
      _
    %p324 = scmp.lt.s32.totalorder %s17, 2
    // Predicated region
    $region53: #{classifier_net3_forward.1} parent=5 // pred_check
      %p325 = pneg %p324
    $region54: #{classifier_net3_forward.1} parent=5 // pred_check_branch
      %327 = sbr.rel (%p325) target = $region56
    $region55: #{classifier_net3_forward.1} parent=5 // pred_region
      // Predicated region
      $region57: #{classifier_net3_forward.1} parent=55 // pred_check
        %p328 = pneg %p37
      $region58: #{classifier_net3_forward.1} parent=55 // pred_check_branch
        %330 = sbr.rel (%p328) target = $region60
      $region59: #{classifier_net3_forward.1} parent=55 // pred_region
        %p331 = scmp.lt.s32.totalorder %s17, 1
        %s332 = scalar_select %p331, %s17, 1
        %s333 = smul.addr %s332, 32
        %s334 = smul.addr %s333, 8
        %s335 = scalar_lea.vmem %s0, %s334
      $region60: #{classifier_net3_forward.1} parent=55 // pred_fallthru
        _
    $region56: #{classifier_net3_forward.1} parent=5 // pred_fallthru
      _
    %p336 = scmp.le.s32.totalorder 1, %s17
    %p337 = scmp.lt.s32.totalorder %s17, 3
    %p338 = pnand %p336, %p337
    %p339 = pneg %p338
    // Predicated region
    $region61: #{classifier_net3_forward.1} parent=5 // pred_check
      _
    $region62: #{classifier_net3_forward.1} parent=5 // pred_check_branch
      %341 = sbr.rel (%p338) target = $region64
    $region63: #{classifier_net3_forward.1} parent=5 // pred_region
      %s342 = ssub.s32 %s17, 1
      %p343 = scmp.lt.s32.totalorder %s22, 1
      %s344 = scalar_select %p343, %s22, 1
      %s345 = smul.addr %s344, 32
      %s346 = smul.addr %s345, 8
      %s347 = scalar_lea.vmem %s0, %s346
      %p348 = pneg %p43
      %p349 = pneg %p40
      %p350 = pneg %p64
      %p351 = pneg %p61
      %p352 = pneg %p85
      %p353 = pneg %p82
      %p354 = pneg %p106
      %p355 = pneg %p103
      %p356 = pneg %p127
      %p357 = pneg %p124
      %p358 = pneg %p148
      %p359 = pneg %p145
      %p360 = pneg %p169
      %p361 = pneg %p166
      %p362 = pneg %p190
      %p363 = pneg %p187
      %p364 = pneg %p211
      %p365 = pneg %p208
      %p366 = pneg %p232
      %p367 = pneg %p229
      %p368 = pneg %p253
      %p369 = pneg %p250
      %p370 = pneg %p279
      %p371 = pneg %p276
      %p372 = scmp.lt.s32.totalorder %s22, 1
      %s373 = scalar_select %p372, %s22, 1
      %s374 = scalar_lea.vmem %s11, %s373
      %p375 = scmp.lt.s32.totalorder %s22, 1
      %s376 = scalar_select %p375, %s22, 1
      %s377 = smul.addr %s376, 32
      %s378 = smul.addr %s377, 8
      %s379 = scalar_lea.vmem %s0, %s378
      %p380 = scmp.lt.s32.totalorder %s22, 1
      %s381 = scalar_select %p380, %s22, 1
      %s382 = scalar_lea.vmem %s11, %s381
      %v383 = vlaneseq
      %v384 = vshrl.u32 %v383, 7
      %v385 = vadd.s32 %v384, 8
      %v386 = vadd.s32 %v384, 16
      %v387 = vadd.s32 %v384, 24
      %v388 = vadd.s32 %v384, 32
      %v389 = vadd.s32 %v384, 40
      %v390 = vadd.s32 %v384, 48
      %v391 = vadd.s32 %v384, 56
      %v392 = vand.u32 %v384, 7
      %v393 = vand.u32 %v385, 7
      %v394 = vand.u32 %v386, 7
      %v395 = vand.u32 %v387, 7
      %v396 = vand.u32 %v388, 7
      %v397 = vand.u32 %v389, 7
      %v398 = vand.u32 %v390, 7
      %v399 = vand.u32 %v391, 7
      %vm400 = vcmp.ne.s32.totalorder %v392, 0
      %vm401 = vcmp.ne.s32.totalorder %v393, 0
      %vm402 = vcmp.ne.s32.totalorder %v394, 0
      %vm403 = vcmp.ne.s32.totalorder %v395, 0
      %vm404 = vcmp.ne.s32.totalorder %v396, 0
      %vm405 = vcmp.ne.s32.totalorder %v397, 0
      %vm406 = vcmp.ne.s32.totalorder %v398, 0
      %vm407 = vcmp.ne.s32.totalorder %v399, 0
      %vm408 = vcmp.ge.s32.totalorder %v384, 8
      %vm409 = vcmp.ge.s32.totalorder %v385, 8
      %vm410 = vcmp.ge.s32.totalorder %v386, 8
      %vm411 = vcmp.ge.s32.totalorder %v387, 8
      %vm412 = vcmp.ge.s32.totalorder %v388, 8
      %vm413 = vcmp.ge.s32.totalorder %v389, 8
      %vm414 = vcmp.ge.s32.totalorder %v390, 8
      %vm415 = vcmp.ge.s32.totalorder %v391, 8
      %v416 = vld [vmem:[%s2] sm:$0xff]
      %v417 = vld [vmem:[%s2 + $0x8] sm:$0xff]
      %v418 = vld [vmem:[%s2 + $0x10] sm:$0xff]
      %v419 = vld [vmem:[%s2 + $0x18] sm:$0xff]
      %v420 = vld [vmem:[%s2 + $0x20] sm:$0xf]
      %v421 = vld [vmem:[%s3] sm:$0x1]
      %v422 = vld [vmem:[%s5] sm:$0x1]
      %v423 = vld [vmem:[%s1] sm:$0xff]
      %v424 = vld [vmem:[%s1 + $0x8] sm:$0xff]
      %vm425 = vcmask 523264
      %426 = vst.msk [vmem:[#allocation6 + $0x40] sm:$0xff] %vm425, 0.0
      %v427 = vld [vmem:[%s379] sm:$0xff]
      %v428 = vld [vmem:[%s379 + $0x8] sm:$0xff]
      %v429 = vld [vmem:[%s379 + $0x10] sm:$0xff]
      %v430 = vld [vmem:[%s379 + $0x18] sm:$0xff]
      %v431 = vld [vmem:[%s379 + $0x20] sm:$0xff]
      %v432 = vld [vmem:[%s379 + $0x28] sm:$0xff]
      %v433 = vld [vmem:[%s379 + $0x30] sm:$0xff]
      %v434 = vld [vmem:[%s379 + $0x38] sm:$0xff]
      %v436 = vlaneseq
      %v437 = vshrl.u32 %v436, 7
      %v438 = vsub.s32 0, %v437
      %v439 = vrot.slane %v421, %v438
      %vm441 = vcmask 293888
      %v443 = vsel %vm441, %v427, 0
      %v446 = vsel %vm441, %v428, 0
      %v449 = vsel %vm441, %v429, 0
      %v452 = vsel %vm441, %v430, 0
      %v455 = vsel %vm441, %v431, 0
      %v458 = vsel %vm441, %v432, 0
      %v461 = vsel %vm441, %v433, 0
      %v464 = vsel %vm441, %v434, 0
      %vm466 = vcmask 1043456
      %v468 = vsel %vm466, %v420, 0
      %470 = vmatprep.subr.mxu0 0.0
      %471 = vmatpush1.msra.mxu0 %v416
      %472 = vmatprep.subr.mxu0 0.0
      %473 = vmatpush1.msra.mxu0 %v417
      %474 = vmatprep.subr.mxu0 0.0
      %475 = vmatpush1.msra.mxu0 %v418
      %476 = vmatprep.subr.mxu0 0.0
      %477 = vmatpush1.msra.mxu0 %v419
      %478 = vmatprep.subr.mxu0 0.0
      %479 = vmatpush1.msra.mxu0 %v468
      %480 = vmatprep.subr.mxu0 0.0
      %481 = vmatpush1.msra.mxu0 0.0
      %482 = vmatprep.subr.mxu0 0.0
      %483 = vmatpush1.msra.mxu0 0.0
      %484 = vmatprep.subr.mxu0 0.0
      %485 = vmatpush1.msra.mxu0 0.0
      %486 = vmatprep.subr.mxu0 0.0
      %487 = vmatpush1.msra.mxu0 0.0
      %488 = vmatprep.subr.mxu0 0.0
      %489 = vmatpush1.msra.mxu0 0.0
      %490 = vmatprep.subr.mxu0 0.0
      %491 = vmatpush1.msra.mxu0 0.0
      %492 = vmatprep.subr.mxu0 0.0
      %493 = vmatpush1.msra.mxu0 0.0
      %494 = vmatprep.subr.mxu0 0.0
      %495 = vmatpush1.msra.mxu0 0.0
      %496 = vmatprep.subr.mxu0 0.0
      %497 = vmatpush1.msra.mxu0 0.0
      %498 = vmatprep.subr.mxu0 0.0
      %499 = vmatpush1.msra.mxu0 0.0
      %500 = vmatprep.subr.mxu0 0.0
      %501 = vmatpush1.msra.mxu0 0.0
      %502 = vmatprep.subr.mxu0 0.0
      %503 = vmatpush1.msra.mxu0 0.0
      %504 = vmatprep.subr.mxu0 0.0
      %505 = vmatpush1.msra.mxu0 0.0
      %506 = vmatprep.subr.mxu0 0.0
      %507 = vmatpush1.msra.mxu0 0.0
      %508 = vmatprep.subr.mxu0 0.0
      %509 = vmatpush1.msra.mxu0 0.0
      %510 = vmatprep.subr.mxu0 0.0
      %511 = vmatpush1.msra.mxu0 0.0
      %512 = vmatprep.subr.mxu0 0.0
      %513 = vmatpush1.msra.mxu0 0.0
      %514 = vmatprep.subr.mxu0 0.0
      %515 = vmatpush1.msra.mxu0 0.0
      %516 = vmatprep.subr.mxu0 0.0
      %517 = vmatpush1.msra.mxu0 0.0
      %518 = vmatprep.subr.mxu0 0.0
      %519 = vmatpush1.msra.mxu0 0.0
      %520 = vmatprep.subr.mxu0 0.0
      %521 = vmatpush1.msra.mxu0 0.0
      %522 = vmatprep.subr.mxu0 0.0
      %523 = vmatpush1.msra.mxu0 0.0
      %524 = vmatprep.subr.mxu0 0.0
      %525 = vmatpush1.msra.mxu0 0.0
      %526 = vmatprep.subr.mxu0 0.0
      %527 = vmatpush1.msra.mxu0 0.0
      %528 = vmatprep.subr.mxu0 0.0
      %529 = vmatpush1.msra.mxu0 0.0
      %530 = vmatprep.subr.mxu0 0.0
      %531 = vmatpush1.msra.mxu0 0.0
      %532 = vmatprep.subr.mxu0 0.0
      %533 = vmatpush1.msra.mxu0 0.0
      %534 = vmatprep.mubr.f32.mxu0 0.0
      %535 = vmatmul.mubr.f32.gmra.mrb[0].mxu0 %v443
      %v536 = vpop.f32.mrb[0].mxu0
      %v537 = vadd.f32 %v439, %v536
      %v538 = vpop.f32.mrb[0].mxu0
      %539 = vmatprep.mubr.f32.mxu0 0.0
      %540 = vmatmul.mubr.f32.gmra.mrb[0].mxu0 %v446
      %v541 = vpop.f32.mrb[0].mxu0
      %v542 = vadd.f32 %v439, %v541
      %v543 = vpop.f32.mrb[0].mxu0
      %544 = vmatprep.mubr.f32.mxu0 0.0
      %545 = vmatmul.mubr.f32.gmra.mrb[0].mxu0 %v449
      %v546 = vpop.f32.mrb[0].mxu0
      %v547 = vadd.f32 %v439, %v546
      %v548 = vpop.f32.mrb[0].mxu0
      %549 = vmatprep.mubr.f32.mxu0 0.0
      %550 = vmatmul.mubr.f32.gmra.mrb[0].mxu0 %v452
      %v551 = vpop.f32.mrb[0].mxu0
      %v552 = vadd.f32 %v439, %v551
      %v553 = vpop.f32.mrb[0].mxu0
      %554 = vmatprep.mubr.f32.mxu0 0.0
      %555 = vmatmul.mubr.f32.gmra.mrb[0].mxu0 %v455
      %v556 = vpop.f32.mrb[0].mxu0
      %v557 = vadd.f32 %v439, %v556
      %v558 = vpop.f32.mrb[0].mxu0
      %559 = vmatprep.mubr.f32.mxu0 0.0
      %560 = vmatmul.mubr.f32.gmra.mrb[0].mxu0 %v458
      %v561 = vpop.f32.mrb[0].mxu0
      %v562 = vadd.f32 %v439, %v561
      %v563 = vpop.f32.mrb[0].mxu0
      %564 = vmatprep.mubr.f32.mxu0 0.0
      %565 = vmatmul.mubr.f32.gmra.mrb[0].mxu0 %v461
      %v566 = vpop.f32.mrb[0].mxu0
      %v567 = vadd.f32 %v439, %v566
      %v568 = vpop.f32.mrb[0].mxu0
      %569 = vmatprep.mubr.f32.mxu0 0.0
      %570 = vmatmul.mubr.f32.gmra.mrb[0].mxu0 %v464
      %v571 = vpop.f32.mrb[0].mxu0
      %v572 = vadd.f32 %v439, %v571
      %v573 = vpop.f32.mrb[0].mxu0
      %574 = vdwg.mxu0
      %vm575 = vcmp.gt.f32.partialorder %v537, 0.0
      %vm576 = vcmp.gt.f32.partialorder %v542, 0.0
      %vm577 = vcmp.gt.f32.partialorder %v547, 0.0
      %vm578 = vcmp.gt.f32.partialorder %v552, 0.0
      %vm579 = vcmp.gt.f32.partialorder %v557, 0.0
      %vm580 = vcmp.gt.f32.partialorder %v562, 0.0
      %vm581 = vcmp.gt.f32.partialorder %v567, 0.0
      %vm582 = vcmp.gt.f32.partialorder %v572, 0.0
      %v583 = vmin.f32 %v537, 0.0
      %v584 = vmin.f32 %v542, 0.0
      %v585 = vmin.f32 %v547, 0.0
      %v586 = vmin.f32 %v552, 0.0
      %v587 = vmin.f32 %v557, 0.0
      %v588 = vmin.f32 %v562, 0.0
      %v589 = vmin.f32 %v567, 0.0
      %v590 = vmin.f32 %v572, 0.0
      %v591 = vmul.f32 %v583, 1.442695
      %v592 = vpow.pop %v591
      %v593 = vmul.f32 %v584, 1.442695
      %v594 = vpow.pop %v593
      %v595 = vmul.f32 %v585, 1.442695
      %v596 = vpow.pop %v595
      %v597 = vmul.f32 %v586, 1.442695
      %v598 = vpow.pop %v597
      %v599 = vmul.f32 %v587, 1.442695
      %v600 = vpow.pop %v599
      %v601 = vmul.f32 %v588, 1.442695
      %v602 = vpow.pop %v601
      %v603 = vmul.f32 %v589, 1.442695
      %v604 = vpow.pop %v603
      %v605 = vmul.f32 %v590, 1.442695
      %v606 = vpow.pop %v605
      %v607 = vsub.f32 %v592, 1.0
      %v608 = vsub.f32 %v594, 1.0
      %v609 = vsub.f32 %v596, 1.0
      %v610 = vsub.f32 %v598, 1.0
      %v611 = vsub.f32 %v600, 1.0
      %v612 = vsub.f32 %v602, 1.0
      %v613 = vsub.f32 %v604, 1.0
      %v614 = vsub.f32 %v606, 1.0
      %v615 = vsel %vm575, %v537, %v607
      %v616 = vsel %vm576, %v542, %v608
      %v617 = vsel %vm577, %v547, %v609
      %v618 = vsel %vm578, %v552, %v610
      %v619 = vsel %vm579, %v557, %v611
      %v620 = vsel %vm580, %v562, %v612
      %v621 = vsel %vm581, %v567, %v613
      %v622 = vsel %vm582, %v572, %v614
      %623 = vst [vmem:[#allocation2 + $0x10] sm:$0xff] %v615
      %624 = vst [vmem:[#allocation2 + $0x18] sm:$0xff] %v616
      %625 = vst [vmem:[#allocation2 + $0x20] sm:$0xff] %v617
      %626 = vst [vmem:[#allocation2 + $0x28] sm:$0xff] %v618
      %627 = vst [vmem:[#allocation2 + $0x30] sm:$0xff] %v619
      %628 = vst [vmem:[#allocation2 + $0x38] sm:$0xff] %v620
      %629 = vst [vmem:[#allocation2 + $0x40] sm:$0xff] %v621
      %630 = vst [vmem:[#allocation2 + $0x48] sm:$0xff] %v622
      %s631 = scalar_lea.vmem %s379, 64
      %v632 = vld [vmem:[%s631] sm:$0xff]
      %v633 = vld [vmem:[%s631 + $0x8] sm:$0xff]
      %v634 = vld [vmem:[%s631 + $0x10] sm:$0xff]
      %v635 = vld [vmem:[%s631 + $0x18] sm:$0xff]
      %v636 = vld [vmem:[%s631 + $0x20] sm:$0xff]
      %v637 = vld [vmem:[%s631 + $0x28] sm:$0xff]
      %v638 = vld [vmem:[%s631 + $0x30] sm:$0xff]
      %v639 = vld [vmem:[%s631 + $0x38] sm:$0xff]
      %v641 = vsel %vm441, %v632, 0
      %v644 = vsel %vm441, %v633, 0
      %v647 = vsel %vm441, %v634, 0
      %v650 = vsel %vm441, %v635, 0
      %v653 = vsel %vm441, %v636, 0
      %v656 = vsel %vm441, %v637, 0
      %v659 = vsel %vm441, %v638, 0
      %v662 = vsel %vm441, %v639, 0
      %664 = vmatprep.subr.mxu0 0.0
      %665 = vmatpush1.msra.mxu0 %v416
      %666 = vmatprep.subr.mxu0 0.0
      %667 = vmatpush1.msra.mxu0 %v417
      %668 = vmatprep.subr.mxu0 0.0
      %669 = vmatpush1.msra.mxu0 %v418
      %670 = vmatprep.subr.mxu0 0.0
      %671 = vmatpush1.msra.mxu0 %v419
      %672 = vmatprep.subr.mxu0 0.0
      %673 = vmatpush1.msra.mxu0 %v468
      %674 = vmatprep.subr.mxu0 0.0
      %675 = vmatpush1.msra.mxu0 0.0
      %676 = vmatprep.subr.mxu0 0.0
      %677 = vmatpush1.msra.mxu0 0.0
      %678 = vmatprep.subr.mxu0 0.0
      %679 = vmatpush1.msra.mxu0 0.0
      %680 = vmatprep.subr.mxu0 0.0
      %681 = vmatpush1.msra.mxu0 0.0
      %682 = vmatprep.subr.mxu0 0.0
      %683 = vmatpush1.msra.mxu0 0.0
      %684 = vmatprep.subr.mxu0 0.0
      %685 = vmatpush1.msra.mxu0 0.0
      %686 = vmatprep.subr.mxu0 0.0
      %687 = vmatpush1.msra.mxu0 0.0
      %688 = vmatprep.subr.mxu0 0.0
      %689 = vmatpush1.msra.mxu0 0.0
      %690 = vmatprep.subr.mxu0 0.0
      %691 = vmatpush1.msra.mxu0 0.0
      %692 = vmatprep.subr.mxu0 0.0
      %693 = vmatpush1.msra.mxu0 0.0
      %694 = vmatprep.subr.mxu0 0.0
      %695 = vmatpush1.msra.mxu0 0.0
      %696 = vmatprep.subr.mxu0 0.0
      %697 = vmatpush1.msra.mxu0 0.0
      %698 = vmatprep.subr.mxu0 0.0
      %699 = vmatpush1.msra.mxu0 0.0
      %700 = vmatprep.subr.mxu0 0.0
      %701 = vmatpush1.msra.mxu0 0.0
      %702 = vmatprep.subr.mxu0 0.0
      %703 = vmatpush1.msra.mxu0 0.0
      %704 = vmatprep.subr.mxu0 0.0
      %705 = vmatpush1.msra.mxu0 0.0
      %706 = vmatprep.subr.mxu0 0.0
      %707 = vmatpush1.msra.mxu0 0.0
      %708 = vmatprep.subr.mxu0 0.0
      %709 = vmatpush1.msra.mxu0 0.0
      %710 = vmatprep.subr.mxu0 0.0
      %711 = vmatpush1.msra.mxu0 0.0
      %712 = vmatprep.subr.mxu0 0.0
      %713 = vmatpush1.msra.mxu0 0.0
      %714 = vmatprep.subr.mxu0 0.0
      %715 = vmatpush1.msra.mxu0 0.0
      %716 = vmatprep.subr.mxu0 0.0
      %717 = vmatpush1.msra.mxu0 0.0
      %718 = vmatprep.subr.mxu0 0.0
      %719 = vmatpush1.msra.mxu0 0.0
      %720 = vmatprep.subr.mxu0 0.0
      %721 = vmatpush1.msra.mxu0 0.0
      %722 = vmatprep.subr.mxu0 0.0
      %723 = vmatpush1.msra.mxu0 0.0
      %724 = vmatprep.subr.mxu0 0.0
      %725 = vmatpush1.msra.mxu0 0.0
      %726 = vmatprep.subr.mxu0 0.0
      %727 = vmatpush1.msra.mxu0 0.0
      %728 = vmatprep.mubr.f32.mxu0 0.0
      %729 = vmatmul.mubr.f32.gmra.mrb[0].mxu0 %v641
      %v730 = vpop.f32.mrb[0].mxu0
      %v731 = vadd.f32 %v439, %v730
      %v732 = vpop.f32.mrb[0].mxu0
      %733 = vmatprep.mubr.f32.mxu0 0.0
      %734 = vmatmul.mubr.f32.gmra.mrb[0].mxu0 %v644
      %v735 = vpop.f32.mrb[0].mxu0
      %v736 = vadd.f32 %v439, %v735
      %v737 = vpop.f32.mrb[0].mxu0
      %738 = vmatprep.mubr.f32.mxu0 0.0
      %739 = vmatmul.mubr.f32.gmra.mrb[0].mxu0 %v647
      %v740 = vpop.f32.mrb[0].mxu0
      %v741 = vadd.f32 %v439, %v740
      %v742 = vpop.f32.mrb[0].mxu0
      %743 = vmatprep.mubr.f32.mxu0 0.0
      %744 = vmatmul.mubr.f32.gmra.mrb[0].mxu0 %v650
      %v745 = vpop.f32.mrb[0].mxu0
      %v746 = vadd.f32 %v439, %v745
      %v747 = vpop.f32.mrb[0].mxu0
      %748 = vmatprep.mubr.f32.mxu0 0.0
      %749 = vmatmul.mubr.f32.gmra.mrb[0].mxu0 %v653
      %v750 = vpop.f32.mrb[0].mxu0
      %v751 = vadd.f32 %v439, %v750
      %v752 = vpop.f32.mrb[0].mxu0
      %753 = vmatprep.mubr.f32.mxu0 0.0
      %754 = vmatmul.mubr.f32.gmra.mrb[0].mxu0 %v656
      %v755 = vpop.f32.mrb[0].mxu0
      %v756 = vadd.f32 %v439, %v755
      %v757 = vpop.f32.mrb[0].mxu0
      %758 = vmatprep.mubr.f32.mxu0 0.0
      %759 = vmatmul.mubr.f32.gmra.mrb[0].mxu0 %v659
      %v760 = vpop.f32.mrb[0].mxu0
      %v761 = vadd.f32 %v439, %v760
      %v762 = vpop.f32.mrb[0].mxu0
      %763 = vmatprep.mubr.f32.mxu0 0.0
      %764 = vmatmul.mubr.f32.gmra.mrb[0].mxu0 %v662
      %v765 = vpop.f32.mrb[0].mxu0
      %v766 = vadd.f32 %v439, %v765
      %v767 = vpop.f32.mrb[0].mxu0
      %768 = vdwg.mxu0
      %vm769 = vcmp.gt.f32.partialorder %v731, 0.0
      %vm770 = vcmp.gt.f32.partialorder %v736, 0.0
      %vm771 = vcmp.gt.f32.partialorder %v741, 0.0
      %vm772 = vcmp.gt.f32.partialorder %v746, 0.0
      %vm773 = vcmp.gt.f32.partialorder %v751, 0.0
      %vm774 = vcmp.gt.f32.partialorder %v756, 0.0
      %vm775 = vcmp.gt.f32.partialorder %v761, 0.0
      %vm776 = vcmp.gt.f32.partialorder %v766, 0.0
      %v777 = vmin.f32 %v731, 0.0
      %v778 = vmin.f32 %v736, 0.0
      %v779 = vmin.f32 %v741, 0.0
      %v780 = vmin.f32 %v746, 0.0
      %v781 = vmin.f32 %v751, 0.0
      %v782 = vmin.f32 %v756, 0.0
      %v783 = vmin.f32 %v761, 0.0
      %v784 = vmin.f32 %v766, 0.0
      %v785 = vmul.f32 %v777, 1.442695
      %v786 = vpow.pop %v785
      %v787 = vmul.f32 %v778, 1.442695
      %v788 = vpow.pop %v787
      %v789 = vmul.f32 %v779, 1.442695
      %v790 = vpow.pop %v789
      %v791 = vmul.f32 %v780, 1.442695
      %v792 = vpow.pop %v791
      %v793 = vmul.f32 %v781, 1.442695
      %v794 = vpow.pop %v793
      %v795 = vmul.f32 %v782, 1.442695
      %v796 = vpow.pop %v795
      %v797 = vmul.f32 %v783, 1.442695
      %v798 = vpow.pop %v797
      %v799 = vmul.f32 %v784, 1.442695
      %v800 = vpow.pop %v799
      %v801 = vsub.f32 %v786, 1.0
      %v802 = vsub.f32 %v788, 1.0
      %v803 = vsub.f32 %v790, 1.0
      %v804 = vsub.f32 %v792, 1.0
      %v805 = vsub.f32 %v794, 1.0
      %v806 = vsub.f32 %v796, 1.0
      %v807 = vsub.f32 %v798, 1.0
      %v808 = vsub.f32 %v800, 1.0
      %v809 = vsel %vm769, %v731, %v801
      %v810 = vsel %vm770, %v736, %v802
      %v811 = vsel %vm771, %v741, %v803
      %v812 = vsel %vm772, %v746, %v804
      %v813 = vsel %vm773, %v751, %v805
      %v814 = vsel %vm774, %v756, %v806
      %v815 = vsel %vm775, %v761, %v807
      %v816 = vsel %vm776, %v766, %v808
      %817 = vst [vmem:[#allocation3 + $0x10] sm:$0xff] %v809
      %818 = vst [vmem:[#allocation3 + $0x18] sm:$0xff] %v810
      %819 = vst [vmem:[#allocation3 + $0x20] sm:$0xff] %v811
      %820 = vst [vmem:[#allocation3 + $0x28] sm:$0xff] %v812
      %821 = vst [vmem:[#allocation3 + $0x30] sm:$0xff] %v813
      %822 = vst [vmem:[#allocation3 + $0x38] sm:$0xff] %v814
      %823 = vst [vmem:[#allocation3 + $0x40] sm:$0xff] %v815
      %824 = vst [vmem:[#allocation3 + $0x48] sm:$0xff] %v816
      %s825 = scalar_lea.vmem %s379, 128
      %v826 = vld [vmem:[%s825] sm:$0xff]
      %v827 = vld [vmem:[%s825 + $0x8] sm:$0xff]
      %v828 = vld [vmem:[%s825 + $0x10] sm:$0xff]
      %v829 = vld [vmem:[%s825 + $0x18] sm:$0xff]
      %v830 = vld [vmem:[%s825 + $0x20] sm:$0xff]
      %v831 = vld [vmem:[%s825 + $0x28] sm:$0xff]
      %v832 = vld [vmem:[%s825 + $0x30] sm:$0xff]
      %v833 = vld [vmem:[%s825 + $0x38] sm:$0xff]
      %v835 = vsel %vm441, %v826, 0
      %v838 = vsel %vm441, %v827, 0
      %v841 = vsel %vm441, %v828, 0
      %v844 = vsel %vm441, %v829, 0
      %v847 = vsel %vm441, %v830, 0
      %v850 = vsel %vm441, %v831, 0
      %v853 = vsel %vm441, %v832, 0
      %v856 = vsel %vm441, %v833, 0
      %858 = vmatprep.subr.mxu0 0.0
      %859 = vmatpush1.msra.mxu0 %v416
      %860 = vmatprep.subr.mxu0 0.0
      %861 = vmatpush1.msra.mxu0 %v417
      %862 = vmatprep.subr.mxu0 0.0
      %863 = vmatpush1.msra.mxu0 %v418
      %864 = vmatprep.subr.mxu0 0.0
      %865 = vmatpush1.msra.mxu0 %v419
      %866 = vmatprep.subr.mxu0 0.0
      %867 = vmatpush1.msra.mxu0 %v468
      %868 = vmatprep.subr.mxu0 0.0
      %869 = vmatpush1.msra.mxu0 0.0
      %870 = vmatprep.subr.mxu0 0.0
      %871 = vmatpush1.msra.mxu0 0.0
      %872 = vmatprep.subr.mxu0 0.0
      %873 = vmatpush1.msra.mxu0 0.0
      %874 = vmatprep.subr.mxu0 0.0
      %875 = vmatpush1.msra.mxu0 0.0
      %876 = vmatprep.subr.mxu0 0.0
      %877 = vmatpush1.msra.mxu0 0.0
      %878 = vmatprep.subr.mxu0 0.0
      %879 = vmatpush1.msra.mxu0 0.0
      %880 = vmatprep.subr.mxu0 0.0
      %881 = vmatpush1.msra.mxu0 0.0
      %882 = vmatprep.subr.mxu0 0.0
      %883 = vmatpush1.msra.mxu0 0.0
      %884 = vmatprep.subr.mxu0 0.0
      %885 = vmatpush1.msra.mxu0 0.0
      %886 = vmatprep.subr.mxu0 0.0
      %887 = vmatpush1.msra.mxu0 0.0
      %888 = vmatprep.subr.mxu0 0.0
      %889 = vmatpush1.msra.mxu0 0.0
      %890 = vmatprep.subr.mxu0 0.0
      %891 = vmatpush1.msra.mxu0 0.0
      %892 = vmatprep.subr.mxu0 0.0
      %893 = vmatpush1.msra.mxu0 0.0
      %894 = vmatprep.subr.mxu0 0.0
      %895 = vmatpush1.msra.mxu0 0.0
      %896 = vmatprep.subr.mxu0 0.0
      %897 = vmatpush1.msra.mxu0 0.0
      %898 = vmatprep.subr.mxu0 0.0
      %899 = vmatpush1.msra.mxu0 0.0
      %900 = vmatprep.subr.mxu0 0.0
      %901 = vmatpush1.msra.mxu0 0.0
      %902 = vmatprep.subr.mxu0 0.0
      %903 = vmatpush1.msra.mxu0 0.0
      %904 = vmatprep.subr.mxu0 0.0
      %905 = vmatpush1.msra.mxu0 0.0
      %906 = vmatprep.subr.mxu0 0.0
      %907 = vmatpush1.msra.mxu0 0.0
      %908 = vmatprep.subr.mxu0 0.0
      %909 = vmatpush1.msra.mxu0 0.0
      %910 = vmatprep.subr.mxu0 0.0
      %911 = vmatpush1.msra.mxu0 0.0
      %912 = vmatprep.subr.mxu0 0.0
      %913 = vmatpush1.msra.mxu0 0.0
      %914 = vmatprep.subr.mxu0 0.0
      %915 = vmatpush1.msra.mxu0 0.0
      %916 = vmatprep.subr.mxu0 0.0
      %917 = vmatpush1.msra.mxu0 0.0
      %918 = vmatprep.subr.mxu0 0.0
      %919 = vmatpush1.msra.mxu0 0.0
      %920 = vmatprep.subr.mxu0 0.0
      %921 = vmatpush1.msra.mxu0 0.0
      %922 = vmatprep.mubr.f32.mxu0 0.0
      %923 = vmatmul.mubr.f32.gmra.mrb[0].mxu0 %v835
      %v924 = vpop.f32.mrb[0].mxu0
      %v925 = vadd.f32 %v439, %v924
      %v926 = vpop.f32.mrb[0].mxu0
      %927 = vmatprep.mubr.f32.mxu0 0.0
      %928 = vmatmul.mubr.f32.gmra.mrb[0].mxu0 %v838
      %v929 = vpop.f32.mrb[0].mxu0
      %v930 = vadd.f32 %v439, %v929
      %v931 = vpop.f32.mrb[0].mxu0
      %932 = vmatprep.mubr.f32.mxu0 0.0
      %933 = vmatmul.mubr.f32.gmra.mrb[0].mxu0 %v841
      %v934 = vpop.f32.mrb[0].mxu0
      %v935 = vadd.f32 %v439, %v934
      %v936 = vpop.f32.mrb[0].mxu0
      %937 = vmatprep.mubr.f32.mxu0 0.0
      %938 = vmatmul.mubr.f32.gmra.mrb[0].mxu0 %v844
      %v939 = vpop.f32.mrb[0].mxu0
      %v940 = vadd.f32 %v439, %v939
      %v941 = vpop.f32.mrb[0].mxu0
      %942 = vmatprep.mubr.f32.mxu0 0.0
      %943 = vmatmul.mubr.f32.gmra.mrb[0].mxu0 %v847
      %v944 = vpop.f32.mrb[0].mxu0
      %v945 = vadd.f32 %v439, %v944
      %v946 = vpop.f32.mrb[0].mxu0
      %947 = vmatprep.mubr.f32.mxu0 0.0
      %948 = vmatmul.mubr.f32.gmra.mrb[0].mxu0 %v850
      %v949 = vpop.f32.mrb[0].mxu0
      %v950 = vadd.f32 %v439, %v949
      %v951 = vpop.f32.mrb[0].mxu0
      %952 = vmatprep.mubr.f32.mxu0 0.0
      %953 = vmatmul.mubr.f32.gmra.mrb[0].mxu0 %v853
      %v954 = vpop.f32.mrb[0].mxu0
      %v955 = vadd.f32 %v439, %v954
      %v956 = vpop.f32.mrb[0].mxu0
      %957 = vmatprep.mubr.f32.mxu0 0.0
      %958 = vmatmul.mubr.f32.gmra.mrb[0].mxu0 %v856
      %v959 = vpop.f32.mrb[0].mxu0
      %v960 = vadd.f32 %v439, %v959
      %v961 = vpop.f32.mrb[0].mxu0
      %962 = vdwg.mxu0
      %vm963 = vcmp.gt.f32.partialorder %v925, 0.0
      %vm964 = vcmp.gt.f32.partialorder %v930, 0.0
      %vm965 = vcmp.gt.f32.partialorder %v935, 0.0
      %vm966 = vcmp.gt.f32.partialorder %v940, 0.0
      %vm967 = vcmp.gt.f32.partialorder %v945, 0.0
      %vm968 = vcmp.gt.f32.partialorder %v950, 0.0
      %vm969 = vcmp.gt.f32.partialorder %v955, 0.0
      %vm970 = vcmp.gt.f32.partialorder %v960, 0.0
      %v971 = vmin.f32 %v925, 0.0
      %v972 = vmin.f32 %v930, 0.0
      %v973 = vmin.f32 %v935, 0.0
      %v974 = vmin.f32 %v940, 0.0
      %v975 = vmin.f32 %v945, 0.0
      %v976 = vmin.f32 %v950, 0.0
      %v977 = vmin.f32 %v955, 0.0
      %v978 = vmin.f32 %v960, 0.0
      %v979 = vmul.f32 %v971, 1.442695
      %v980 = vpow.pop %v979
      %v981 = vmul.f32 %v972, 1.442695
      %v982 = vpow.pop %v981
      %v983 = vmul.f32 %v973, 1.442695
      %v984 = vpow.pop %v983
      %v985 = vmul.f32 %v974, 1.442695
      %v986 = vpow.pop %v985
      %v987 = vmul.f32 %v975, 1.442695
      %v988 = vpow.pop %v987
      %v989 = vmul.f32 %v976, 1.442695
      %v990 = vpow.pop %v989
      %v991 = vmul.f32 %v977, 1.442695
      %v992 = vpow.pop %v991
      %v993 = vmul.f32 %v978, 1.442695
      %v994 = vpow.pop %v993
      %v995 = vsub.f32 %v980, 1.0
      %v996 = vsub.f32 %v982, 1.0
      %v997 = vsub.f32 %v984, 1.0
      %v998 = vsub.f32 %v986, 1.0
      %v999 = vsub.f32 %v988, 1.0
      %v1000 = vsub.f32 %v990, 1.0
      %v1001 = vsub.f32 %v992, 1.0
      %v1002 = vsub.f32 %v994, 1.0
      %v1003 = vsel %vm963, %v925, %v995
      %v1004 = vsel %vm964, %v930, %v996
      %v1005 = vsel %vm965, %v935, %v997
      %v1006 = vsel %vm966, %v940, %v998
      %v1007 = vsel %vm967, %v945, %v999
      %v1008 = vsel %vm968, %v950, %v1000
      %v1009 = vsel %vm969, %v955, %v1001
      %v1010 = vsel %vm970, %v960, %v1002
      %1011 = vst [vmem:[#allocation4 + $0x10] sm:$0xff] %v1003
      %1012 = vst [vmem:[#allocation4 + $0x18] sm:$0xff] %v1004
      %1013 = vst [vmem:[#allocation4 + $0x20] sm:$0xff] %v1005
      %1014 = vst [vmem:[#allocation4 + $0x28] sm:$0xff] %v1006
      %1015 = vst [vmem:[#allocation4 + $0x30] sm:$0xff] %v1007
      %1016 = vst [vmem:[#allocation4 + $0x38] sm:$0xff] %v1008
      %1017 = vst [vmem:[#allocation4 + $0x40] sm:$0xff] %v1009
      %1018 = vst [vmem:[#allocation4 + $0x48] sm:$0xff] %v1010
      %s1019 = scalar_lea.vmem %s379, 192
      %v1020 = vld [vmem:[%s1019] sm:$0xff]
      %v1021 = vld [vmem:[%s1019 + $0x8] sm:$0xff]
      %v1022 = vld [vmem:[%s1019 + $0x10] sm:$0xff]
      %v1023 = vld [vmem:[%s1019 + $0x18] sm:$0xff]
      %v1024 = vld [vmem:[%s1019 + $0x20] sm:$0xff]
      %v1025 = vld [vmem:[%s1019 + $0x28] sm:$0xff]
      %v1026 = vld [vmem:[%s1019 + $0x30] sm:$0xff]
      %v1027 = vld [vmem:[%s1019 + $0x38] sm:$0xff]
      %v1029 = vsel %vm441, %v1020, 0
      %v1032 = vsel %vm441, %v1021, 0
      %v1035 = vsel %vm441, %v1022, 0
      %v1038 = vsel %vm441, %v1023, 0
      %v1041 = vsel %vm441, %v1024, 0
      %v1044 = vsel %vm441, %v1025, 0
      %v1047 = vsel %vm441, %v1026, 0
      %v1050 = vsel %vm441, %v1027, 0
      %1052 = vmatprep.subr.mxu0 0.0
      %1053 = vmatpush1.msra.mxu0 %v416
      %1054 = vmatprep.subr.mxu0 0.0
      %1055 = vmatpush1.msra.mxu0 %v417
      %1056 = vmatprep.subr.mxu0 0.0
      %1057 = vmatpush1.msra.mxu0 %v418
      %1058 = vmatprep.subr.mxu0 0.0
      %1059 = vmatpush1.msra.mxu0 %v419
      %1060 = vmatprep.subr.mxu0 0.0
      %1061 = vmatpush1.msra.mxu0 %v468
      %1062 = vmatprep.subr.mxu0 0.0
      %1063 = vmatpush1.msra.mxu0 0.0
      %1064 = vmatprep.subr.mxu0 0.0
      %1065 = vmatpush1.msra.mxu0 0.0
      %1066 = vmatprep.subr.mxu0 0.0
      %1067 = vmatpush1.msra.mxu0 0.0
      %1068 = vmatprep.subr.mxu0 0.0
      %1069 = vmatpush1.msra.mxu0 0.0
      %1070 = vmatprep.subr.mxu0 0.0
      %1071 = vmatpush1.msra.mxu0 0.0
      %1072 = vmatprep.subr.mxu0 0.0
      %1073 = vmatpush1.msra.mxu0 0.0
      %1074 = vmatprep.subr.mxu0 0.0
      %1075 = vmatpush1.msra.mxu0 0.0
      %1076 = vmatprep.subr.mxu0 0.0
      %1077 = vmatpush1.msra.mxu0 0.0
      %1078 = vmatprep.subr.mxu0 0.0
      %1079 = vmatpush1.msra.mxu0 0.0
      %1080 = vmatprep.subr.mxu0 0.0
      %1081 = vmatpush1.msra.mxu0 0.0
      %1082 = vmatprep.subr.mxu0 0.0
      %1083 = vmatpush1.msra.mxu0 0.0
      %1084 = vmatprep.subr.mxu0 0.0
      %1085 = vmatpush1.msra.mxu0 0.0
      %1086 = vmatprep.subr.mxu0 0.0
      %1087 = vmatpush1.msra.mxu0 0.0
      %1088 = vmatprep.subr.mxu0 0.0
      %1089 = vmatpush1.msra.mxu0 0.0
      %1090 = vmatprep.subr.mxu0 0.0
      %1091 = vmatpush1.msra.mxu0 0.0
      %1092 = vmatprep.subr.mxu0 0.0
      %1093 = vmatpush1.msra.mxu0 0.0
      %1094 = vmatprep.subr.mxu0 0.0
      %1095 = vmatpush1.msra.mxu0 0.0
      %1096 = vmatprep.subr.mxu0 0.0
      %1097 = vmatpush1.msra.mxu0 0.0
      %1098 = vmatprep.subr.mxu0 0.0
      %1099 = vmatpush1.msra.mxu0 0.0
      %1100 = vmatprep.subr.mxu0 0.0
      %1101 = vmatpush1.msra.mxu0 0.0
      %1102 = vmatprep.subr.mxu0 0.0
      %1103 = vmatpush1.msra.mxu0 0.0
      %1104 = vmatprep.subr.mxu0 0.0
      %1105 = vmatpush1.msra.mxu0 0.0
      %1106 = vmatprep.subr.mxu0 0.0
      %1107 = vmatpush1.msra.mxu0 0.0
      %1108 = vmatprep.subr.mxu0 0.0
      %1109 = vmatpush1.msra.mxu0 0.0
      %1110 = vmatprep.subr.mxu0 0.0
      %1111 = vmatpush1.msra.mxu0 0.0
      %1112 = vmatprep.subr.mxu0 0.0
      %1113 = vmatpush1.msra.mxu0 0.0
      %1114 = vmatprep.subr.mxu0 0.0
      %1115 = vmatpush1.msra.mxu0 0.0
      %1116 = vmatprep.mubr.f32.mxu0 0.0
      %1117 = vmatmul.mubr.f32.gmra.mrb[0].mxu0 %v1029
      %v1118 = vpop.f32.mrb[0].mxu0
      %v1119 = vadd.f32 %v439, %v1118
      %v1120 = vpop.f32.mrb[0].mxu0
      %1121 = vmatprep.mubr.f32.mxu0 0.0
      %1122 = vmatmul.mubr.f32.gmra.mrb[0].mxu0 %v1032
      %v1123 = vpop.f32.mrb[0].mxu0
      %v1124 = vadd.f32 %v439, %v1123
      %v1125 = vpop.f32.mrb[0].mxu0
      %1126 = vmatprep.mubr.f32.mxu0 0.0
      %1127 = vmatmul.mubr.f32.gmra.mrb[0].mxu0 %v1035
      %v1128 = vpop.f32.mrb[0].mxu0
      %v1129 = vadd.f32 %v439, %v1128
      %v1130 = vpop.f32.mrb[0].mxu0
      %1131 = vmatprep.mubr.f32.mxu0 0.0
      %1132 = vmatmul.mubr.f32.gmra.mrb[0].mxu0 %v1038
      %v1133 = vpop.f32.mrb[0].mxu0
      %v1134 = vadd.f32 %v439, %v1133
      %v1135 = vpop.f32.mrb[0].mxu0
      %1136 = vmatprep.mubr.f32.mxu0 0.0
      %1137 = vmatmul.mubr.f32.gmra.mrb[0].mxu0 %v1041
      %v1138 = vpop.f32.mrb[0].mxu0
      %v1139 = vadd.f32 %v439, %v1138
      %v1140 = vpop.f32.mrb[0].mxu0
      %1141 = vmatprep.mubr.f32.mxu0 0.0
      %1142 = vmatmul.mubr.f32.gmra.mrb[0].mxu0 %v1044
      %v1143 = vpop.f32.mrb[0].mxu0
      %v1144 = vadd.f32 %v439, %v1143
      %v1145 = vpop.f32.mrb[0].mxu0
      %1146 = vmatprep.mubr.f32.mxu0 0.0
      %1147 = vmatmul.mubr.f32.gmra.mrb[0].mxu0 %v1047
      %v1148 = vpop.f32.mrb[0].mxu0
      %v1149 = vadd.f32 %v439, %v1148
      %v1150 = vpop.f32.mrb[0].mxu0
      %1151 = vmatprep.mubr.f32.mxu0 0.0
      %1152 = vmatmul.mubr.f32.gmra.mrb[0].mxu0 %v1050
      %v1153 = vpop.f32.mrb[0].mxu0
      %v1154 = vadd.f32 %v439, %v1153
      %v1155 = vpop.f32.mrb[0].mxu0
      %1156 = vdwg.mxu0
      %vm1157 = vcmp.gt.f32.partialorder %v1119, 0.0
      %vm1158 = vcmp.gt.f32.partialorder %v1124, 0.0
      %vm1159 = vcmp.gt.f32.partialorder %v1129, 0.0
      %vm1160 = vcmp.gt.f32.partialorder %v1134, 0.0
      %vm1161 = vcmp.gt.f32.partialorder %v1139, 0.0
      %vm1162 = vcmp.gt.f32.partialorder %v1144, 0.0
      %vm1163 = vcmp.gt.f32.partialorder %v1149, 0.0
      %vm1164 = vcmp.gt.f32.partialorder %v1154, 0.0
      %v1165 = vmin.f32 %v1119, 0.0
      %v1166 = vmin.f32 %v1124, 0.0
      %v1167 = vmin.f32 %v1129, 0.0
      %v1168 = vmin.f32 %v1134, 0.0
      %v1169 = vmin.f32 %v1139, 0.0
      %v1170 = vmin.f32 %v1144, 0.0
      %v1171 = vmin.f32 %v1149, 0.0
      %v1172 = vmin.f32 %v1154, 0.0
      %v1173 = vmul.f32 %v1165, 1.442695
      %v1174 = vpow.pop %v1173
      %v1175 = vmul.f32 %v1166, 1.442695
      %v1176 = vpow.pop %v1175
      %v1177 = vmul.f32 %v1167, 1.442695
      %v1178 = vpow.pop %v1177
      %v1179 = vmul.f32 %v1168, 1.442695
      %v1180 = vpow.pop %v1179
      %v1181 = vmul.f32 %v1169, 1.442695
      %v1182 = vpow.pop %v1181
      %v1183 = vmul.f32 %v1170, 1.442695
      %v1184 = vpow.pop %v1183
      %v1185 = vmul.f32 %v1171, 1.442695
      %v1186 = vpow.pop %v1185
      %v1187 = vmul.f32 %v1172, 1.442695
      %v1188 = vpow.pop %v1187
      %v1189 = vsub.f32 %v1174, 1.0
      %v1190 = vsub.f32 %v1176, 1.0
      %v1191 = vsub.f32 %v1178, 1.0
      %v1192 = vsub.f32 %v1180, 1.0
      %v1193 = vsub.f32 %v1182, 1.0
      %v1194 = vsub.f32 %v1184, 1.0
      %v1195 = vsub.f32 %v1186, 1.0
      %v1196 = vsub.f32 %v1188, 1.0
      %v1197 = vsel %vm1157, %v1119, %v1189
      %v1198 = vsel %vm1158, %v1124, %v1190
      %v1199 = vsel %vm1159, %v1129, %v1191
      %v1200 = vsel %vm1160, %v1134, %v1192
      %v1201 = vsel %vm1161, %v1139, %v1193
      %v1202 = vsel %vm1162, %v1144, %v1194
      %v1203 = vsel %vm1163, %v1149, %v1195
      %v1204 = vsel %vm1164, %v1154, %v1196
      %1205 = vst [vmem:[#allocation5 + $0x10] sm:$0xff] %v1197
      %1206 = vst [vmem:[#allocation5 + $0x18] sm:$0xff] %v1198
      %1207 = vst [vmem:[#allocation5 + $0x20] sm:$0xff] %v1199
      %1208 = vst [vmem:[#allocation5 + $0x28] sm:$0xff] %v1200
      %1209 = vst [vmem:[#allocation5 + $0x30] sm:$0xff] %v1201
      %1210 = vst [vmem:[#allocation5 + $0x38] sm:$0xff] %v1202
      %1211 = vst [vmem:[#allocation5 + $0x40] sm:$0xff] %v1203
      %1212 = vst [vmem:[#allocation5 + $0x48] sm:$0xff] %v1204
      %v1213 = vld [vmem:[#allocation5 + $0x7] sm:$0xff]
      %v1214 = vld [vmem:[#allocation5 + $0xf] sm:$0xff]
      %v1215 = vld [vmem:[#allocation5 + $0x17] sm:$0xff]
      %v1216 = vld [vmem:[#allocation5 + $0x1f] sm:$0xff]
      %v1217 = vld [vmem:[#allocation5 + $0x27] sm:$0xff]
      %v1218 = vld [vmem:[#allocation5 + $0x2f] sm:$0xff]
      %v1219 = vld [vmem:[#allocation5 + $0x37] sm:$0xff]
      %v1220 = vld [vmem:[#allocation5 + $0x3f] sm:$0xff]
      %vm1221 = vmand %vm408, %vm400
      %vm1222 = vmand %vm409, %vm401
      %vm1223 = vmand %vm410, %vm402
      %vm1224 = vmand %vm411, %vm403
      %vm1225 = vmand %vm412, %vm404
      %vm1226 = vmand %vm413, %vm405
      %vm1227 = vmand %vm414, %vm406
      %vm1228 = vmand %vm415, %vm407
      %v1229 = vsel %vm1221, 1, 0
      %v1230 = vsel %vm1222, 1, 0
      %v1231 = vsel %vm1223, 1, 0
      %v1232 = vsel %vm1224, 1, 0
      %v1233 = vsel %vm1225, 1, 0
      %v1234 = vsel %vm1226, 1, 0
      %v1235 = vsel %vm1227, 1, 0
      %v1236 = vsel %vm1228, 1, 0
      %vm1237 = vcmp.eq.s32.totalorder %v1229, 1
      %vm1238 = vcmp.eq.s32.totalorder %v1230, 1
      %vm1239 = vcmp.eq.s32.totalorder %v1231, 1
      %vm1240 = vcmp.eq.s32.totalorder %v1232, 1
      %vm1241 = vcmp.eq.s32.totalorder %v1233, 1
      %vm1242 = vcmp.eq.s32.totalorder %v1234, 1
      %vm1243 = vcmp.eq.s32.totalorder %v1235, 1
      %vm1244 = vcmp.eq.s32.totalorder %v1236, 1
      %v1245 = vsel %vm1237, %v1213, 0.0
      %v1246 = vsel %vm1238, %v1214, 0.0
      %v1247 = vsel %vm1239, %v1215, 0.0
      %v1248 = vsel %vm1240, %v1216, 0.0
      %v1249 = vsel %vm1241, %v1217, 0.0
      %v1250 = vsel %vm1242, %v1218, 0.0
      %v1251 = vsel %vm1243, %v1219, 0.0
      %v1252 = vsel %vm1244, %v1220, 0.0
      %v1253 = vld [vmem:[%s4] sm:$0xff]
      %v1254 = vld [vmem:[%s4 + $0x8] sm:$0xff]
      %v1255 = vld [vmem:[%s4 + $0x10] sm:$0xff]
      %v1256 = vld [vmem:[%s4 + $0x18] sm:$0xff]
      %v1257 = vld [vmem:[%s4 + $0x20] sm:$0xff]
      %v1258 = vld [vmem:[%s4 + $0x28] sm:$0xff]
      %v1259 = vld [vmem:[%s4 + $0x30] sm:$0xff]
      %v1260 = vld [vmem:[%s4 + $0x38] sm:$0xff]
      %v1261 = vld [vmem:[%s4 + $0x40] sm:$0xff]
      %v1262 = vld [vmem:[%s4 + $0x48] sm:$0xff]
      %v1263 = vld [vmem:[%s4 + $0x50] sm:$0xff]
      %v1264 = vld [vmem:[%s4 + $0x58] sm:$0xff]
      %v1265 = vld [vmem:[%s4 + $0x60] sm:$0xff]
      %v1266 = vld [vmem:[%s4 + $0x68] sm:$0xff]
      %v1267 = vld [vmem:[%s4 + $0x70] sm:$0xff]
      %v1268 = vld [vmem:[%s4 + $0x78] sm:$0xff]
      %v1269 = vld [vmem:[#allocation4 + $0x8] sm:$0xff]
      %v1270 = vld [vmem:[#allocation4 + $0x10] sm:$0xff]
      %v1271 = vld [vmem:[#allocation4 + $0x18] sm:$0xff]
      %v1272 = vld [vmem:[#allocation4 + $0x20] sm:$0xff]
      %v1273 = vld [vmem:[#allocation4 + $0x28] sm:$0xff]
      %v1274 = vld [vmem:[#allocation4 + $0x30] sm:$0xff]
      %v1275 = vld [vmem:[#allocation4 + $0x38] sm:$0xff]
      %v1276 = vld [vmem:[#allocation4 + $0x40] sm:$0xff]
      %v1277 = vsel %vm408, 1, 0
      %v1278 = vsel %vm409, 1, 0
      %v1279 = vsel %vm410, 1, 0
      %v1280 = vsel %vm411, 1, 0
      %v1281 = vsel %vm412, 1, 0
      %v1282 = vsel %vm413, 1, 0
      %v1283 = vsel %vm414, 1, 0
      %v1284 = vsel %vm415, 1, 0
      %vm1285 = vcmp.eq.s32.totalorder %v1277, 1
      %vm1286 = vcmp.eq.s32.totalorder %v1278, 1
      %vm1287 = vcmp.eq.s32.totalorder %v1279, 1
      %vm1288 = vcmp.eq.s32.totalorder %v1280, 1
      %vm1289 = vcmp.eq.s32.totalorder %v1281, 1
      %vm1290 = vcmp.eq.s32.totalorder %v1282, 1
      %vm1291 = vcmp.eq.s32.totalorder %v1283, 1
      %vm1292 = vcmp.eq.s32.totalorder %v1284, 1
      %v1293 = vsel %vm1285, %v1269, 0.0
      %v1294 = vsel %vm1286, %v1270, 0.0
      %v1295 = vsel %vm1287, %v1271, 0.0
      %v1296 = vsel %vm1288, %v1272, 0.0
      %v1297 = vsel %vm1289, %v1273, 0.0
      %v1298 = vsel %vm1290, %v1274, 0.0
      %v1299 = vsel %vm1291, %v1275, 0.0
      %v1300 = vsel %vm1292, %v1276, 0.0
      %s1301 = scalar_lea.vmem %s4, 128
      %v1302 = vld [vmem:[%s1301] sm:$0xff]
      %v1303 = vld [vmem:[%s1301 + $0x8] sm:$0xff]
      %v1304 = vld [vmem:[%s1301 + $0x10] sm:$0xff]
      %v1305 = vld [vmem:[%s1301 + $0x18] sm:$0xff]
      %v1306 = vld [vmem:[%s1301 + $0x20] sm:$0xff]
      %v1307 = vld [vmem:[%s1301 + $0x28] sm:$0xff]
      %v1308 = vld [vmem:[%s1301 + $0x30] sm:$0xff]
      %v1309 = vld [vmem:[%s1301 + $0x38] sm:$0xff]
      %v1310 = vld [vmem:[%s1301 + $0x40] sm:$0xff]
      %v1311 = vld [vmem:[%s1301 + $0x48] sm:$0xff]
      %v1312 = vld [vmem:[%s1301 + $0x50] sm:$0xff]
      %v1313 = vld [vmem:[%s1301 + $0x58] sm:$0xff]
      %v1314 = vld [vmem:[%s1301 + $0x60] sm:$0xff]
      %v1315 = vld [vmem:[%s1301 + $0x68] sm:$0xff]
      %v1316 = vld [vmem:[%s1301 + $0x70] sm:$0xff]
      %v1317 = vld [vmem:[%s1301 + $0x78] sm:$0xff]
      %1318 = vmatprep.subr.mxu0 0.0
      %1319 = vmatpush1.msra.mxu0 %v1302
      %1320 = vmatprep.subr.mxu0 0.0
      %1321 = vmatpush1.msra.mxu0 %v1303
      %1322 = vmatprep.subr.mxu0 0.0
      %1323 = vmatpush1.msra.mxu0 %v1304
      %1324 = vmatprep.subr.mxu0 0.0
      %1325 = vmatpush1.msra.mxu0 %v1305
      %1326 = vmatprep.subr.mxu0 0.0
      %1327 = vmatpush1.msra.mxu0 %v1306
      %1328 = vmatprep.subr.mxu0 0.0
      %1329 = vmatpush1.msra.mxu0 %v1307
      %1330 = vmatprep.subr.mxu0 0.0
      %1331 = vmatpush1.msra.mxu0 %v1308
      %1332 = vmatprep.subr.mxu0 0.0
      %1333 = vmatpush1.msra.mxu0 %v1309
      %1334 = vmatprep.subr.mxu0 0.0
      %1335 = vmatpush1.msra.mxu0 %v1310
      %1336 = vmatprep.subr.mxu0 0.0
      %1337 = vmatpush1.msra.mxu0 %v1311
      %1338 = vmatprep.subr.mxu0 0.0
      %1339 = vmatpush1.msra.mxu0 %v1312
      %1340 = vmatprep.subr.mxu0 0.0
      %1341 = vmatpush1.msra.mxu0 %v1313
      %1342 = vmatprep.subr.mxu0 0.0
      %1343 = vmatpush1.msra.mxu0 %v1314
      %1344 = vmatprep.subr.mxu0 0.0
      %1345 = vmatpush1.msra.mxu0 %v1315
      %1346 = vmatprep.subr.mxu0 0.0
      %1347 = vmatpush1.msra.mxu0 %v1316
      %1348 = vmatprep.subr.mxu0 0.0
      %1349 = vmatpush1.msra.mxu0 %v1317
      %1350 = vmatprep.subr.mxu0 0.0
      %1351 = vmatpush1.msra.mxu0 0.0
      %1352 = vmatprep.subr.mxu0 0.0
      %1353 = vmatpush1.msra.mxu0 0.0
      %1354 = vmatprep.subr.mxu0 0.0
      %1355 = vmatpush1.msra.mxu0 0.0
      %1356 = vmatprep.subr.mxu0 0.0
      %1357 = vmatpush1.msra.mxu0 0.0
      %1358 = vmatprep.subr.mxu0 0.0
      %1359 = vmatpush1.msra.mxu0 0.0
      %1360 = vmatprep.subr.mxu0 0.0
      %1361 = vmatpush1.msra.mxu0 0.0
      %1362 = vmatprep.subr.mxu0 0.0
      %1363 = vmatpush1.msra.mxu0 0.0
      %1364 = vmatprep.subr.mxu0 0.0
      %1365 = vmatpush1.msra.mxu0 0.0
      %1366 = vmatprep.subr.mxu0 0.0
      %1367 = vmatpush1.msra.mxu0 0.0
      %1368 = vmatprep.subr.mxu0 0.0
      %1369 = vmatpush1.msra.mxu0 0.0
      %1370 = vmatprep.subr.mxu0 0.0
      %1371 = vmatpush1.msra.mxu0 0.0
      %1372 = vmatprep.subr.mxu0 0.0
      %1373 = vmatpush1.msra.mxu0 0.0
      %1374 = vmatprep.subr.mxu0 0.0
      %1375 = vmatpush1.msra.mxu0 0.0
      %1376 = vmatprep.subr.mxu0 0.0
      %1377 = vmatpush1.msra.mxu0 0.0
      %1378 = vmatprep.subr.mxu0 0.0
      %1379 = vmatpush1.msra.mxu0 0.0
      %1380 = vmatprep.subr.mxu0 0.0
      %1381 = vmatpush1.msra.mxu0 0.0
      %1382 = vmatprep.mubr.f32.mxu0 0.0
      %1383 = vmatmul.mubr.f32.gmra.mrb[0].mxu0 %v1293
      %v1384 = vpop.f32.mrb[0].mxu0
      %v1385 = vadd.f32 0.0, %v1384
      %v1386 = vpop.f32.mrb[0].mxu0
      %1387 = vmatprep.mubr.f32.mxu0 0.0
      %1388 = vmatmul.mubr.f32.gmra.mrb[0].mxu0 %v1294
      %v1389 = vpop.f32.mrb[0].mxu0
      %v1390 = vadd.f32 0.0, %v1389
      %v1391 = vpop.f32.mrb[0].mxu0
      %1392 = vmatprep.mubr.f32.mxu0 0.0
      %1393 = vmatmul.mubr.f32.gmra.mrb[0].mxu0 %v1295
      %v1394 = vpop.f32.mrb[0].mxu0
      %v1395 = vadd.f32 0.0, %v1394
      %v1396 = vpop.f32.mrb[0].mxu0
      %1397 = vmatprep.mubr.f32.mxu0 0.0
      %1398 = vmatmul.mubr.f32.gmra.mrb[0].mxu0 %v1296
      %v1399 = vpop.f32.mrb[0].mxu0
      %v1400 = vadd.f32 0.0, %v1399
      %v1401 = vpop.f32.mrb[0].mxu0
      %1402 = vmatprep.mubr.f32.mxu0 0.0
      %1403 = vmatmul.mubr.f32.gmra.mrb[0].mxu0 %v1297
      %v1404 = vpop.f32.mrb[0].mxu0
      %v1405 = vadd.f32 0.0, %v1404
      %v1406 = vpop.f32.mrb[0].mxu0
      %1407 = vmatprep.mubr.f32.mxu0 0.0
      %1408 = vmatmul.mubr.f32.gmra.mrb[0].mxu0 %v1298
      %v1409 = vpop.f32.mrb[0].mxu0
      %v1410 = vadd.f32 0.0, %v1409
      %v1411 = vpop.f32.mrb[0].mxu0
      %1412 = vmatprep.mubr.f32.mxu0 0.0
      %1413 = vmatmul.mubr.f32.gmra.mrb[0].mxu0 %v1299
      %v1414 = vpop.f32.mrb[0].mxu0
      %v1415 = vadd.f32 0.0, %v1414
      %v1416 = vpop.f32.mrb[0].mxu0
      %1417 = vmatprep.mubr.f32.mxu0 0.0
      %1418 = vmatmul.mubr.f32.gmra.mrb[0].mxu0 %v1300
      %v1419 = vpop.f32.mrb[0].mxu0
      %v1420 = vadd.f32 0.0, %v1419
      %v1421 = vpop.f32.mrb[0].mxu0
      %1422 = vdwg.mxu0
      %1423 = vmatprep.subr.mxu0 0.0
      %1424 = vmatpush1.msra.mxu0 %v1253
      %1425 = vmatprep.subr.mxu0 0.0
      %1426 = vmatpush1.msra.mxu0 %v1254
      %1427 = vmatprep.subr.mxu0 0.0
      %1428 = vmatpush1.msra.mxu0 %v1255
      %1429 = vmatprep.subr.mxu0 0.0
      %1430 = vmatpush1.msra.mxu0 %v1256
      %1431 = vmatprep.subr.mxu0 0.0
      %1432 = vmatpush1.msra.mxu0 %v1257
      %1433 = vmatprep.subr.mxu0 0.0
      %1434 = vmatpush1.msra.mxu0 %v1258
      %1435 = vmatprep.subr.mxu0 0.0
      %1436 = vmatpush1.msra.mxu0 %v1259
      %1437 = vmatprep.subr.mxu0 0.0
      %1438 = vmatpush1.msra.mxu0 %v1260
      %1439 = vmatprep.subr.mxu0 0.0
      %1440 = vmatpush1.msra.mxu0 %v1261
      %1441 = vmatprep.subr.mxu0 0.0
      %1442 = vmatpush1.msra.mxu0 %v1262
      %1443 = vmatprep.subr.mxu0 0.0
      %1444 = vmatpush1.msra.mxu0 %v1263
      %1445 = vmatprep.subr.mxu0 0.0
      %1446 = vmatpush1.msra.mxu0 %v1264
      %1447 = vmatprep.subr.mxu0 0.0
      %1448 = vmatpush1.msra.mxu0 %v1265
      %1449 = vmatprep.subr.mxu0 0.0
      %1450 = vmatpush1.msra.mxu0 %v1266
      %1451 = vmatprep.subr.mxu0 0.0
      %1452 = vmatpush1.msra.mxu0 %v1267
      %1453 = vmatprep.subr.mxu0 0.0
      %1454 = vmatpush1.msra.mxu0 %v1268
      %1455 = vmatprep.subr.mxu0 0.0
      %1456 = vmatpush1.msra.mxu0 0.0
      %1457 = vmatprep.subr.mxu0 0.0
      %1458 = vmatpush1.msra.mxu0 0.0
      %1459 = vmatprep.subr.mxu0 0.0
      %1460 = vmatpush1.msra.mxu0 0.0
      %1461 = vmatprep.subr.mxu0 0.0
      %1462 = vmatpush1.msra.mxu0 0.0
      %1463 = vmatprep.subr.mxu0 0.0
      %1464 = vmatpush1.msra.mxu0 0.0
      %1465 = vmatprep.subr.mxu0 0.0
      %1466 = vmatpush1.msra.mxu0 0.0
      %1467 = vmatprep.subr.mxu0 0.0
      %1468 = vmatpush1.msra.mxu0 0.0
      %1469 = vmatprep.subr.mxu0 0.0
      %1470 = vmatpush1.msra.mxu0 0.0
      %1471 = vmatprep.subr.mxu0 0.0
      %1472 = vmatpush1.msra.mxu0 0.0
      %1473 = vmatprep.subr.mxu0 0.0
      %1474 = vmatpush1.msra.mxu0 0.0
      %1475 = vmatprep.subr.mxu0 0.0
      %1476 = vmatpush1.msra.mxu0 0.0
      %1477 = vmatprep.subr.mxu0 0.0
      %1478 = vmatpush1.msra.mxu0 0.0
      %1479 = vmatprep.subr.mxu0 0.0
      %1480 = vmatpush1.msra.mxu0 0.0
      %1481 = vmatprep.subr.mxu0 0.0
      %1482 = vmatpush1.msra.mxu0 0.0
      %1483 = vmatprep.subr.mxu0 0.0
      %1484 = vmatpush1.msra.mxu0 0.0
      %1485 = vmatprep.subr.mxu0 0.0
      %1486 = vmatpush1.msra.mxu0 0.0
      %1487 = vmatprep.mubr.f32.mxu0 0.0
      %1488 = vmatmul.mubr.f32.gmra.mrb[0].mxu0 %v1245
      %v1489 = vpop.f32.mrb[0].mxu0
      %v1490 = vadd.f32 %v1385, %v1489
      %v1491 = vpop.f32.mrb[0].mxu0
      %1492 = vmatprep.mubr.f32.mxu0 0.0
      %1493 = vmatmul.mubr.f32.gmra.mrb[0].mxu0 %v1246
      %v1494 = vpop.f32.mrb[0].mxu0
      %v1495 = vadd.f32 %v1390, %v1494
      %v1496 = vpop.f32.mrb[0].mxu0
      %1497 = vmatprep.mubr.f32.mxu0 0.0
      %1498 = vmatmul.mubr.f32.gmra.mrb[0].mxu0 %v1247
      %v1499 = vpop.f32.mrb[0].mxu0
      %v1500 = vadd.f32 %v1395, %v1499
      %v1501 = vpop.f32.mrb[0].mxu0
      %1502 = vmatprep.mubr.f32.mxu0 0.0
      %1503 = vmatmul.mubr.f32.gmra.mrb[0].mxu0 %v1248
      %v1504 = vpop.f32.mrb[0].mxu0
      %v1505 = vadd.f32 %v1400, %v1504
      %v1506 = vpop.f32.mrb[0].mxu0
      %1507 = vmatprep.mubr.f32.mxu0 0.0
      %1508 = vmatmul.mubr.f32.gmra.mrb[0].mxu0 %v1249
      %v1509 = vpop.f32.mrb[0].mxu0
      %v1510 = vadd.f32 %v1405, %v1509
      %v1511 = vpop.f32.mrb[0].mxu0
      %1512 = vmatprep.mubr.f32.mxu0 0.0
      %1513 = vmatmul.mubr.f32.gmra.mrb[0].mxu0 %v1250
      %v1514 = vpop.f32.mrb[0].mxu0
      %v1515 = vadd.f32 %v1410, %v1514
      %v1516 = vpop.f32.mrb[0].mxu0
      %1517 = vmatprep.mubr.f32.mxu0 0.0
      %1518 = vmatmul.mubr.f32.gmra.mrb[0].mxu0 %v1251
      %v1519 = vpop.f32.mrb[0].mxu0
      %v1520 = vadd.f32 %v1415, %v1519
      %v1521 = vpop.f32.mrb[0].mxu0
      %1522 = vmatprep.mubr.f32.mxu0 0.0
      %1523 = vmatmul.mubr.f32.gmra.mrb[0].mxu0 %v1252
      %v1524 = vpop.f32.mrb[0].mxu0
      %v1525 = vadd.f32 %v1420, %v1524
      %v1526 = vpop.f32.mrb[0].mxu0
      %1527 = vdwg.mxu0
      %v1528 = vld [vmem:[#allocation5 + $0x8] sm:$0xff]
      %v1529 = vld [vmem:[#allocation5 + $0x10] sm:$0xff]
      %v1530 = vld [vmem:[#allocation5 + $0x18] sm:$0xff]
      %v1531 = vld [vmem:[#allocation5 + $0x20] sm:$0xff]
      %v1532 = vld [vmem:[#allocation5 + $0x28] sm:$0xff]
      %v1533 = vld [vmem:[#allocation5 + $0x30] sm:$0xff]
      %v1534 = vld [vmem:[#allocation5 + $0x38] sm:$0xff]
      %v1535 = vld [vmem:[#allocation5 + $0x40] sm:$0xff]
      %v1536 = vsel %vm1285, %v1528, 0.0
      %v1537 = vsel %vm1286, %v1529, 0.0
      %v1538 = vsel %vm1287, %v1530, 0.0
      %v1539 = vsel %vm1288, %v1531, 0.0
      %v1540 = vsel %vm1289, %v1532, 0.0
      %v1541 = vsel %vm1290, %v1533, 0.0
      %v1542 = vsel %vm1291, %v1534, 0.0
      %v1543 = vsel %vm1292, %v1535, 0.0
      %s1544 = scalar_lea.vmem %s4, 256
      %v1545 = vld [vmem:[%s1544] sm:$0xff]
      %v1546 = vld [vmem:[%s1544 + $0x8] sm:$0xff]
      %v1547 = vld [vmem:[%s1544 + $0x10] sm:$0xff]
      %v1548 = vld [vmem:[%s1544 + $0x18] sm:$0xff]
      %v1549 = vld [vmem:[%s1544 + $0x20] sm:$0xff]
      %v1550 = vld [vmem:[%s1544 + $0x28] sm:$0xff]
      %v1551 = vld [vmem:[%s1544 + $0x30] sm:$0xff]
      %v1552 = vld [vmem:[%s1544 + $0x38] sm:$0xff]
      %v1553 = vld [vmem:[%s1544 + $0x40] sm:$0xff]
      %v1554 = vld [vmem:[%s1544 + $0x48] sm:$0xff]
      %v1555 = vld [vmem:[%s1544 + $0x50] sm:$0xff]
      %v1556 = vld [vmem:[%s1544 + $0x58] sm:$0xff]
      %v1557 = vld [vmem:[%s1544 + $0x60] sm:$0xff]
      %v1558 = vld [vmem:[%s1544 + $0x68] sm:$0xff]
      %v1559 = vld [vmem:[%s1544 + $0x70] sm:$0xff]
      %v1560 = vld [vmem:[%s1544 + $0x78] sm:$0xff]
      %1561 = vmatprep.subr.mxu0 0.0
      %1562 = vmatpush1.msra.mxu0 %v1545
      %1563 = vmatprep.subr.mxu0 0.0
      %1564 = vmatpush1.msra.mxu0 %v1546
      %1565 = vmatprep.subr.mxu0 0.0
      %1566 = vmatpush1.msra.mxu0 %v1547
      %1567 = vmatprep.subr.mxu0 0.0
      %1568 = vmatpush1.msra.mxu0 %v1548
      %1569 = vmatprep.subr.mxu0 0.0
      %1570 = vmatpush1.msra.mxu0 %v1549
      %1571 = vmatprep.subr.mxu0 0.0
      %1572 = vmatpush1.msra.mxu0 %v1550
      %1573 = vmatprep.subr.mxu0 0.0
      %1574 = vmatpush1.msra.mxu0 %v1551
      %1575 = vmatprep.subr.mxu0 0.0
      %1576 = vmatpush1.msra.mxu0 %v1552
      %1577 = vmatprep.subr.mxu0 0.0
      %1578 = vmatpush1.msra.mxu0 %v1553
      %1579 = vmatprep.subr.mxu0 0.0
      %1580 = vmatpush1.msra.mxu0 %v1554
      %1581 = vmatprep.subr.mxu0 0.0
      %1582 = vmatpush1.msra.mxu0 %v1555
      %1583 = vmatprep.subr.mxu0 0.0
      %1584 = vmatpush1.msra.mxu0 %v1556
      %1585 = vmatprep.subr.mxu0 0.0
      %1586 = vmatpush1.msra.mxu0 %v1557
      %1587 = vmatprep.subr.mxu0 0.0
      %1588 = vmatpush1.msra.mxu0 %v1558
      %1589 = vmatprep.subr.mxu0 0.0
      %1590 = vmatpush1.msra.mxu0 %v1559
      %1591 = vmatprep.subr.mxu0 0.0
      %1592 = vmatpush1.msra.mxu0 %v1560
      %1593 = vmatprep.subr.mxu0 0.0
      %1594 = vmatpush1.msra.mxu0 0.0
      %1595 = vmatprep.subr.mxu0 0.0
      %1596 = vmatpush1.msra.mxu0 0.0
      %1597 = vmatprep.subr.mxu0 0.0
      %1598 = vmatpush1.msra.mxu0 0.0
      %1599 = vmatprep.subr.mxu0 0.0
      %1600 = vmatpush1.msra.mxu0 0.0
      %1601 = vmatprep.subr.mxu0 0.0
      %1602 = vmatpush1.msra.mxu0 0.0
      %1603 = vmatprep.subr.mxu0 0.0
      %1604 = vmatpush1.msra.mxu0 0.0
      %1605 = vmatprep.subr.mxu0 0.0
      %1606 = vmatpush1.msra.mxu0 0.0
      %1607 = vmatprep.subr.mxu0 0.0
      %1608 = vmatpush1.msra.mxu0 0.0
      %1609 = vmatprep.subr.mxu0 0.0
      %1610 = vmatpush1.msra.mxu0 0.0
      %1611 = vmatprep.subr.mxu0 0.0
      %1612 = vmatpush1.msra.mxu0 0.0
      %1613 = vmatprep.subr.mxu0 0.0
      %1614 = vmatpush1.msra.mxu0 0.0
      %1615 = vmatprep.subr.mxu0 0.0
      %1616 = vmatpush1.msra.mxu0 0.0
      %1617 = vmatprep.subr.mxu0 0.0
      %1618 = vmatpush1.msra.mxu0 0.0
      %1619 = vmatprep.subr.mxu0 0.0
      %1620 = vmatpush1.msra.mxu0 0.0
      %1621 = vmatprep.subr.mxu0 0.0
      %1622 = vmatpush1.msra.mxu0 0.0
      %1623 = vmatprep.subr.mxu0 0.0
      %1624 = vmatpush1.msra.mxu0 0.0
      %1625 = vmatprep.mubr.f32.mxu0 0.0
      %1626 = vmatmul.mubr.f32.gmra.mrb[0].mxu0 %v1536
      %v1627 = vpop.f32.mrb[0].mxu0
      %v1628 = vadd.f32 0.0, %v1627
      %v1629 = vpop.f32.mrb[0].mxu0
      %1630 = vmatprep.mubr.f32.mxu0 0.0
      %1631 = vmatmul.mubr.f32.gmra.mrb[0].mxu0 %v1537
      %v1632 = vpop.f32.mrb[0].mxu0
      %v1633 = vadd.f32 0.0, %v1632
      %v1634 = vpop.f32.mrb[0].mxu0
      %1635 = vmatprep.mubr.f32.mxu0 0.0
      %1636 = vmatmul.mubr.f32.gmra.mrb[0].mxu0 %v1538
      %v1637 = vpop.f32.mrb[0].mxu0
      %v1638 = vadd.f32 0.0, %v1637
      %v1639 = vpop.f32.mrb[0].mxu0
      %1640 = vmatprep.mubr.f32.mxu0 0.0
      %1641 = vmatmul.mubr.f32.gmra.mrb[0].mxu0 %v1539
      %v1642 = vpop.f32.mrb[0].mxu0
      %v1643 = vadd.f32 0.0, %v1642
      %v1644 = vpop.f32.mrb[0].mxu0
      %1645 = vmatprep.mubr.f32.mxu0 0.0
      %1646 = vmatmul.mubr.f32.gmra.mrb[0].mxu0 %v1540
      %v1647 = vpop.f32.mrb[0].mxu0
      %v1648 = vadd.f32 0.0, %v1647
      %v1649 = vpop.f32.mrb[0].mxu0
      %1650 = vmatprep.mubr.f32.mxu0 0.0
      %1651 = vmatmul.mubr.f32.gmra.mrb[0].mxu0 %v1541
      %v1652 = vpop.f32.mrb[0].mxu0
      %v1653 = vadd.f32 0.0, %v1652
      %v1654 = vpop.f32.mrb[0].mxu0
      %1655 = vmatprep.mubr.f32.mxu0 0.0
      %1656 = vmatmul.mubr.f32.gmra.mrb[0].mxu0 %v1542
      %v1657 = vpop.f32.mrb[0].mxu0
      %v1658 = vadd.f32 0.0, %v1657
      %v1659 = vpop.f32.mrb[0].mxu0
      %1660 = vmatprep.mubr.f32.mxu0 0.0
      %1661 = vmatmul.mubr.f32.gmra.mrb[0].mxu0 %v1543
      %v1662 = vpop.f32.mrb[0].mxu0
      %v1663 = vadd.f32 0.0, %v1662
      %v1664 = vpop.f32.mrb[0].mxu0
      %1665 = vdwg.mxu0
      %v1666 = vadd.f32 %v1490, %v1628
      %v1667 = vadd.f32 %v1495, %v1633
      %v1668 = vadd.f32 %v1500, %v1638
      %v1669 = vadd.f32 %v1505, %v1643
      %v1670 = vadd.f32 %v1510, %v1648
      %v1671 = vadd.f32 %v1515, %v1653
      %v1672 = vadd.f32 %v1520, %v1658
      %v1673 = vadd.f32 %v1525, %v1663
      %v1674 = vld [vmem:[#allocation3 + $0xf] sm:$0xff]
      %v1675 = vld [vmem:[#allocation3 + $0x17] sm:$0xff]
      %v1676 = vld [vmem:[#allocation3 + $0x1f] sm:$0xff]
      %v1677 = vld [vmem:[#allocation3 + $0x27] sm:$0xff]
      %v1678 = vld [vmem:[#allocation3 + $0x2f] sm:$0xff]
      %v1679 = vld [vmem:[#allocation3 + $0x37] sm:$0xff]
      %v1680 = vld [vmem:[#allocation3 + $0x3f] sm:$0xff]
      %v1681 = vld [vmem:[#allocation3 + $0x47] sm:$0xff]
      %v1682 = vsel %vm400, 1, 0
      %v1683 = vsel %vm401, 1, 0
      %v1684 = vsel %vm402, 1, 0
      %v1685 = vsel %vm403, 1, 0
      %v1686 = vsel %vm404, 1, 0
      %v1687 = vsel %vm405, 1, 0
      %v1688 = vsel %vm406, 1, 0
      %v1689 = vsel %vm407, 1, 0
      %vm1690 = vcmp.eq.s32.totalorder %v1682, 1
      %vm1691 = vcmp.eq.s32.totalorder %v1683, 1
      %vm1692 = vcmp.eq.s32.totalorder %v1684, 1
      %vm1693 = vcmp.eq.s32.totalorder %v1685, 1
      %vm1694 = vcmp.eq.s32.totalorder %v1686, 1
      %vm1695 = vcmp.eq.s32.totalorder %v1687, 1
      %vm1696 = vcmp.eq.s32.totalorder %v1688, 1
      %vm1697 = vcmp.eq.s32.totalorder %v1689, 1
      %v1698 = vsel %vm1690, %v1674, 0.0
      %v1699 = vsel %vm1691, %v1675, 0.0
      %v1700 = vsel %vm1692, %v1676, 0.0
      %v1701 = vsel %vm1693, %v1677, 0.0
      %v1702 = vsel %vm1694, %v1678, 0.0
      %v1703 = vsel %vm1695, %v1679, 0.0
      %v1704 = vsel %vm1696, %v1680, 0.0
      %v1705 = vsel %vm1697, %v1681, 0.0
      %s1706 = scalar_lea.vmem %s4, 384
      %v1707 = vld [vmem:[%s1706] sm:$0xff]
      %v1708 = vld [vmem:[%s1706 + $0x8] sm:$0xff]
      %v1709 = vld [vmem:[%s1706 + $0x10] sm:$0xff]
      %v1710 = vld [vmem:[%s1706 + $0x18] sm:$0xff]
      %v1711 = vld [vmem:[%s1706 + $0x20] sm:$0xff]
      %v1712 = vld [vmem:[%s1706 + $0x28] sm:$0xff]
      %v1713 = vld [vmem:[%s1706 + $0x30] sm:$0xff]
      %v1714 = vld [vmem:[%s1706 + $0x38] sm:$0xff]
      %v1715 = vld [vmem:[%s1706 + $0x40] sm:$0xff]
      %v1716 = vld [vmem:[%s1706 + $0x48] sm:$0xff]
      %v1717 = vld [vmem:[%s1706 + $0x50] sm:$0xff]
      %v1718 = vld [vmem:[%s1706 + $0x58] sm:$0xff]
      %v1719 = vld [vmem:[%s1706 + $0x60] sm:$0xff]
      %v1720 = vld [vmem:[%s1706 + $0x68] sm:$0xff]
      %v1721 = vld [vmem:[%s1706 + $0x70] sm:$0xff]
      %v1722 = vld [vmem:[%s1706 + $0x78] sm:$0xff]
      %1723 = vmatprep.subr.mxu0 0.0
      %1724 = vmatpush1.msra.mxu0 %v1707
      %1725 = vmatprep.subr.mxu0 0.0
      %1726 = vmatpush1.msra.mxu0 %v1708
      %1727 = vmatprep.subr.mxu0 0.0
      %1728 = vmatpush1.msra.mxu0 %v1709
      %1729 = vmatprep.subr.mxu0 0.0
      %1730 = vmatpush1.msra.mxu0 %v1710
      %1731 = vmatprep.subr.mxu0 0.0
      %1732 = vmatpush1.msra.mxu0 %v1711
      %1733 = vmatprep.subr.mxu0 0.0
      %1734 = vmatpush1.msra.mxu0 %v1712
      %1735 = vmatprep.subr.mxu0 0.0
      %1736 = vmatpush1.msra.mxu0 %v1713
      %1737 = vmatprep.subr.mxu0 0.0
      %1738 = vmatpush1.msra.mxu0 %v1714
      %1739 = vmatprep.subr.mxu0 0.0
      %1740 = vmatpush1.msra.mxu0 %v1715
      %1741 = vmatprep.subr.mxu0 0.0
      %1742 = vmatpush1.msra.mxu0 %v1716
      %1743 = vmatprep.subr.mxu0 0.0
      %1744 = vmatpush1.msra.mxu0 %v1717
      %1745 = vmatprep.subr.mxu0 0.0
      %1746 = vmatpush1.msra.mxu0 %v1718
      %1747 = vmatprep.subr.mxu0 0.0
      %1748 = vmatpush1.msra.mxu0 %v1719
      %1749 = vmatprep.subr.mxu0 0.0
      %1750 = vmatpush1.msra.mxu0 %v1720
      %1751 = vmatprep.subr.mxu0 0.0
      %1752 = vmatpush1.msra.mxu0 %v1721
      %1753 = vmatprep.subr.mxu0 0.0
      %1754 = vmatpush1.msra.mxu0 %v1722
      %1755 = vmatprep.subr.mxu0 0.0
      %1756 = vmatpush1.msra.mxu0 0.0
      %1757 = vmatprep.subr.mxu0 0.0
      %1758 = vmatpush1.msra.mxu0 0.0
      %1759 = vmatprep.subr.mxu0 0.0
      %1760 = vmatpush1.msra.mxu0 0.0
      %1761 = vmatprep.subr.mxu0 0.0
      %1762 = vmatpush1.msra.mxu0 0.0
      %1763 = vmatprep.subr.mxu0 0.0
      %1764 = vmatpush1.msra.mxu0 0.0
      %1765 = vmatprep.subr.mxu0 0.0
      %1766 = vmatpush1.msra.mxu0 0.0
      %1767 = vmatprep.subr.mxu0 0.0
      %1768 = vmatpush1.msra.mxu0 0.0
      %1769 = vmatprep.subr.mxu0 0.0
      %1770 = vmatpush1.msra.mxu0 0.0
      %1771 = vmatprep.subr.mxu0 0.0
      %1772 = vmatpush1.msra.mxu0 0.0
      %1773 = vmatprep.subr.mxu0 0.0
      %1774 = vmatpush1.msra.mxu0 0.0
      %1775 = vmatprep.subr.mxu0 0.0
      %1776 = vmatpush1.msra.mxu0 0.0
      %1777 = vmatprep.subr.mxu0 0.0
      %1778 = vmatpush1.msra.mxu0 0.0
      %1779 = vmatprep.subr.mxu0 0.0
      %1780 = vmatpush1.msra.mxu0 0.0
      %1781 = vmatprep.subr.mxu0 0.0
      %1782 = vmatpush1.msra.mxu0 0.0
      %1783 = vmatprep.subr.mxu0 0.0
      %1784 = vmatpush1.msra.mxu0 0.0
      %1785 = vmatprep.subr.mxu0 0.0
      %1786 = vmatpush1.msra.mxu0 0.0
      %1787 = vmatprep.mubr.f32.mxu0 0.0
      %1788 = vmatmul.mubr.f32.gmra.mrb[0].mxu0 %v1698
      %v1789 = vpop.f32.mrb[0].mxu0
      %v1790 = vadd.f32 0.0, %v1789
      %v1791 = vpop.f32.mrb[0].mxu0
      %1792 = vmatprep.mubr.f32.mxu0 0.0
      %1793 = vmatmul.mubr.f32.gmra.mrb[0].mxu0 %v1699
      %v1794 = vpop.f32.mrb[0].mxu0
      %v1795 = vadd.f32 0.0, %v1794
      %v1796 = vpop.f32.mrb[0].mxu0
      %1797 = vmatprep.mubr.f32.mxu0 0.0
      %1798 = vmatmul.mubr.f32.gmra.mrb[0].mxu0 %v1700
      %v1799 = vpop.f32.mrb[0].mxu0
      %v1800 = vadd.f32 0.0, %v1799
      %v1801 = vpop.f32.mrb[0].mxu0
      %1802 = vmatprep.mubr.f32.mxu0 0.0
      %1803 = vmatmul.mubr.f32.gmra.mrb[0].mxu0 %v1701
      %v1804 = vpop.f32.mrb[0].mxu0
      %v1805 = vadd.f32 0.0, %v1804
      %v1806 = vpop.f32.mrb[0].mxu0
      %1807 = vmatprep.mubr.f32.mxu0 0.0
      %1808 = vmatmul.mubr.f32.gmra.mrb[0].mxu0 %v1702
      %v1809 = vpop.f32.mrb[0].mxu0
      %v1810 = vadd.f32 0.0, %v1809
      %v1811 = vpop.f32.mrb[0].mxu0
      %1812 = vmatprep.mubr.f32.mxu0 0.0
      %1813 = vmatmul.mubr.f32.gmra.mrb[0].mxu0 %v1703
      %v1814 = vpop.f32.mrb[0].mxu0
      %v1815 = vadd.f32 0.0, %v1814
      %v1816 = vpop.f32.mrb[0].mxu0
      %1817 = vmatprep.mubr.f32.mxu0 0.0
      %1818 = vmatmul.mubr.f32.gmra.mrb[0].mxu0 %v1704
      %v1819 = vpop.f32.mrb[0].mxu0
      %v1820 = vadd.f32 0.0, %v1819
      %v1821 = vpop.f32.mrb[0].mxu0
      %1822 = vmatprep.mubr.f32.mxu0 0.0
      %1823 = vmatmul.mubr.f32.gmra.mrb[0].mxu0 %v1705
      %v1824 = vpop.f32.mrb[0].mxu0
      %v1825 = vadd.f32 0.0, %v1824
      %v1826 = vpop.f32.mrb[0].mxu0
      %1827 = vdwg.mxu0
      %v1828 = vadd.f32 %v1666, %v1790
      %v1829 = vadd.f32 %v1667, %v1795
      %v1830 = vadd.f32 %v1668, %v1800
      %v1831 = vadd.f32 %v1669, %v1805
      %v1832 = vadd.f32 %v1670, %v1810
      %v1833 = vadd.f32 %v1671, %v1815
      %v1834 = vadd.f32 %v1672, %v1820
      %v1835 = vadd.f32 %v1673, %v1825
      %v1836 = vld [vmem:[#allocation2 + $0x10] sm:$0xff]
      %v1837 = vld [vmem:[#allocation2 + $0x18] sm:$0xff]
      %v1838 = vld [vmem:[#allocation2 + $0x20] sm:$0xff]
      %v1839 = vld [vmem:[#allocation2 + $0x28] sm:$0xff]
      %v1840 = vld [vmem:[#allocation2 + $0x30] sm:$0xff]
      %v1841 = vld [vmem:[#allocation2 + $0x38] sm:$0xff]
      %v1842 = vld [vmem:[#allocation2 + $0x40] sm:$0xff]
      %v1843 = vld [vmem:[#allocation2 + $0x48] sm:$0xff]
      %s1844 = scalar_lea.vmem %s4, 512
      %v1845 = vld [vmem:[%s1844] sm:$0xff]
      %v1846 = vld [vmem:[%s1844 + $0x8] sm:$0xff]
      %v1847 = vld [vmem:[%s1844 + $0x10] sm:$0xff]
      %v1848 = vld [vmem:[%s1844 + $0x18] sm:$0xff]
      %v1849 = vld [vmem:[%s1844 + $0x20] sm:$0xff]
      %v1850 = vld [vmem:[%s1844 + $0x28] sm:$0xff]
      %v1851 = vld [vmem:[%s1844 + $0x30] sm:$0xff]
      %v1852 = vld [vmem:[%s1844 + $0x38] sm:$0xff]
      %v1853 = vld [vmem:[%s1844 + $0x40] sm:$0xff]
      %v1854 = vld [vmem:[%s1844 + $0x48] sm:$0xff]
      %v1855 = vld [vmem:[%s1844 + $0x50] sm:$0xff]
      %v1856 = vld [vmem:[%s1844 + $0x58] sm:$0xff]
      %v1857 = vld [vmem:[%s1844 + $0x60] sm:$0xff]
      %v1858 = vld [vmem:[%s1844 + $0x68] sm:$0xff]
      %v1859 = vld [vmem:[%s1844 + $0x70] sm:$0xff]
      %v1860 = vld [vmem:[%s1844 + $0x78] sm:$0xff]
      %1861 = vmatprep.subr.mxu0 0.0
      %1862 = vmatpush1.msra.mxu0 %v1845
      %1863 = vmatprep.subr.mxu0 0.0
      %1864 = vmatpush1.msra.mxu0 %v1846
      %1865 = vmatprep.subr.mxu0 0.0
      %1866 = vmatpush1.msra.mxu0 %v1847
      %1867 = vmatprep.subr.mxu0 0.0
      %1868 = vmatpush1.msra.mxu0 %v1848
      %1869 = vmatprep.subr.mxu0 0.0
      %1870 = vmatpush1.msra.mxu0 %v1849
      %1871 = vmatprep.subr.mxu0 0.0
      %1872 = vmatpush1.msra.mxu0 %v1850
      %1873 = vmatprep.subr.mxu0 0.0
      %1874 = vmatpush1.msra.mxu0 %v1851
      %1875 = vmatprep.subr.mxu0 0.0
      %1876 = vmatpush1.msra.mxu0 %v1852
      %1877 = vmatprep.subr.mxu0 0.0
      %1878 = vmatpush1.msra.mxu0 %v1853
      %1879 = vmatprep.subr.mxu0 0.0
      %1880 = vmatpush1.msra.mxu0 %v1854
      %1881 = vmatprep.subr.mxu0 0.0
      %1882 = vmatpush1.msra.mxu0 %v1855
      %1883 = vmatprep.subr.mxu0 0.0
      %1884 = vmatpush1.msra.mxu0 %v1856
      %1885 = vmatprep.subr.mxu0 0.0
      %1886 = vmatpush1.msra.mxu0 %v1857
      %1887 = vmatprep.subr.mxu0 0.0
      %1888 = vmatpush1.msra.mxu0 %v1858
      %1889 = vmatprep.subr.mxu0 0.0
      %1890 = vmatpush1.msra.mxu0 %v1859
      %1891 = vmatprep.subr.mxu0 0.0
      %1892 = vmatpush1.msra.mxu0 %v1860
      %1893 = vmatprep.subr.mxu0 0.0
      %1894 = vmatpush1.msra.mxu0 0.0
      %1895 = vmatprep.subr.mxu0 0.0
      %1896 = vmatpush1.msra.mxu0 0.0
      %1897 = vmatprep.subr.mxu0 0.0
      %1898 = vmatpush1.msra.mxu0 0.0
      %1899 = vmatprep.subr.mxu0 0.0
      %1900 = vmatpush1.msra.mxu0 0.0
      %1901 = vmatprep.subr.mxu0 0.0
      %1902 = vmatpush1.msra.mxu0 0.0
      %1903 = vmatprep.subr.mxu0 0.0
      %1904 = vmatpush1.msra.mxu0 0.0
      %1905 = vmatprep.subr.mxu0 0.0
      %1906 = vmatpush1.msra.mxu0 0.0
      %1907 = vmatprep.subr.mxu0 0.0
      %1908 = vmatpush1.msra.mxu0 0.0
      %1909 = vmatprep.subr.mxu0 0.0
      %1910 = vmatpush1.msra.mxu0 0.0
      %1911 = vmatprep.subr.mxu0 0.0
      %1912 = vmatpush1.msra.mxu0 0.0
      %1913 = vmatprep.subr.mxu0 0.0
      %1914 = vmatpush1.msra.mxu0 0.0
      %1915 = vmatprep.subr.mxu0 0.0
      %1916 = vmatpush1.msra.mxu0 0.0
      %1917 = vmatprep.subr.mxu0 0.0
      %1918 = vmatpush1.msra.mxu0 0.0
      %1919 = vmatprep.subr.mxu0 0.0
      %1920 = vmatpush1.msra.mxu0 0.0
      %1921 = vmatprep.subr.mxu0 0.0
      %1922 = vmatpush1.msra.mxu0 0.0
      %1923 = vmatprep.subr.mxu0 0.0
      %1924 = vmatpush1.msra.mxu0 0.0
      %1925 = vmatprep.mubr.f32.mxu0 0.0
      %1926 = vmatmul.mubr.f32.gmra.mrb[0].mxu0 %v1836
      %v1927 = vpop.f32.mrb[0].mxu0
      %v1928 = vadd.f32 0.0, %v1927
      %v1929 = vpop.f32.mrb[0].mxu0
      %1930 = vmatprep.mubr.f32.mxu0 0.0
      %1931 = vmatmul.mubr.f32.gmra.mrb[0].mxu0 %v1837
      %v1932 = vpop.f32.mrb[0].mxu0
      %v1933 = vadd.f32 0.0, %v1932
      %v1934 = vpop.f32.mrb[0].mxu0
      %1935 = vmatprep.mubr.f32.mxu0 0.0
      %1936 = vmatmul.mubr.f32.gmra.mrb[0].mxu0 %v1838
      %v1937 = vpop.f32.mrb[0].mxu0
      %v1938 = vadd.f32 0.0, %v1937
      %v1939 = vpop.f32.mrb[0].mxu0
      %1940 = vmatprep.mubr.f32.mxu0 0.0
      %1941 = vmatmul.mubr.f32.gmra.mrb[0].mxu0 %v1839
      %v1942 = vpop.f32.mrb[0].mxu0
      %v1943 = vadd.f32 0.0, %v1942
      %v1944 = vpop.f32.mrb[0].mxu0
      %1945 = vmatprep.mubr.f32.mxu0 0.0
      %1946 = vmatmul.mubr.f32.gmra.mrb[0].mxu0 %v1840
      %v1947 = vpop.f32.mrb[0].mxu0
      %v1948 = vadd.f32 0.0, %v1947
      %v1949 = vpop.f32.mrb[0].mxu0
      %1950 = vmatprep.mubr.f32.mxu0 0.0
      %1951 = vmatmul.mubr.f32.gmra.mrb[0].mxu0 %v1841
      %v1952 = vpop.f32.mrb[0].mxu0
      %v1953 = vadd.f32 0.0, %v1952
      %v1954 = vpop.f32.mrb[0].mxu0
      %1955 = vmatprep.mubr.f32.mxu0 0.0
      %1956 = vmatmul.mubr.f32.gmra.mrb[0].mxu0 %v1842
      %v1957 = vpop.f32.mrb[0].mxu0
      %v1958 = vadd.f32 0.0, %v1957
      %v1959 = vpop.f32.mrb[0].mxu0
      %1960 = vmatprep.mubr.f32.mxu0 0.0
      %1961 = vmatmul.mubr.f32.gmra.mrb[0].mxu0 %v1843
      %v1962 = vpop.f32.mrb[0].mxu0
      %v1963 = vadd.f32 0.0, %v1962
      %v1964 = vpop.f32.mrb[0].mxu0
      %1965 = vdwg.mxu0
      %v1966 = vadd.f32 %v1828, %v1928
      %v1967 = vadd.f32 %v1829, %v1933
      %v1968 = vadd.f32 %v1830, %v1938
      %v1969 = vadd.f32 %v1831, %v1943
      %v1970 = vadd.f32 %v1832, %v1948
      %v1971 = vadd.f32 %v1833, %v1953
      %v1972 = vadd.f32 %v1834, %v1958
      %v1973 = vadd.f32 %v1835, %v1963
      %v1974 = vld [vmem:[#allocation3 + $0x10] sm:$0xff]
      %v1975 = vld [vmem:[#allocation3 + $0x18] sm:$0xff]
      %v1976 = vld [vmem:[#allocation3 + $0x20] sm:$0xff]
      %v1977 = vld [vmem:[#allocation3 + $0x28] sm:$0xff]
      %v1978 = vld [vmem:[#allocation3 + $0x30] sm:$0xff]
      %v1979 = vld [vmem:[#allocation3 + $0x38] sm:$0xff]
      %v1980 = vld [vmem:[#allocation3 + $0x40] sm:$0xff]
      %v1981 = vld [vmem:[#allocation3 + $0x48] sm:$0xff]
      %s1982 = scalar_lea.vmem %s4, 640
      %v1983 = vld [vmem:[%s1982] sm:$0xff]
      %v1984 = vld [vmem:[%s1982 + $0x8] sm:$0xff]
      %v1985 = vld [vmem:[%s1982 + $0x10] sm:$0xff]
      %v1986 = vld [vmem:[%s1982 + $0x18] sm:$0xff]
      %v1987 = vld [vmem:[%s1982 + $0x20] sm:$0xff]
      %v1988 = vld [vmem:[%s1982 + $0x28] sm:$0xff]
      %v1989 = vld [vmem:[%s1982 + $0x30] sm:$0xff]
      %v1990 = vld [vmem:[%s1982 + $0x38] sm:$0xff]
      %v1991 = vld [vmem:[%s1982 + $0x40] sm:$0xff]
      %v1992 = vld [vmem:[%s1982 + $0x48] sm:$0xff]
      %v1993 = vld [vmem:[%s1982 + $0x50] sm:$0xff]
      %v1994 = vld [vmem:[%s1982 + $0x58] sm:$0xff]
      %v1995 = vld [vmem:[%s1982 + $0x60] sm:$0xff]
      %v1996 = vld [vmem:[%s1982 + $0x68] sm:$0xff]
      %v1997 = vld [vmem:[%s1982 + $0x70] sm:$0xff]
      %v1998 = vld [vmem:[%s1982 + $0x78] sm:$0xff]
      %1999 = vmatprep.subr.mxu0 0.0
      %2000 = vmatpush1.msra.mxu0 %v1983
      %2001 = vmatprep.subr.mxu0 0.0
      %2002 = vmatpush1.msra.mxu0 %v1984
      %2003 = vmatprep.subr.mxu0 0.0
      %2004 = vmatpush1.msra.mxu0 %v1985
      %2005 = vmatprep.subr.mxu0 0.0
      %2006 = vmatpush1.msra.mxu0 %v1986
      %2007 = vmatprep.subr.mxu0 0.0
      %2008 = vmatpush1.msra.mxu0 %v1987
      %2009 = vmatprep.subr.mxu0 0.0
      %2010 = vmatpush1.msra.mxu0 %v1988
      %2011 = vmatprep.subr.mxu0 0.0
      %2012 = vmatpush1.msra.mxu0 %v1989
      %2013 = vmatprep.subr.mxu0 0.0
      %2014 = vmatpush1.msra.mxu0 %v1990
      %2015 = vmatprep.subr.mxu0 0.0
      %2016 = vmatpush1.msra.mxu0 %v1991
      %2017 = vmatprep.subr.mxu0 0.0
      %2018 = vmatpush1.msra.mxu0 %v1992
      %2019 = vmatprep.subr.mxu0 0.0
      %2020 = vmatpush1.msra.mxu0 %v1993
      %2021 = vmatprep.subr.mxu0 0.0
      %2022 = vmatpush1.msra.mxu0 %v1994
      %2023 = vmatprep.subr.mxu0 0.0
      %2024 = vmatpush1.msra.mxu0 %v1995
      %2025 = vmatprep.subr.mxu0 0.0
      %2026 = vmatpush1.msra.mxu0 %v1996
      %2027 = vmatprep.subr.mxu0 0.0
      %2028 = vmatpush1.msra.mxu0 %v1997
      %2029 = vmatprep.subr.mxu0 0.0
      %2030 = vmatpush1.msra.mxu0 %v1998
      %2031 = vmatprep.subr.mxu0 0.0
      %2032 = vmatpush1.msra.mxu0 0.0
      %2033 = vmatprep.subr.mxu0 0.0
      %2034 = vmatpush1.msra.mxu0 0.0
      %2035 = vmatprep.subr.mxu0 0.0
      %2036 = vmatpush1.msra.mxu0 0.0
      %2037 = vmatprep.subr.mxu0 0.0
      %2038 = vmatpush1.msra.mxu0 0.0
      %2039 = vmatprep.subr.mxu0 0.0
      %2040 = vmatpush1.msra.mxu0 0.0
      %2041 = vmatprep.subr.mxu0 0.0
      %2042 = vmatpush1.msra.mxu0 0.0
      %2043 = vmatprep.subr.mxu0 0.0
      %2044 = vmatpush1.msra.mxu0 0.0
      %2045 = vmatprep.subr.mxu0 0.0
      %2046 = vmatpush1.msra.mxu0 0.0
      %2047 = vmatprep.subr.mxu0 0.0
      %2048 = vmatpush1.msra.mxu0 0.0
      %2049 = vmatprep.subr.mxu0 0.0
      %2050 = vmatpush1.msra.mxu0 0.0
      %2051 = vmatprep.subr.mxu0 0.0
      %2052 = vmatpush1.msra.mxu0 0.0
      %2053 = vmatprep.subr.mxu0 0.0
      %2054 = vmatpush1.msra.mxu0 0.0
      %2055 = vmatprep.subr.mxu0 0.0
      %2056 = vmatpush1.msra.mxu0 0.0
      %2057 = vmatprep.subr.mxu0 0.0
      %2058 = vmatpush1.msra.mxu0 0.0
      %2059 = vmatprep.subr.mxu0 0.0
      %2060 = vmatpush1.msra.mxu0 0.0
      %2061 = vmatprep.subr.mxu0 0.0
      %2062 = vmatpush1.msra.mxu0 0.0
      %2063 = vmatprep.mubr.f32.mxu0 0.0
      %2064 = vmatmul.mubr.f32.gmra.mrb[0].mxu0 %v1974
      %v2065 = vpop.f32.mrb[0].mxu0
      %v2066 = vadd.f32 0.0, %v2065
      %v2067 = vpop.f32.mrb[0].mxu0
      %2068 = vmatprep.mubr.f32.mxu0 0.0
      %2069 = vmatmul.mubr.f32.gmra.mrb[0].mxu0 %v1975
      %v2070 = vpop.f32.mrb[0].mxu0
      %v2071 = vadd.f32 0.0, %v2070
      %v2072 = vpop.f32.mrb[0].mxu0
      %2073 = vmatprep.mubr.f32.mxu0 0.0
      %2074 = vmatmul.mubr.f32.gmra.mrb[0].mxu0 %v1976
      %v2075 = vpop.f32.mrb[0].mxu0
      %v2076 = vadd.f32 0.0, %v2075
      %v2077 = vpop.f32.mrb[0].mxu0
      %2078 = vmatprep.mubr.f32.mxu0 0.0
      %2079 = vmatmul.mubr.f32.gmra.mrb[0].mxu0 %v1977
      %v2080 = vpop.f32.mrb[0].mxu0
      %v2081 = vadd.f32 0.0, %v2080
      %v2082 = vpop.f32.mrb[0].mxu0
      %2083 = vmatprep.mubr.f32.mxu0 0.0
      %2084 = vmatmul.mubr.f32.gmra.mrb[0].mxu0 %v1978
      %v2085 = vpop.f32.mrb[0].mxu0
      %v2086 = vadd.f32 0.0, %v2085
      %v2087 = vpop.f32.mrb[0].mxu0
      %2088 = vmatprep.mubr.f32.mxu0 0.0
      %2089 = vmatmul.mubr.f32.gmra.mrb[0].mxu0 %v1979
      %v2090 = vpop.f32.mrb[0].mxu0
      %v2091 = vadd.f32 0.0, %v2090
      %v2092 = vpop.f32.mrb[0].mxu0
      %2093 = vmatprep.mubr.f32.mxu0 0.0
      %2094 = vmatmul.mubr.f32.gmra.mrb[0].mxu0 %v1980
      %v2095 = vpop.f32.mrb[0].mxu0
      %v2096 = vadd.f32 0.0, %v2095
      %v2097 = vpop.f32.mrb[0].mxu0
      %2098 = vmatprep.mubr.f32.mxu0 0.0
      %2099 = vmatmul.mubr.f32.gmra.mrb[0].mxu0 %v1981
      %v2100 = vpop.f32.mrb[0].mxu0
      %v2101 = vadd.f32 0.0, %v2100
      %v2102 = vpop.f32.mrb[0].mxu0
      %2103 = vdwg.mxu0
      %v2104 = vadd.f32 %v1966, %v2066
      %v2105 = vadd.f32 %v1967, %v2071
      %v2106 = vadd.f32 %v1968, %v2076
      %v2107 = vadd.f32 %v1969, %v2081
      %v2108 = vadd.f32 %v1970, %v2086
      %v2109 = vadd.f32 %v1971, %v2091
      %v2110 = vadd.f32 %v1972, %v2096
      %v2111 = vadd.f32 %v1973, %v2101
      %v2112 = vld [vmem:[#allocation5 + $0xf] sm:$0xff]
      %v2113 = vld [vmem:[#allocation5 + $0x17] sm:$0xff]
      %v2114 = vld [vmem:[#allocation5 + $0x1f] sm:$0xff]
      %v2115 = vld [vmem:[#allocation5 + $0x27] sm:$0xff]
      %v2116 = vld [vmem:[#allocation5 + $0x2f] sm:$0xff]
      %v2117 = vld [vmem:[#allocation5 + $0x37] sm:$0xff]
      %v2118 = vld [vmem:[#allocation5 + $0x3f] sm:$0xff]
      %v2119 = vld [vmem:[#allocation5 + $0x47] sm:$0xff]
      %v2120 = vsel %vm1690, %v2112, 0.0
      %v2121 = vsel %vm1691, %v2113, 0.0
      %v2122 = vsel %vm1692, %v2114, 0.0
      %v2123 = vsel %vm1693, %v2115, 0.0
      %v2124 = vsel %vm1694, %v2116, 0.0
      %v2125 = vsel %vm1695, %v2117, 0.0
      %v2126 = vsel %vm1696, %v2118, 0.0
      %v2127 = vsel %vm1697, %v2119, 0.0
      %s2128 = scalar_lea.vmem %s4, 768
      %v2129 = vld [vmem:[%s2128] sm:$0xff]
      %v2130 = vld [vmem:[%s2128 + $0x8] sm:$0xff]
      %v2131 = vld [vmem:[%s2128 + $0x10] sm:$0xff]
      %v2132 = vld [vmem:[%s2128 + $0x18] sm:$0xff]
      %v2133 = vld [vmem:[%s2128 + $0x20] sm:$0xff]
      %v2134 = vld [vmem:[%s2128 + $0x28] sm:$0xff]
      %v2135 = vld [vmem:[%s2128 + $0x30] sm:$0xff]
      %v2136 = vld [vmem:[%s2128 + $0x38] sm:$0xff]
      %v2137 = vld [vmem:[%s2128 + $0x40] sm:$0xff]
      %v2138 = vld [vmem:[%s2128 + $0x48] sm:$0xff]
      %v2139 = vld [vmem:[%s2128 + $0x50] sm:$0xff]
      %v2140 = vld [vmem:[%s2128 + $0x58] sm:$0xff]
      %v2141 = vld [vmem:[%s2128 + $0x60] sm:$0xff]
      %v2142 = vld [vmem:[%s2128 + $0x68] sm:$0xff]
      %v2143 = vld [vmem:[%s2128 + $0x70] sm:$0xff]
      %v2144 = vld [vmem:[%s2128 + $0x78] sm:$0xff]
      %2145 = vmatprep.subr.mxu0 0.0
      %2146 = vmatpush1.msra.mxu0 %v2129
      %2147 = vmatprep.subr.mxu0 0.0
      %2148 = vmatpush1.msra.mxu0 %v2130
      %2149 = vmatprep.subr.mxu0 0.0
      %2150 = vmatpush1.msra.mxu0 %v2131
      %2151 = vmatprep.subr.mxu0 0.0
      %2152 = vmatpush1.msra.mxu0 %v2132
      %2153 = vmatprep.subr.mxu0 0.0
      %2154 = vmatpush1.msra.mxu0 %v2133
      %2155 = vmatprep.subr.mxu0 0.0
      %2156 = vmatpush1.msra.mxu0 %v2134
      %2157 = vmatprep.subr.mxu0 0.0
      %2158 = vmatpush1.msra.mxu0 %v2135
      %2159 = vmatprep.subr.mxu0 0.0
      %2160 = vmatpush1.msra.mxu0 %v2136
      %2161 = vmatprep.subr.mxu0 0.0
      %2162 = vmatpush1.msra.mxu0 %v2137
      %2163 = vmatprep.subr.mxu0 0.0
      %2164 = vmatpush1.msra.mxu0 %v2138
      %2165 = vmatprep.subr.mxu0 0.0
      %2166 = vmatpush1.msra.mxu0 %v2139
      %2167 = vmatprep.subr.mxu0 0.0
      %2168 = vmatpush1.msra.mxu0 %v2140
      %2169 = vmatprep.subr.mxu0 0.0
      %2170 = vmatpush1.msra.mxu0 %v2141
      %2171 = vmatprep.subr.mxu0 0.0
      %2172 = vmatpush1.msra.mxu0 %v2142
      %2173 = vmatprep.subr.mxu0 0.0
      %2174 = vmatpush1.msra.mxu0 %v2143
      %2175 = vmatprep.subr.mxu0 0.0
      %2176 = vmatpush1.msra.mxu0 %v2144
      %2177 = vmatprep.subr.mxu0 0.0
      %2178 = vmatpush1.msra.mxu0 0.0
      %2179 = vmatprep.subr.mxu0 0.0
      %2180 = vmatpush1.msra.mxu0 0.0
      %2181 = vmatprep.subr.mxu0 0.0
      %2182 = vmatpush1.msra.mxu0 0.0
      %2183 = vmatprep.subr.mxu0 0.0
      %2184 = vmatpush1.msra.mxu0 0.0
      %2185 = vmatprep.subr.mxu0 0.0
      %2186 = vmatpush1.msra.mxu0 0.0
      %2187 = vmatprep.subr.mxu0 0.0
      %2188 = vmatpush1.msra.mxu0 0.0
      %2189 = vmatprep.subr.mxu0 0.0
      %2190 = vmatpush1.msra.mxu0 0.0
      %2191 = vmatprep.subr.mxu0 0.0
      %2192 = vmatpush1.msra.mxu0 0.0
      %2193 = vmatprep.subr.mxu0 0.0
      %2194 = vmatpush1.msra.mxu0 0.0
      %2195 = vmatprep.subr.mxu0 0.0
      %2196 = vmatpush1.msra.mxu0 0.0
      %2197 = vmatprep.subr.mxu0 0.0
      %2198 = vmatpush1.msra.mxu0 0.0
      %2199 = vmatprep.subr.mxu0 0.0
      %2200 = vmatpush1.msra.mxu0 0.0
      %2201 = vmatprep.subr.mxu0 0.0
      %2202 = vmatpush1.msra.mxu0 0.0
      %2203 = vmatprep.subr.mxu0 0.0
      %2204 = vmatpush1.msra.mxu0 0.0
      %2205 = vmatprep.subr.mxu0 0.0
      %2206 = vmatpush1.msra.mxu0 0.0
      %2207 = vmatprep.subr.mxu0 0.0
      %2208 = vmatpush1.msra.mxu0 0.0
      %2209 = vmatprep.mubr.f32.mxu0 0.0
      %2210 = vmatmul.mubr.f32.gmra.mrb[0].mxu0 %v2120
      %v2211 = vpop.f32.mrb[0].mxu0
      %v2212 = vadd.f32 0.0, %v2211
      %v2213 = vpop.f32.mrb[0].mxu0
      %2214 = vmatprep.mubr.f32.mxu0 0.0
      %2215 = vmatmul.mubr.f32.gmra.mrb[0].mxu0 %v2121
      %v2216 = vpop.f32.mrb[0].mxu0
      %v2217 = vadd.f32 0.0, %v2216
      %v2218 = vpop.f32.mrb[0].mxu0
      %2219 = vmatprep.mubr.f32.mxu0 0.0
      %2220 = vmatmul.mubr.f32.gmra.mrb[0].mxu0 %v2122
      %v2221 = vpop.f32.mrb[0].mxu0
      %v2222 = vadd.f32 0.0, %v2221
      %v2223 = vpop.f32.mrb[0].mxu0
      %2224 = vmatprep.mubr.f32.mxu0 0.0
      %2225 = vmatmul.mubr.f32.gmra.mrb[0].mxu0 %v2123
      %v2226 = vpop.f32.mrb[0].mxu0
      %v2227 = vadd.f32 0.0, %v2226
      %v2228 = vpop.f32.mrb[0].mxu0
      %2229 = vmatprep.mubr.f32.mxu0 0.0
      %2230 = vmatmul.mubr.f32.gmra.mrb[0].mxu0 %v2124
      %v2231 = vpop.f32.mrb[0].mxu0
      %v2232 = vadd.f32 0.0, %v2231
      %v2233 = vpop.f32.mrb[0].mxu0
      %2234 = vmatprep.mubr.f32.mxu0 0.0
      %2235 = vmatmul.mubr.f32.gmra.mrb[0].mxu0 %v2125
      %v2236 = vpop.f32.mrb[0].mxu0
      %v2237 = vadd.f32 0.0, %v2236
      %v2238 = vpop.f32.mrb[0].mxu0
      %2239 = vmatprep.mubr.f32.mxu0 0.0
      %2240 = vmatmul.mubr.f32.gmra.mrb[0].mxu0 %v2126
      %v2241 = vpop.f32.mrb[0].mxu0
      %v2242 = vadd.f32 0.0, %v2241
      %v2243 = vpop.f32.mrb[0].mxu0
      %2244 = vmatprep.mubr.f32.mxu0 0.0
      %2245 = vmatmul.mubr.f32.gmra.mrb[0].mxu0 %v2127
      %v2246 = vpop.f32.mrb[0].mxu0
      %v2247 = vadd.f32 0.0, %v2246
      %v2248 = vpop.f32.mrb[0].mxu0
      %2249 = vdwg.mxu0
      %v2250 = vadd.f32 %v2104, %v2212
      %v2251 = vadd.f32 %v2105, %v2217
      %v2252 = vadd.f32 %v2106, %v2222
      %v2253 = vadd.f32 %v2107, %v2227
      %v2254 = vadd.f32 %v2108, %v2232
      %v2255 = vadd.f32 %v2109, %v2237
      %v2256 = vadd.f32 %v2110, %v2242
      %v2257 = vadd.f32 %v2111, %v2247
      %v2258 = vld [vmem:[#allocation4 + $0x10] sm:$0xff]
      %v2259 = vld [vmem:[#allocation4 + $0x18] sm:$0xff]
      %v2260 = vld [vmem:[#allocation4 + $0x20] sm:$0xff]
      %v2261 = vld [vmem:[#allocation4 + $0x28] sm:$0xff]
      %v2262 = vld [vmem:[#allocation4 + $0x30] sm:$0xff]
      %v2263 = vld [vmem:[#allocation4 + $0x38] sm:$0xff]
      %v2264 = vld [vmem:[#allocation4 + $0x40] sm:$0xff]
      %v2265 = vld [vmem:[#allocation4 + $0x48] sm:$0xff]
      %s2266 = scalar_lea.vmem %s4, 896
      %v2267 = vld [vmem:[%s2266] sm:$0xff]
      %v2268 = vld [vmem:[%s2266 + $0x8] sm:$0xff]
      %v2269 = vld [vmem:[%s2266 + $0x10] sm:$0xff]
      %v2270 = vld [vmem:[%s2266 + $0x18] sm:$0xff]
      %v2271 = vld [vmem:[%s2266 + $0x20] sm:$0xff]
      %v2272 = vld [vmem:[%s2266 + $0x28] sm:$0xff]
      %v2273 = vld [vmem:[%s2266 + $0x30] sm:$0xff]
      %v2274 = vld [vmem:[%s2266 + $0x38] sm:$0xff]
      %v2275 = vld [vmem:[%s2266 + $0x40] sm:$0xff]
      %v2276 = vld [vmem:[%s2266 + $0x48] sm:$0xff]
      %v2277 = vld [vmem:[%s2266 + $0x50] sm:$0xff]
      %v2278 = vld [vmem:[%s2266 + $0x58] sm:$0xff]
      %v2279 = vld [vmem:[%s2266 + $0x60] sm:$0xff]
      %v2280 = vld [vmem:[%s2266 + $0x68] sm:$0xff]
      %v2281 = vld [vmem:[%s2266 + $0x70] sm:$0xff]
      %v2282 = vld [vmem:[%s2266 + $0x78] sm:$0xff]
      %2283 = vmatprep.subr.mxu0 0.0
      %2284 = vmatpush1.msra.mxu0 %v2267
      %2285 = vmatprep.subr.mxu0 0.0
      %2286 = vmatpush1.msra.mxu0 %v2268
      %2287 = vmatprep.subr.mxu0 0.0
      %2288 = vmatpush1.msra.mxu0 %v2269
      %2289 = vmatprep.subr.mxu0 0.0
      %2290 = vmatpush1.msra.mxu0 %v2270
      %2291 = vmatprep.subr.mxu0 0.0
      %2292 = vmatpush1.msra.mxu0 %v2271
      %2293 = vmatprep.subr.mxu0 0.0
      %2294 = vmatpush1.msra.mxu0 %v2272
      %2295 = vmatprep.subr.mxu0 0.0
      %2296 = vmatpush1.msra.mxu0 %v2273
      %2297 = vmatprep.subr.mxu0 0.0
      %2298 = vmatpush1.msra.mxu0 %v2274
      %2299 = vmatprep.subr.mxu0 0.0
      %2300 = vmatpush1.msra.mxu0 %v2275
      %2301 = vmatprep.subr.mxu0 0.0
      %2302 = vmatpush1.msra.mxu0 %v2276
      %2303 = vmatprep.subr.mxu0 0.0
      %2304 = vmatpush1.msra.mxu0 %v2277
      %2305 = vmatprep.subr.mxu0 0.0
      %2306 = vmatpush1.msra.mxu0 %v2278
      %2307 = vmatprep.subr.mxu0 0.0
      %2308 = vmatpush1.msra.mxu0 %v2279
      %2309 = vmatprep.subr.mxu0 0.0
      %2310 = vmatpush1.msra.mxu0 %v2280
      %2311 = vmatprep.subr.mxu0 0.0
      %2312 = vmatpush1.msra.mxu0 %v2281
      %2313 = vmatprep.subr.mxu0 0.0
      %2314 = vmatpush1.msra.mxu0 %v2282
      %2315 = vmatprep.subr.mxu0 0.0
      %2316 = vmatpush1.msra.mxu0 0.0
      %2317 = vmatprep.subr.mxu0 0.0
      %2318 = vmatpush1.msra.mxu0 0.0
      %2319 = vmatprep.subr.mxu0 0.0
      %2320 = vmatpush1.msra.mxu0 0.0
      %2321 = vmatprep.subr.mxu0 0.0
      %2322 = vmatpush1.msra.mxu0 0.0
      %2323 = vmatprep.subr.mxu0 0.0
      %2324 = vmatpush1.msra.mxu0 0.0
      %2325 = vmatprep.subr.mxu0 0.0
      %2326 = vmatpush1.msra.mxu0 0.0
      %2327 = vmatprep.subr.mxu0 0.0
      %2328 = vmatpush1.msra.mxu0 0.0
      %2329 = vmatprep.subr.mxu0 0.0
      %2330 = vmatpush1.msra.mxu0 0.0
      %2331 = vmatprep.subr.mxu0 0.0
      %2332 = vmatpush1.msra.mxu0 0.0
      %2333 = vmatprep.subr.mxu0 0.0
      %2334 = vmatpush1.msra.mxu0 0.0
      %2335 = vmatprep.subr.mxu0 0.0
      %2336 = vmatpush1.msra.mxu0 0.0
      %2337 = vmatprep.subr.mxu0 0.0
      %2338 = vmatpush1.msra.mxu0 0.0
      %2339 = vmatprep.subr.mxu0 0.0
      %2340 = vmatpush1.msra.mxu0 0.0
      %2341 = vmatprep.subr.mxu0 0.0
      %2342 = vmatpush1.msra.mxu0 0.0
      %2343 = vmatprep.subr.mxu0 0.0
      %2344 = vmatpush1.msra.mxu0 0.0
      %2345 = vmatprep.subr.mxu0 0.0
      %2346 = vmatpush1.msra.mxu0 0.0
      %2347 = vmatprep.mubr.f32.mxu0 0.0
      %2348 = vmatmul.mubr.f32.gmra.mrb[0].mxu0 %v2258
      %v2349 = vpop.f32.mrb[0].mxu0
      %v2350 = vadd.f32 0.0, %v2349
      %v2351 = vpop.f32.mrb[0].mxu0
      %2352 = vmatprep.mubr.f32.mxu0 0.0
      %2353 = vmatmul.mubr.f32.gmra.mrb[0].mxu0 %v2259
      %v2354 = vpop.f32.mrb[0].mxu0
      %v2355 = vadd.f32 0.0, %v2354
      %v2356 = vpop.f32.mrb[0].mxu0
      %2357 = vmatprep.mubr.f32.mxu0 0.0
      %2358 = vmatmul.mubr.f32.gmra.mrb[0].mxu0 %v2260
      %v2359 = vpop.f32.mrb[0].mxu0
      %v2360 = vadd.f32 0.0, %v2359
      %v2361 = vpop.f32.mrb[0].mxu0
      %2362 = vmatprep.mubr.f32.mxu0 0.0
      %2363 = vmatmul.mubr.f32.gmra.mrb[0].mxu0 %v2261
      %v2364 = vpop.f32.mrb[0].mxu0
      %v2365 = vadd.f32 0.0, %v2364
      %v2366 = vpop.f32.mrb[0].mxu0
      %2367 = vmatprep.mubr.f32.mxu0 0.0
      %2368 = vmatmul.mubr.f32.gmra.mrb[0].mxu0 %v2262
      %v2369 = vpop.f32.mrb[0].mxu0
      %v2370 = vadd.f32 0.0, %v2369
      %v2371 = vpop.f32.mrb[0].mxu0
      %2372 = vmatprep.mubr.f32.mxu0 0.0
      %2373 = vmatmul.mubr.f32.gmra.mrb[0].mxu0 %v2263
      %v2374 = vpop.f32.mrb[0].mxu0
      %v2375 = vadd.f32 0.0, %v2374
      %v2376 = vpop.f32.mrb[0].mxu0
      %2377 = vmatprep.mubr.f32.mxu0 0.0
      %2378 = vmatmul.mubr.f32.gmra.mrb[0].mxu0 %v2264
      %v2379 = vpop.f32.mrb[0].mxu0
      %v2380 = vadd.f32 0.0, %v2379
      %v2381 = vpop.f32.mrb[0].mxu0
      %2382 = vmatprep.mubr.f32.mxu0 0.0
      %2383 = vmatmul.mubr.f32.gmra.mrb[0].mxu0 %v2265
      %v2384 = vpop.f32.mrb[0].mxu0
      %v2385 = vadd.f32 0.0, %v2384
      %v2386 = vpop.f32.mrb[0].mxu0
      %2387 = vdwg.mxu0
      %v2388 = vadd.f32 %v2250, %v2350
      %v2389 = vadd.f32 %v2251, %v2355
      %v2390 = vadd.f32 %v2252, %v2360
      %v2391 = vadd.f32 %v2253, %v2365
      %v2392 = vadd.f32 %v2254, %v2370
      %v2393 = vadd.f32 %v2255, %v2375
      %v2394 = vadd.f32 %v2256, %v2380
      %v2395 = vadd.f32 %v2257, %v2385
      %v2396 = vld [vmem:[#allocation5 + $0x10] sm:$0xff]
      %v2397 = vld [vmem:[#allocation5 + $0x18] sm:$0xff]
      %v2398 = vld [vmem:[#allocation5 + $0x20] sm:$0xff]
      %v2399 = vld [vmem:[#allocation5 + $0x28] sm:$0xff]
      %v2400 = vld [vmem:[#allocation5 + $0x30] sm:$0xff]
      %v2401 = vld [vmem:[#allocation5 + $0x38] sm:$0xff]
      %v2402 = vld [vmem:[#allocation5 + $0x40] sm:$0xff]
      %v2403 = vld [vmem:[#allocation5 + $0x48] sm:$0xff]
      %s2404 = scalar_lea.vmem %s4, 1024
      %v2405 = vld [vmem:[%s2404] sm:$0xff]
      %v2406 = vld [vmem:[%s2404 + $0x8] sm:$0xff]
      %v2407 = vld [vmem:[%s2404 + $0x10] sm:$0xff]
      %v2408 = vld [vmem:[%s2404 + $0x18] sm:$0xff]
      %v2409 = vld [vmem:[%s2404 + $0x20] sm:$0xff]
      %v2410 = vld [vmem:[%s2404 + $0x28] sm:$0xff]
      %v2411 = vld [vmem:[%s2404 + $0x30] sm:$0xff]
      %v2412 = vld [vmem:[%s2404 + $0x38] sm:$0xff]
      %v2413 = vld [vmem:[%s2404 + $0x40] sm:$0xff]
      %v2414 = vld [vmem:[%s2404 + $0x48] sm:$0xff]
      %v2415 = vld [vmem:[%s2404 + $0x50] sm:$0xff]
      %v2416 = vld [vmem:[%s2404 + $0x58] sm:$0xff]
      %v2417 = vld [vmem:[%s2404 + $0x60] sm:$0xff]
      %v2418 = vld [vmem:[%s2404 + $0x68] sm:$0xff]
      %v2419 = vld [vmem:[%s2404 + $0x70] sm:$0xff]
      %v2420 = vld [vmem:[%s2404 + $0x78] sm:$0xff]
      %2421 = vmatprep.subr.mxu0 0.0
      %2422 = vmatpush1.msra.mxu0 %v2405
      %2423 = vmatprep.subr.mxu0 0.0
      %2424 = vmatpush1.msra.mxu0 %v2406
      %2425 = vmatprep.subr.mxu0 0.0
      %2426 = vmatpush1.msra.mxu0 %v2407
      %2427 = vmatprep.subr.mxu0 0.0
      %2428 = vmatpush1.msra.mxu0 %v2408
      %2429 = vmatprep.subr.mxu0 0.0
      %2430 = vmatpush1.msra.mxu0 %v2409
      %2431 = vmatprep.subr.mxu0 0.0
      %2432 = vmatpush1.msra.mxu0 %v2410
      %2433 = vmatprep.subr.mxu0 0.0
      %2434 = vmatpush1.msra.mxu0 %v2411
      %2435 = vmatprep.subr.mxu0 0.0
      %2436 = vmatpush1.msra.mxu0 %v2412
      %2437 = vmatprep.subr.mxu0 0.0
      %2438 = vmatpush1.msra.mxu0 %v2413
      %2439 = vmatprep.subr.mxu0 0.0
      %2440 = vmatpush1.msra.mxu0 %v2414
      %2441 = vmatprep.subr.mxu0 0.0
      %2442 = vmatpush1.msra.mxu0 %v2415
      %2443 = vmatprep.subr.mxu0 0.0
      %2444 = vmatpush1.msra.mxu0 %v2416
      %2445 = vmatprep.subr.mxu0 0.0
      %2446 = vmatpush1.msra.mxu0 %v2417
      %2447 = vmatprep.subr.mxu0 0.0
      %2448 = vmatpush1.msra.mxu0 %v2418
      %2449 = vmatprep.subr.mxu0 0.0
      %2450 = vmatpush1.msra.mxu0 %v2419
      %2451 = vmatprep.subr.mxu0 0.0
      %2452 = vmatpush1.msra.mxu0 %v2420
      %2453 = vmatprep.subr.mxu0 0.0
      %2454 = vmatpush1.msra.mxu0 0.0
      %2455 = vmatprep.subr.mxu0 0.0
      %2456 = vmatpush1.msra.mxu0 0.0
      %2457 = vmatprep.subr.mxu0 0.0
      %2458 = vmatpush1.msra.mxu0 0.0
      %2459 = vmatprep.subr.mxu0 0.0
      %2460 = vmatpush1.msra.mxu0 0.0
      %2461 = vmatprep.subr.mxu0 0.0
      %2462 = vmatpush1.msra.mxu0 0.0
      %2463 = vmatprep.subr.mxu0 0.0
      %2464 = vmatpush1.msra.mxu0 0.0
      %2465 = vmatprep.subr.mxu0 0.0
      %2466 = vmatpush1.msra.mxu0 0.0
      %2467 = vmatprep.subr.mxu0 0.0
      %2468 = vmatpush1.msra.mxu0 0.0
      %2469 = vmatprep.subr.mxu0 0.0
      %2470 = vmatpush1.msra.mxu0 0.0
      %2471 = vmatprep.subr.mxu0 0.0
      %2472 = vmatpush1.msra.mxu0 0.0
      %2473 = vmatprep.subr.mxu0 0.0
      %2474 = vmatpush1.msra.mxu0 0.0
      %2475 = vmatprep.subr.mxu0 0.0
      %2476 = vmatpush1.msra.mxu0 0.0
      %2477 = vmatprep.subr.mxu0 0.0
      %2478 = vmatpush1.msra.mxu0 0.0
      %2479 = vmatprep.subr.mxu0 0.0
      %2480 = vmatpush1.msra.mxu0 0.0
      %2481 = vmatprep.subr.mxu0 0.0
      %2482 = vmatpush1.msra.mxu0 0.0
      %2483 = vmatprep.subr.mxu0 0.0
      %2484 = vmatpush1.msra.mxu0 0.0
      %2485 = vmatprep.mubr.f32.mxu0 0.0
      %2486 = vmatmul.mubr.f32.gmra.mrb[0].mxu0 %v2396
      %v2487 = vpop.f32.mrb[0].mxu0
      %v2488 = vadd.f32 0.0, %v2487
      %v2489 = vpop.f32.mrb[0].mxu0
      %2490 = vmatprep.mubr.f32.mxu0 0.0
      %2491 = vmatmul.mubr.f32.gmra.mrb[0].mxu0 %v2397
      %v2492 = vpop.f32.mrb[0].mxu0
      %v2493 = vadd.f32 0.0, %v2492
      %v2494 = vpop.f32.mrb[0].mxu0
      %2495 = vmatprep.mubr.f32.mxu0 0.0
      %2496 = vmatmul.mubr.f32.gmra.mrb[0].mxu0 %v2398
      %v2497 = vpop.f32.mrb[0].mxu0
      %v2498 = vadd.f32 0.0, %v2497
      %v2499 = vpop.f32.mrb[0].mxu0
      %2500 = vmatprep.mubr.f32.mxu0 0.0
      %2501 = vmatmul.mubr.f32.gmra.mrb[0].mxu0 %v2399
      %v2502 = vpop.f32.mrb[0].mxu0
      %v2503 = vadd.f32 0.0, %v2502
      %v2504 = vpop.f32.mrb[0].mxu0
      %2505 = vmatprep.mubr.f32.mxu0 0.0
      %2506 = vmatmul.mubr.f32.gmra.mrb[0].mxu0 %v2400
      %v2507 = vpop.f32.mrb[0].mxu0
      %v2508 = vadd.f32 0.0, %v2507
      %v2509 = vpop.f32.mrb[0].mxu0
      %2510 = vmatprep.mubr.f32.mxu0 0.0
      %2511 = vmatmul.mubr.f32.gmra.mrb[0].mxu0 %v2401
      %v2512 = vpop.f32.mrb[0].mxu0
      %v2513 = vadd.f32 0.0, %v2512
      %v2514 = vpop.f32.mrb[0].mxu0
      %2515 = vmatprep.mubr.f32.mxu0 0.0
      %2516 = vmatmul.mubr.f32.gmra.mrb[0].mxu0 %v2402
      %v2517 = vpop.f32.mrb[0].mxu0
      %v2518 = vadd.f32 0.0, %v2517
      %v2519 = vpop.f32.mrb[0].mxu0
      %2520 = vmatprep.mubr.f32.mxu0 0.0
      %2521 = vmatmul.mubr.f32.gmra.mrb[0].mxu0 %v2403
      %v2522 = vpop.f32.mrb[0].mxu0
      %v2523 = vadd.f32 0.0, %v2522
      %v2524 = vpop.f32.mrb[0].mxu0
      %2525 = vdwg.mxu0
      %v2526 = vadd.f32 %v2388, %v2488
      %v2527 = vadd.f32 %v2389, %v2493
      %v2528 = vadd.f32 %v2390, %v2498
      %v2529 = vadd.f32 %v2391, %v2503
      %v2530 = vadd.f32 %v2392, %v2508
      %v2531 = vadd.f32 %v2393, %v2513
      %v2532 = vadd.f32 %v2394, %v2518
      %v2533 = vadd.f32 %v2395, %v2523
      %v2535 = vlaneseq
      %v2536 = vshrl.u32 %v2535, 7
      %v2537 = vsub.s32 0, %v2536
      %v2538 = vrot.slane %v422, %v2537
      %v2540 = vadd.f32 %v2526, %v2538
      %v2541 = vadd.f32 %v2527, %v2538
      %v2542 = vadd.f32 %v2528, %v2538
      %v2543 = vadd.f32 %v2529, %v2538
      %v2544 = vadd.f32 %v2530, %v2538
      %v2545 = vadd.f32 %v2531, %v2538
      %v2546 = vadd.f32 %v2532, %v2538
      %v2547 = vadd.f32 %v2533, %v2538
      %vm2548 = vcmp.gt.f32.partialorder %v2540, 0.0
      %vm2549 = vcmp.gt.f32.partialorder %v2541, 0.0
      %vm2550 = vcmp.gt.f32.partialorder %v2542, 0.0
      %vm2551 = vcmp.gt.f32.partialorder %v2543, 0.0
      %vm2552 = vcmp.gt.f32.partialorder %v2544, 0.0
      %vm2553 = vcmp.gt.f32.partialorder %v2545, 0.0
      %vm2554 = vcmp.gt.f32.partialorder %v2546, 0.0
      %vm2555 = vcmp.gt.f32.partialorder %v2547, 0.0
      %v2556 = vmin.f32 %v2540, 0.0
      %v2557 = vmin.f32 %v2541, 0.0
      %v2558 = vmin.f32 %v2542, 0.0
      %v2559 = vmin.f32 %v2543, 0.0
      %v2560 = vmin.f32 %v2544, 0.0
      %v2561 = vmin.f32 %v2545, 0.0
      %v2562 = vmin.f32 %v2546, 0.0
      %v2563 = vmin.f32 %v2547, 0.0
      %v2564 = vmul.f32 %v2556, 1.442695
      %v2565 = vpow.pop %v2564
      %v2566 = vmul.f32 %v2557, 1.442695
      %v2567 = vpow.pop %v2566
      %v2568 = vmul.f32 %v2558, 1.442695
      %v2569 = vpow.pop %v2568
      %v2570 = vmul.f32 %v2559, 1.442695
      %v2571 = vpow.pop %v2570
      %v2572 = vmul.f32 %v2560, 1.442695
      %v2573 = vpow.pop %v2572
      %v2574 = vmul.f32 %v2561, 1.442695
      %v2575 = vpow.pop %v2574
      %v2576 = vmul.f32 %v2562, 1.442695
      %v2577 = vpow.pop %v2576
      %v2578 = vmul.f32 %v2563, 1.442695
      %v2579 = vpow.pop %v2578
      %v2580 = vsub.f32 %v2565, 1.0
      %v2581 = vsub.f32 %v2567, 1.0
      %v2582 = vsub.f32 %v2569, 1.0
      %v2583 = vsub.f32 %v2571, 1.0
      %v2584 = vsub.f32 %v2573, 1.0
      %v2585 = vsub.f32 %v2575, 1.0
      %v2586 = vsub.f32 %v2577, 1.0
      %v2587 = vsub.f32 %v2579, 1.0
      %v2588 = vsel %vm2548, %v2540, %v2580
      %v2589 = vsel %vm2549, %v2541, %v2581
      %v2590 = vsel %vm2550, %v2542, %v2582
      %v2591 = vsel %vm2551, %v2543, %v2583
      %v2592 = vsel %vm2552, %v2544, %v2584
      %v2593 = vsel %vm2553, %v2545, %v2585
      %v2594 = vsel %vm2554, %v2546, %v2586
      %v2595 = vsel %vm2555, %v2547, %v2587
      %2596 = vst.msk [vmem:[#allocation6] sm:$0xff] %vm425, %v2588
      %2597 = vst.msk [vmem:[#allocation6 + $0x8] sm:$0xff] %vm425, %v2589
      %2598 = vst.msk [vmem:[#allocation6 + $0x10] sm:$0xff] %vm425, %v2590
      %2599 = vst.msk [vmem:[#allocation6 + $0x18] sm:$0xff] %vm425, %v2591
      %2600 = vst.msk [vmem:[#allocation6 + $0x20] sm:$0xff] %vm425, %v2592
      %2601 = vst.msk [vmem:[#allocation6 + $0x28] sm:$0xff] %vm425, %v2593
      %2602 = vst.msk [vmem:[#allocation6 + $0x30] sm:$0xff] %vm425, %v2594
      %2603 = vst.msk [vmem:[#allocation6 + $0x38] sm:$0xff] %vm425, %v2595
      %v2604 = vld [vmem:[#allocation6 + $0x1] sm:$0xff]
      %v2605 = vld [vmem:[#allocation6 + $0x9] sm:$0xff]
      %v2606 = vld [vmem:[#allocation6 + $0x11] sm:$0xff]
      %v2607 = vld [vmem:[#allocation6 + $0x19] sm:$0xff]
      %v2608 = vld [vmem:[#allocation6 + $0x21] sm:$0xff]
      %v2609 = vld [vmem:[#allocation6 + $0x29] sm:$0xff]
      %v2610 = vld [vmem:[#allocation6 + $0x31] sm:$0xff]
      %v2611 = vld [vmem:[#allocation6 + $0x39] sm:$0xff]
      %v2612 = vmax.f32 %v2588, %v2604
      %v2613 = vmax.f32 %v2589, %v2605
      %v2614 = vmax.f32 %v2590, %v2606
      %v2615 = vmax.f32 %v2591, %v2607
      %v2616 = vmax.f32 %v2592, %v2608
      %v2617 = vmax.f32 %v2593, %v2609
      %v2618 = vmax.f32 %v2594, %v2610
      %v2619 = vmax.f32 %v2595, %v2611
      %2620 = vst.msk [vmem:[#allocation6] sm:$0xff] %vm425, %v2612
      %2621 = vst.msk [vmem:[#allocation6 + $0x8] sm:$0xff] %vm425, %v2613
      %2622 = vst.msk [vmem:[#allocation6 + $0x10] sm:$0xff] %vm425, %v2614
      %2623 = vst.msk [vmem:[#allocation6 + $0x18] sm:$0xff] %vm425, %v2615
      %2624 = vst.msk [vmem:[#allocation6 + $0x20] sm:$0xff] %vm425, %v2616
      %2625 = vst.msk [vmem:[#allocation6 + $0x28] sm:$0xff] %vm425, %v2617
      %2626 = vst.msk [vmem:[#allocation6 + $0x30] sm:$0xff] %vm425, %v2618
      %2627 = vst.msk [vmem:[#allocation6 + $0x38] sm:$0xff] %vm425, %v2619
      %v2628 = vld [vmem:[#allocation6 + $0x8] sm:$0xff]
      %v2629 = vld [vmem:[#allocation6 + $0x10] sm:$0xff]
      %v2630 = vld [vmem:[#allocation6 + $0x18] sm:$0xff]
      %v2631 = vld [vmem:[#allocation6 + $0x20] sm:$0xff]
      %v2632 = vld [vmem:[#allocation6 + $0x28] sm:$0xff]
      %v2633 = vld [vmem:[#allocation6 + $0x30] sm:$0xff]
      %v2634 = vld [vmem:[#allocation6 + $0x38] sm:$0xff]
      %v2635 = vld [vmem:[#allocation6 + $0x40] sm:$0xff]
      %v2636 = vmax.f32 %v2612, %v2628
      %v2637 = vmax.f32 %v2613, %v2629
      %v2638 = vmax.f32 %v2614, %v2630
      %v2639 = vmax.f32 %v2615, %v2631
      %v2640 = vmax.f32 %v2616, %v2632
      %v2641 = vmax.f32 %v2617, %v2633
      %v2642 = vmax.f32 %v2618, %v2634
      %v2643 = vmax.f32 %v2619, %v2635
      %v2645 = vsel %vm425, %v423, 0
      %v2648 = vsel %vm425, %v424, 0
      %2650 = vmatprep.subr.mxu0 0.0
      %2651 = vmatpush1.msra.mxu0 %v2636
      %2652 = vmatprep.subr.mxu0 0.0
      %2653 = vmatpush1.msra.mxu0 %v2637
      %2654 = vmatprep.subr.mxu0 0.0
      %2655 = vmatpush1.msra.mxu0 %v2638
      %2656 = vmatprep.subr.mxu0 0.0
      %2657 = vmatpush1.msra.mxu0 %v2639
      %2658 = vmatprep.subr.mxu0 0.0
      %2659 = vmatpush1.msra.mxu0 %v2640
      %2660 = vmatprep.subr.mxu0 0.0
      %2661 = vmatpush1.msra.mxu0 %v2641
      %2662 = vmatprep.subr.mxu0 0.0
      %2663 = vmatpush1.msra.mxu0 %v2642
      %2664 = vmatprep.subr.mxu0 0.0
      %2665 = vmatpush1.msra.mxu0 %v2643
      %2666 = vmatprep.subr.mxu0 0.0
      %2667 = vmatpush1.msra.mxu0 0.0
      %2668 = vmatprep.subr.mxu0 0.0
      %2669 = vmatpush1.msra.mxu0 0.0
      %2670 = vmatprep.subr.mxu0 0.0
      %2671 = vmatpush1.msra.mxu0 0.0
      %2672 = vmatprep.subr.mxu0 0.0
      %2673 = vmatpush1.msra.mxu0 0.0
      %2674 = vmatprep.subr.mxu0 0.0
      %2675 = vmatpush1.msra.mxu0 0.0
      %2676 = vmatprep.subr.mxu0 0.0
      %2677 = vmatpush1.msra.mxu0 0.0
      %2678 = vmatprep.subr.mxu0 0.0
      %2679 = vmatpush1.msra.mxu0 0.0
      %2680 = vmatprep.subr.mxu0 0.0
      %2681 = vmatpush1.msra.mxu0 0.0
      %2682 = vmatprep.subr.mxu0 0.0
      %2683 = vmatpush1.msra.mxu0 0.0
      %2684 = vmatprep.subr.mxu0 0.0
      %2685 = vmatpush1.msra.mxu0 0.0
      %2686 = vmatprep.subr.mxu0 0.0
      %2687 = vmatpush1.msra.mxu0 0.0
      %2688 = vmatprep.subr.mxu0 0.0
      %2689 = vmatpush1.msra.mxu0 0.0
      %2690 = vmatprep.subr.mxu0 0.0
      %2691 = vmatpush1.msra.mxu0 0.0
      %2692 = vmatprep.subr.mxu0 0.0
      %2693 = vmatpush1.msra.mxu0 0.0
      %2694 = vmatprep.subr.mxu0 0.0
      %2695 = vmatpush1.msra.mxu0 0.0
      %2696 = vmatprep.subr.mxu0 0.0
      %2697 = vmatpush1.msra.mxu0 0.0
      %2698 = vmatprep.subr.mxu0 0.0
      %2699 = vmatpush1.msra.mxu0 0.0
      %2700 = vmatprep.subr.mxu0 0.0
      %2701 = vmatpush1.msra.mxu0 0.0
      %2702 = vmatprep.subr.mxu0 0.0
      %2703 = vmatpush1.msra.mxu0 0.0
      %2704 = vmatprep.subr.mxu0 0.0
      %2705 = vmatpush1.msra.mxu0 0.0
      %2706 = vmatprep.subr.mxu0 0.0
      %2707 = vmatpush1.msra.mxu0 0.0
      %2708 = vmatprep.subr.mxu0 0.0
      %2709 = vmatpush1.msra.mxu0 0.0
      %2710 = vmatprep.subr.mxu0 0.0
      %2711 = vmatpush1.msra.mxu0 0.0
      %2712 = vmatprep.subr.mxu0 0.0
      %2713 = vmatpush1.msra.mxu0 0.0
      %2714 = vmatprep.mubr.f32.mxu0 0.0
      %2715 = vmatmul.mubr.f32.gmra.mrb[0].mxu0 %v2645
      %v2716 = vpop.f32.mrb[0].mxu0
      %v2717 = vadd.f32 0.0, %v2716
      %v2718 = vpop.f32.mrb[0].mxu0
      %2719 = vmatprep.mubr.f32.mxu0 0.0
      %2720 = vmatmul.mubr.f32.gmra.mrb[0].mxu0 %v2648
      %v2721 = vpop.f32.mrb[0].mxu0
      %v2722 = vadd.f32 0.0, %v2721
      %v2723 = vpop.f32.mrb[0].mxu0
      %2724 = vdwg.mxu0
      %2725 = vst.msk [vmem:[#allocation7] sm:$0xff] %vm425, %v2717
      %2726 = vst.msk [vmem:[#allocation7 + $0x8] sm:$0xff] %vm425, %v2722
      %v2727 = vld [vmem:[#allocation7] sm:$0x3]
      %v2728 = vld [vmem:[#allocation7 + $0x1] sm:$0x3]
      %v2729 = vld [vmem:[#allocation7 + $0x2] sm:$0x3]
      %v2730 = vld [vmem:[#allocation7 + $0x4] sm:$0x3]
      %v2731 = vld [vmem:[#allocation7 + $0x5] sm:$0x3]
      %v2732 = vld [vmem:[#allocation7 + $0x6] sm:$0x3]
      %v2733 = vld [vmem:[#allocation7 + $0x8] sm:$0x3]
      %v2734 = vld [vmem:[#allocation7 + $0x9] sm:$0x3]
      %v2735 = vld [vmem:[#allocation7 + $0xa] sm:$0x3]
      %2737 = vrot.lane.b32.xlu0 %v2728, 64
      %v2738 = vpop.permute.xlu0 %2737
      %2741 = vrot.lane.b32.xlu0 %v2730, 64
      %v2742 = vpop.permute.xlu0 %2741
      %2745 = vrot.lane.b32.xlu0 %v2732, 64
      %v2746 = vpop.permute.xlu0 %2745
      %2749 = vrot.lane.b32.xlu0 %v2734, 64
      %v2750 = vpop.permute.xlu0 %2749
      %v2752 = vsel %vm425, %v2727, %v2738
      %v2753 = vsel %vm425, %v2729, %v2742
      %v2754 = vsel %vm425, %v2731, %v2746
      %v2755 = vsel %vm425, %v2733, %v2750
      %v2756 = vld [vmem:[#allocation7 + $0xc] sm:$0x3]
      %v2757 = vld [vmem:[#allocation7 + $0xd] sm:$0x3]
      %v2758 = vld [vmem:[#allocation7 + $0xe] sm:$0x3]
      %2760 = vrot.lane.b32.xlu0 %v2731, 64
      %v2761 = vpop.permute.xlu0 %2760
      %2764 = vrot.lane.b32.xlu0 %v2733, 64
      %v2765 = vpop.permute.xlu0 %2764
      %2768 = vrot.lane.b32.xlu0 %v2735, 64
      %v2769 = vpop.permute.xlu0 %2768
      %2772 = vrot.lane.b32.xlu0 %v2757, 64
      %v2773 = vpop.permute.xlu0 %2772
      %v2775 = vsel %vm425, %v2730, %v2761
      %v2776 = vsel %vm425, %v2732, %v2765
      %v2777 = vsel %vm425, %v2734, %v2769
      %v2778 = vsel %vm425, %v2756, %v2773
      %v2784 = vrot.slane %v2775, 6
      %v2785 = vrot.slane %v2776, 6
      %v2786 = vrot.slane %v2777, 6
      %v2787 = vrot.slane %v2778, 6
      %v2788 = vrot.slane %v2758, 6
      %vm2794 = vcmask 1041408
      %v2795 = vsel %vm2794, %v2752, %v2784
      %v2796 = vsel %vm2794, %v2753, %v2785
      %v2797 = vsel %vm2794, %v2754, %v2786
      %v2798 = vsel %vm2794, %v2755, %v2787
      %v2799 = vsel %vm2794, %v2735, %v2788
      %v2800 = vld [vmem:[%s6] sm:$0xff]
      %v2801 = vld [vmem:[%s6 + $0x8] sm:$0xff]
      %v2802 = vld [vmem:[%s6 + $0x10] sm:$0xff]
      %v2803 = vld [vmem:[%s6 + $0x18] sm:$0xff]
      %v2804 = vld [vmem:[%s6 + $0x20] sm:$0xff]
      %v2805 = vld [vmem:[%s6 + $0x28] sm:$0xff]
      %v2806 = vld [vmem:[%s6 + $0x30] sm:$0xff]
      %v2807 = vld [vmem:[%s6 + $0x38] sm:$0xff]
      %v2808 = vld [vmem:[%s6 + $0x40] sm:$0xff]
      %v2809 = vld [vmem:[%s6 + $0x48] sm:$0xff]
      %v2810 = vld [vmem:[%s6 + $0x50] sm:$0xff]
      %v2811 = vld [vmem:[%s6 + $0x58] sm:$0xff]
      %v2812 = vld [vmem:[%s6 + $0x60] sm:$0xff]
      %v2813 = vld [vmem:[%s6 + $0x68] sm:$0xff]
      %v2814 = vld [vmem:[%s6 + $0x70] sm:$0xff]
      %v2815 = vld [vmem:[%s6 + $0x78] sm:$0xff]
      %v2816 = vld [vmem:[%s6 + $0x80] sm:$0xff]
      %v2817 = vld [vmem:[%s6 + $0x88] sm:$0xff]
      %v2818 = vld [vmem:[%s6 + $0x90] sm:$0xff]
      %v2819 = vld [vmem:[%s6 + $0x98] sm:$0xff]
      %v2820 = vld [vmem:[%s6 + $0xa0] sm:$0xff]
      %v2821 = vld [vmem:[%s6 + $0xa8] sm:$0xff]
      %v2822 = vld [vmem:[%s6 + $0xb0] sm:$0xff]
      %v2823 = vld [vmem:[%s6 + $0xb8] sm:$0xff]
      %v2824 = vld [vmem:[%s6 + $0xc0] sm:$0xff]
      %v2825 = vld [vmem:[%s6 + $0xc8] sm:$0xff]
      %v2826 = vld [vmem:[%s6 + $0xd0] sm:$0xff]
      %v2827 = vld [vmem:[%s6 + $0xd8] sm:$0xff]
      %v2828 = vld [vmem:[%s6 + $0xe0] sm:$0xff]
      %v2829 = vld [vmem:[%s6 + $0xe8] sm:$0xff]
      %v2830 = vld [vmem:[%s6 + $0xf0] sm:$0xff]
      %v2831 = vld [vmem:[%s6 + $0xf8] sm:$0xff]
      %v2832 = vld [vmem:[%s6 + $0x100] sm:$0xff]
      %v2833 = vld [vmem:[%s6 + $0x108] sm:$0xff]
      %v2834 = vld [vmem:[%s6 + $0x110] sm:$0xff]
      %v2835 = vld [vmem:[%s6 + $0x118] sm:$0xff]
      %v2836 = vld [vmem:[%s6 + $0x120] sm:$0xff]
      %v2837 = vld [vmem:[%s6 + $0x128] sm:$0xff]
      %v2838 = vld [vmem:[%s6 + $0x130] sm:$0xff]
      %v2839 = vld [vmem:[%s6 + $0x138] sm:$0xff]
      %v2840 = vld [vmem:[%s6 + $0x140] sm:$0xff]
      %v2841 = vld [vmem:[%s6 + $0x148] sm:$0xff]
      %v2842 = vld [vmem:[%s6 + $0x150] sm:$0xff]
      %v2843 = vld [vmem:[%s6 + $0x158] sm:$0xff]
      %v2844 = vld [vmem:[%s6 + $0x160] sm:$0xff]
      %v2845 = vld [vmem:[%s6 + $0x168] sm:$0xff]
      %v2846 = vld [vmem:[%s6 + $0x170] sm:$0xff]
      %v2847 = vld [vmem:[%s6 + $0x178] sm:$0xff]
      %v2848 = vld [vmem:[%s6 + $0x180] sm:$0xff]
      %v2849 = vld [vmem:[%s6 + $0x188] sm:$0xff]
      %v2850 = vld [vmem:[%s6 + $0x190] sm:$0xff]
      %v2851 = vld [vmem:[%s6 + $0x198] sm:$0xff]
      %v2852 = vld [vmem:[%s6 + $0x1a0] sm:$0xff]
      %v2853 = vld [vmem:[%s6 + $0x1a8] sm:$0xff]
      %v2854 = vld [vmem:[%s6 + $0x1b0] sm:$0xff]
      %v2855 = vld [vmem:[%s6 + $0x1b8] sm:$0xff]
      %v2856 = vld [vmem:[%s6 + $0x1c0] sm:$0xff]
      %v2857 = vld [vmem:[%s6 + $0x1c8] sm:$0xff]
      %v2858 = vld [vmem:[%s6 + $0x1d0] sm:$0xff]
      %v2859 = vld [vmem:[%s6 + $0x1d8] sm:$0xff]
      %v2860 = vld [vmem:[%s6 + $0x1e0] sm:$0xff]
      %v2861 = vld [vmem:[%s6 + $0x1e8] sm:$0xff]
      %v2862 = vld [vmem:[%s6 + $0x1f0] sm:$0xff]
      %v2863 = vld [vmem:[%s6 + $0x1f8] sm:$0xff]
      %v2864 = vld [vmem:[%s6 + $0x200] sm:$0xff]
      %v2865 = vld [vmem:[%s6 + $0x208] sm:$0xff]
      %v2866 = vld [vmem:[%s6 + $0x210] sm:$0xff]
      %v2867 = vld [vmem:[%s6 + $0x218] sm:$0xff]
      %v2868 = vld [vmem:[%s6 + $0x220] sm:$0xff]
      %v2869 = vld [vmem:[%s6 + $0x228] sm:$0xff]
      %v2870 = vld [vmem:[%s6 + $0x230] sm:$0xff]
      %v2871 = vld [vmem:[%s6 + $0x238] sm:$0xff]
      %v2872 = vld [vmem:[%s7] sm:$0x1]
      %v2874 = vlaneseq
      %v2875 = vshrl.u32 %v2874, 7
      %v2876 = vsub.s32 0, %v2875
      %v2877 = vrot.slane %v2872, %v2876
      %v2880 = vsel %vm425, %v2799, 0
      %2882 = vmatprep.subr.mxu0 0.0
      %2883 = vmatpush1.msra.mxu0 %v2800
      %2884 = vmatprep.subr.mxu0 0.0
      %2885 = vmatpush1.msra.mxu0 %v2801
      %2886 = vmatprep.subr.mxu0 0.0
      %2887 = vmatpush1.msra.mxu0 %v2802
      %2888 = vmatprep.subr.mxu0 0.0
      %2889 = vmatpush1.msra.mxu0 %v2803
      %2890 = vmatprep.subr.mxu0 0.0
      %2891 = vmatpush1.msra.mxu0 %v2804
      %2892 = vmatprep.subr.mxu0 0.0
      %2893 = vmatpush1.msra.mxu0 %v2805
      %2894 = vmatprep.subr.mxu0 0.0
      %2895 = vmatpush1.msra.mxu0 %v2806
      %2896 = vmatprep.subr.mxu0 0.0
      %2897 = vmatpush1.msra.mxu0 %v2807
      %2898 = vmatprep.subr.mxu0 0.0
      %2899 = vmatpush1.msra.mxu0 %v2808
      %2900 = vmatprep.subr.mxu0 0.0
      %2901 = vmatpush1.msra.mxu0 %v2809
      %2902 = vmatprep.subr.mxu0 0.0
      %2903 = vmatpush1.msra.mxu0 %v2810
      %2904 = vmatprep.subr.mxu0 0.0
      %2905 = vmatpush1.msra.mxu0 %v2811
      %2906 = vmatprep.subr.mxu0 0.0
      %2907 = vmatpush1.msra.mxu0 %v2812
      %2908 = vmatprep.subr.mxu0 0.0
      %2909 = vmatpush1.msra.mxu0 %v2813
      %2910 = vmatprep.subr.mxu0 0.0
      %2911 = vmatpush1.msra.mxu0 %v2814
      %2912 = vmatprep.subr.mxu0 0.0
      %2913 = vmatpush1.msra.mxu0 %v2815
      %2914 = vmatprep.subr.mxu0 0.0
      %2915 = vmatpush1.msra.mxu0 %v2816
      %2916 = vmatprep.subr.mxu0 0.0
      %2917 = vmatpush1.msra.mxu0 %v2817
      %2918 = vmatprep.subr.mxu0 0.0
      %2919 = vmatpush1.msra.mxu0 %v2818
      %2920 = vmatprep.subr.mxu0 0.0
      %2921 = vmatpush1.msra.mxu0 %v2819
      %2922 = vmatprep.subr.mxu0 0.0
      %2923 = vmatpush1.msra.mxu0 %v2820
      %2924 = vmatprep.subr.mxu0 0.0
      %2925 = vmatpush1.msra.mxu0 %v2821
      %2926 = vmatprep.subr.mxu0 0.0
      %2927 = vmatpush1.msra.mxu0 %v2822
      %2928 = vmatprep.subr.mxu0 0.0
      %2929 = vmatpush1.msra.mxu0 %v2823
      %2930 = vmatprep.subr.mxu0 0.0
      %2931 = vmatpush1.msra.mxu0 %v2824
      %2932 = vmatprep.subr.mxu0 0.0
      %2933 = vmatpush1.msra.mxu0 %v2825
      %2934 = vmatprep.subr.mxu0 0.0
      %2935 = vmatpush1.msra.mxu0 %v2826
      %2936 = vmatprep.subr.mxu0 0.0
      %2937 = vmatpush1.msra.mxu0 %v2827
      %2938 = vmatprep.subr.mxu0 0.0
      %2939 = vmatpush1.msra.mxu0 %v2828
      %2940 = vmatprep.subr.mxu0 0.0
      %2941 = vmatpush1.msra.mxu0 %v2829
      %2942 = vmatprep.subr.mxu0 0.0
      %2943 = vmatpush1.msra.mxu0 %v2830
      %2944 = vmatprep.subr.mxu0 0.0
      %2945 = vmatpush1.msra.mxu0 %v2831
      %2946 = vmatprep.mubr.f32.mxu0 %v2796
      %2947 = vmatmul.mubr.f32.gmra.mrb[0].mxu0 %v2795
      %v2948 = vpop.f32.mrb[0].mxu0
      %v2949 = vadd.f32 %v2877, %v2948
      %v2950 = vpop.f32.mrb[0].mxu0
      %2951 = vdwg.mxu0
      %2952 = vmatprep.subr.mxu0 0.0
      %2953 = vmatpush1.msra.mxu0 %v2832
      %2954 = vmatprep.subr.mxu0 0.0
      %2955 = vmatpush1.msra.mxu0 %v2833
      %2956 = vmatprep.subr.mxu0 0.0
      %2957 = vmatpush1.msra.mxu0 %v2834
      %2958 = vmatprep.subr.mxu0 0.0
      %2959 = vmatpush1.msra.mxu0 %v2835
      %2960 = vmatprep.subr.mxu0 0.0
      %2961 = vmatpush1.msra.mxu0 %v2836
      %2962 = vmatprep.subr.mxu0 0.0
      %2963 = vmatpush1.msra.mxu0 %v2837
      %2964 = vmatprep.subr.mxu0 0.0
      %2965 = vmatpush1.msra.mxu0 %v2838
      %2966 = vmatprep.subr.mxu0 0.0
      %2967 = vmatpush1.msra.mxu0 %v2839
      %2968 = vmatprep.subr.mxu0 0.0
      %2969 = vmatpush1.msra.mxu0 %v2840
      %2970 = vmatprep.subr.mxu0 0.0
      %2971 = vmatpush1.msra.mxu0 %v2841
      %2972 = vmatprep.subr.mxu0 0.0
      %2973 = vmatpush1.msra.mxu0 %v2842
      %2974 = vmatprep.subr.mxu0 0.0
      %2975 = vmatpush1.msra.mxu0 %v2843
      %2976 = vmatprep.subr.mxu0 0.0
      %2977 = vmatpush1.msra.mxu0 %v2844
      %2978 = vmatprep.subr.mxu0 0.0
      %2979 = vmatpush1.msra.mxu0 %v2845
      %2980 = vmatprep.subr.mxu0 0.0
      %2981 = vmatpush1.msra.mxu0 %v2846
      %2982 = vmatprep.subr.mxu0 0.0
      %2983 = vmatpush1.msra.mxu0 %v2847
      %2984 = vmatprep.subr.mxu0 0.0
      %2985 = vmatpush1.msra.mxu0 %v2848
      %2986 = vmatprep.subr.mxu0 0.0
      %2987 = vmatpush1.msra.mxu0 %v2849
      %2988 = vmatprep.subr.mxu0 0.0
      %2989 = vmatpush1.msra.mxu0 %v2850
      %2990 = vmatprep.subr.mxu0 0.0
      %2991 = vmatpush1.msra.mxu0 %v2851
      %2992 = vmatprep.subr.mxu0 0.0
      %2993 = vmatpush1.msra.mxu0 %v2852
      %2994 = vmatprep.subr.mxu0 0.0
      %2995 = vmatpush1.msra.mxu0 %v2853
      %2996 = vmatprep.subr.mxu0 0.0
      %2997 = vmatpush1.msra.mxu0 %v2854
      %2998 = vmatprep.subr.mxu0 0.0
      %2999 = vmatpush1.msra.mxu0 %v2855
      %3000 = vmatprep.subr.mxu0 0.0
      %3001 = vmatpush1.msra.mxu0 %v2856
      %3002 = vmatprep.subr.mxu0 0.0
      %3003 = vmatpush1.msra.mxu0 %v2857
      %3004 = vmatprep.subr.mxu0 0.0
      %3005 = vmatpush1.msra.mxu0 %v2858
      %3006 = vmatprep.subr.mxu0 0.0
      %3007 = vmatpush1.msra.mxu0 %v2859
      %3008 = vmatprep.subr.mxu0 0.0
      %3009 = vmatpush1.msra.mxu0 %v2860
      %3010 = vmatprep.subr.mxu0 0.0
      %3011 = vmatpush1.msra.mxu0 %v2861
      %3012 = vmatprep.subr.mxu0 0.0
      %3013 = vmatpush1.msra.mxu0 %v2862
      %3014 = vmatprep.subr.mxu0 0.0
      %3015 = vmatpush1.msra.mxu0 %v2863
      %3016 = vmatprep.mubr.f32.mxu0 %v2798
      %3017 = vmatmul.mubr.f32.gmra.mrb[0].mxu0 %v2797
      %v3018 = vpop.f32.mrb[0].mxu0
      %v3019 = vadd.f32 %v2949, %v3018
      %v3020 = vpop.f32.mrb[0].mxu0
      %3021 = vdwg.mxu0
      %3022 = vmatprep.subr.mxu0 0.0
      %3023 = vmatpush1.msra.mxu0 %v2864
      %3024 = vmatprep.subr.mxu0 0.0
      %3025 = vmatpush1.msra.mxu0 %v2865
      %3026 = vmatprep.subr.mxu0 0.0
      %3027 = vmatpush1.msra.mxu0 %v2866
      %3028 = vmatprep.subr.mxu0 0.0
      %3029 = vmatpush1.msra.mxu0 %v2867
      %3030 = vmatprep.subr.mxu0 0.0
      %3031 = vmatpush1.msra.mxu0 %v2868
      %3032 = vmatprep.subr.mxu0 0.0
      %3033 = vmatpush1.msra.mxu0 %v2869
      %3034 = vmatprep.subr.mxu0 0.0
      %3035 = vmatpush1.msra.mxu0 %v2870
      %3036 = vmatprep.subr.mxu0 0.0
      %3037 = vmatpush1.msra.mxu0 %v2871
      %3038 = vmatprep.subr.mxu0 0.0
      %3039 = vmatpush1.msra.mxu0 0.0
      %3040 = vmatprep.subr.mxu0 0.0
      %3041 = vmatpush1.msra.mxu0 0.0
      %3042 = vmatprep.subr.mxu0 0.0
      %3043 = vmatpush1.msra.mxu0 0.0
      %3044 = vmatprep.subr.mxu0 0.0
      %3045 = vmatpush1.msra.mxu0 0.0
      %3046 = vmatprep.subr.mxu0 0.0
      %3047 = vmatpush1.msra.mxu0 0.0
      %3048 = vmatprep.subr.mxu0 0.0
      %3049 = vmatpush1.msra.mxu0 0.0
      %3050 = vmatprep.subr.mxu0 0.0
      %3051 = vmatpush1.msra.mxu0 0.0
      %3052 = vmatprep.subr.mxu0 0.0
      %3053 = vmatpush1.msra.mxu0 0.0
      %3054 = vmatprep.subr.mxu0 0.0
      %3055 = vmatpush1.msra.mxu0 0.0
      %3056 = vmatprep.subr.mxu0 0.0
      %3057 = vmatpush1.msra.mxu0 0.0
      %3058 = vmatprep.subr.mxu0 0.0
      %3059 = vmatpush1.msra.mxu0 0.0
      %3060 = vmatprep.subr.mxu0 0.0
      %3061 = vmatpush1.msra.mxu0 0.0
      %3062 = vmatprep.subr.mxu0 0.0
      %3063 = vmatpush1.msra.mxu0 0.0
      %3064 = vmatprep.subr.mxu0 0.0
      %3065 = vmatpush1.msra.mxu0 0.0
      %3066 = vmatprep.subr.mxu0 0.0
      %3067 = vmatpush1.msra.mxu0 0.0
      %3068 = vmatprep.subr.mxu0 0.0
      %3069 = vmatpush1.msra.mxu0 0.0
      %3070 = vmatprep.subr.mxu0 0.0
      %3071 = vmatpush1.msra.mxu0 0.0
      %3072 = vmatprep.subr.mxu0 0.0
      %3073 = vmatpush1.msra.mxu0 0.0
      %3074 = vmatprep.subr.mxu0 0.0
      %3075 = vmatpush1.msra.mxu0 0.0
      %3076 = vmatprep.subr.mxu0 0.0
      %3077 = vmatpush1.msra.mxu0 0.0
      %3078 = vmatprep.subr.mxu0 0.0
      %3079 = vmatpush1.msra.mxu0 0.0
      %3080 = vmatprep.subr.mxu0 0.0
      %3081 = vmatpush1.msra.mxu0 0.0
      %3082 = vmatprep.subr.mxu0 0.0
      %3083 = vmatpush1.msra.mxu0 0.0
      %3084 = vmatprep.subr.mxu0 0.0
      %3085 = vmatpush1.msra.mxu0 0.0
      %3086 = vmatprep.mubr.f32.mxu0 0.0
      %3087 = vmatmul.mubr.f32.gmra.mrb[0].mxu0 %v2880
      %v3088 = vpop.f32.mrb[0].mxu0
      %v3089 = vadd.f32 %v3019, %v3088
      %v3090 = vpop.f32.mrb[0].mxu0
      %3091 = vdwg.mxu0
      %vm3092 = vcmp.gt.f32.partialorder %v3089, 0.0
      %v3093 = vmin.f32 %v3089, 0.0
      %v3094 = vmul.f32 %v3093, 1.442695
      %v3095 = vpow.pop %v3094
      %v3096 = vsub.f32 %v3095, 1.0
      %v3097 = vsel %vm3092, %v3089, %v3096
      %v3098 = vld [vmem:[%s8] sm:$0xff]
      %v3099 = vld [vmem:[%s8 + $0x8] sm:$0xff]
      %v3100 = vld [vmem:[%s8 + $0x10] sm:$0xff]
      %v3101 = vld [vmem:[%s8 + $0x18] sm:$0xff]
      %v3102 = vld [vmem:[%s9] sm:$0x1]
      %v3104 = vlaneseq
      %v3105 = vshrl.u32 %v3104, 7
      %v3106 = vsub.s32 0, %v3105
      %v3107 = vrot.slane %v3102, %v3106
      %vm3109 = vcmask 261120
      %v3111 = vsel %vm3109, %v3097, 0
      %3113 = vmatprep.subr.mxu0 0.0
      %3114 = vmatpush1.msra.mxu0 %v3098
      %3115 = vmatprep.subr.mxu0 0.0
      %3116 = vmatpush1.msra.mxu0 %v3099
      %3117 = vmatprep.subr.mxu0 0.0
      %3118 = vmatpush1.msra.mxu0 %v3100
      %3119 = vmatprep.subr.mxu0 0.0
      %3120 = vmatpush1.msra.mxu0 %v3101
      %3121 = vmatprep.subr.mxu0 0.0
      %3122 = vmatpush1.msra.mxu0 0.0
      %3123 = vmatprep.subr.mxu0 0.0
      %3124 = vmatpush1.msra.mxu0 0.0
      %3125 = vmatprep.subr.mxu0 0.0
      %3126 = vmatpush1.msra.mxu0 0.0
      %3127 = vmatprep.subr.mxu0 0.0
      %3128 = vmatpush1.msra.mxu0 0.0
      %3129 = vmatprep.subr.mxu0 0.0
      %3130 = vmatpush1.msra.mxu0 0.0
      %3131 = vmatprep.subr.mxu0 0.0
      %3132 = vmatpush1.msra.mxu0 0.0
      %3133 = vmatprep.subr.mxu0 0.0
      %3134 = vmatpush1.msra.mxu0 0.0
      %3135 = vmatprep.subr.mxu0 0.0
      %3136 = vmatpush1.msra.mxu0 0.0
      %3137 = vmatprep.subr.mxu0 0.0
      %3138 = vmatpush1.msra.mxu0 0.0
      %3139 = vmatprep.subr.mxu0 0.0
      %3140 = vmatpush1.msra.mxu0 0.0
      %3141 = vmatprep.subr.mxu0 0.0
      %3142 = vmatpush1.msra.mxu0 0.0
      %3143 = vmatprep.subr.mxu0 0.0
      %3144 = vmatpush1.msra.mxu0 0.0
      %3145 = vmatprep.subr.mxu0 0.0
      %3146 = vmatpush1.msra.mxu0 0.0
      %3147 = vmatprep.subr.mxu0 0.0
      %3148 = vmatpush1.msra.mxu0 0.0
      %3149 = vmatprep.subr.mxu0 0.0
      %3150 = vmatpush1.msra.mxu0 0.0
      %3151 = vmatprep.subr.mxu0 0.0
      %3152 = vmatpush1.msra.mxu0 0.0
      %3153 = vmatprep.subr.mxu0 0.0
      %3154 = vmatpush1.msra.mxu0 0.0
      %3155 = vmatprep.subr.mxu0 0.0
      %3156 = vmatpush1.msra.mxu0 0.0
      %3157 = vmatprep.subr.mxu0 0.0
      %3158 = vmatpush1.msra.mxu0 0.0
      %3159 = vmatprep.subr.mxu0 0.0
      %3160 = vmatpush1.msra.mxu0 0.0
      %3161 = vmatprep.subr.mxu0 0.0
      %3162 = vmatpush1.msra.mxu0 0.0
      %3163 = vmatprep.subr.mxu0 0.0
      %3164 = vmatpush1.msra.mxu0 0.0
      %3165 = vmatprep.subr.mxu0 0.0
      %3166 = vmatpush1.msra.mxu0 0.0
      %3167 = vmatprep.subr.mxu0 0.0
      %3168 = vmatpush1.msra.mxu0 0.0
      %3169 = vmatprep.subr.mxu0 0.0
      %3170 = vmatpush1.msra.mxu0 0.0
      %3171 = vmatprep.subr.mxu0 0.0
      %3172 = vmatpush1.msra.mxu0 0.0
      %3173 = vmatprep.subr.mxu0 0.0
      %3174 = vmatpush1.msra.mxu0 0.0
      %3175 = vmatprep.subr.mxu0 0.0
      %3176 = vmatpush1.msra.mxu0 0.0
      %3177 = vmatprep.mubr.f32.mxu0 0.0
      %3178 = vmatmul.mubr.f32.gmra.mrb[0].mxu0 %v3111
      %v3179 = vpop.f32.mrb[0].mxu0
      %v3180 = vadd.f32 %v3107, %v3179
      %v3181 = vpop.f32.mrb[0].mxu0
      %3182 = vdwg.mxu0
      %vm3183 = vcmp.gt.f32.partialorder %v3180, 0.0
      %v3184 = vmin.f32 %v3180, 0.0
      %v3185 = vmul.f32 %v3184, 1.442695
      %v3186 = vpow.pop %v3185
      %v3187 = vsub.f32 %v3186, 1.0
      %v3188 = vsel %vm3183, %v3180, %v3187
      %v3190 = vrot.slane %v3188, 1
      %v3192 = vadd.f32 %v3188, %v3190
      %v3193 = vrot.slane %v3188, 2
      %v3195 = vadd.f32 %v3192, %v3193
      %v3196 = vrot.slane %v3188, 3
      %v3198 = vadd.f32 %v3195, %v3196
      %v3199 = vmul.f32 %v3198, 0.25
      %vm3200 = vcmask 40960
      %v3201 = vsel %vm3200, %v3199, -inf
      %3202 = vmax.xlane.f32.xlu0 %v3201
      %v3203 = vpop.xlane.xlu0 %3202
      %v3204 = vsub.f32 %v3199, %v3203
      %v3205 = vmul.f32 %v3204, 1.442695
      %v3206 = vpow.pop %v3205
      %v3207 = vsel %vm3200, %v3206, 0.0
      %3208 = vadd.xlane.f32.xlu0 %v3207
      %v3209 = vpop.xlane.xlu0 %3208
      %v3210 = vrcp.pop %v3209
      %v3211 = vmul.f32 %v3206, %v3210
      %v3212 = vld [vmem:[%s10] sm:$0x1]
      %v3213 = vmul.f32 %v3211, %v3212
      %v3214 = vsel %vm3200, %v3213, 0.0
      %3215 = vadd.xlane.f32.xlu0 %v3214
      %v3216 = vpop.xlane.xlu0 %3215
      %vm3217 = vcmask 0
      %3218 = vst.msk [vmem:[%s382] sm:$0x1] %vm3217, %v3216
      %p3219 = scmp.lt.s32.totalorder %s22, 1
      %s3220 = scalar_select %p3219, %s22, 1
      %s3221 = scalar_lea.vmem %s11, %s3220
      // Predicated region
      $region65: #{classifier_net3_forward.1} parent=63 // pred_check
        %p3222 = pneg %p276
      $region66: #{classifier_net3_forward.1} parent=63 // pred_check_branch
        %3224 = sbr.rel (%p3222) target = $region68
      $region67: #{classifier_net3_forward.1} parent=63 // pred_region
        _
      $region68: #{classifier_net3_forward.1} parent=63 // pred_fallthru
        _
    $region64: #{classifier_net3_forward.1} parent=5 // pred_fallthru
      _
    %p3225 = scmp.le.s32.totalorder 2, %s17
    // Predicated region
    $region69: #{classifier_net3_forward.1} parent=5 // pred_check
      %p3226 = pneg %p3225
    $region70: #{classifier_net3_forward.1} parent=5 // pred_check_branch
      %3228 = sbr.rel (%p3226) target = $region72
    $region71: #{classifier_net3_forward.1} parent=5 // pred_region
      %s3229 = ssub.s32 %s17, 2
      // Predicated region
      $region73: #{classifier_net3_forward.1} parent=71 // pred_check
        %p3230 = pneg %p282
      $region74: #{classifier_net3_forward.1} parent=71 // pred_check_branch
        %3232 = sbr.rel (%p3230) target = $region76
      $region75: #{classifier_net3_forward.1} parent=71 // pred_region
        %p3233 = scmp.lt.s32.totalorder %s23, 1
        %s3234 = scalar_select %p3233, %s23, 1
        %s3235 = scalar_lea.vmem %s11, %s3234
      $region76: #{classifier_net3_forward.1} parent=71 // pred_fallthru
        _
    $region72: #{classifier_net3_forward.1} parent=5 // pred_fallthru
      _
  $region6: #{classifier_net3_forward.1} parent=0 // loop_footer
    %s21 = sadd.s32 1, %s17
  $region7: #{classifier_net3_forward.1} parent=0 // loop_footer_branch
    %16 = sbr.rel target = $region3
  $region8: #{classifier_net3_forward.1} parent=0 // loop_exit
    _

</llo_original>
